<compile_context>
chip_gen: v7x
topology: tpu7x:2x2x1
jax: 0.10.0
libtpu: 0.0.40
codegen_flags: <defaults>
</compile_context>

<pallas_src>
import functools
import math

import jax
import jax.numpy as jnp
from jax import lax
from jax.experimental import pallas as pl
from jax.experimental.pallas import tpu as pltpu


# ----------------------------- in-kernel helpers -----------------------------

def _gelu_tanh(x):
    c = math.sqrt(2.0 / math.pi)
    return 0.5 * x * (1.0 + jnp.tanh(c * (x + 0.044715 * x * x * x)))


def _layer_norm(x, gamma, beta, eps):
    mean = jnp.mean(x, axis=-1, keepdims=True)
    var = jnp.mean(jnp.square(x - mean), axis=-1, keepdims=True)
    return (x - mean) * lax.rsqrt(var + eps) * gamma + beta


# ----------------------------- Pallas kernels --------------------------------

def _embedding_ln_kernel(x_ref, g_ref, b_ref, o_ref, *, eps):
    # Residual-free LayerNorm over a (tm, H) row tile; bf16 output.
    o_ref[...] = _layer_norm(x_ref[...], g_ref[...], b_ref[...], eps).astype(o_ref.dtype)


def _layer_core(x_ref, mask_ref,
                wq_ref, bq_ref, wk_ref, bk_ref, wv_ref, bv_ref, wo_ref, bo_ref,
                ln1g_ref, ln1b_ref, w1_ref, b1_ref, w2_ref, b2_ref,
                ln2g_ref, ln2b_ref, *, n_heads, head_dim, ffn_chunk, eps):
    """One BERT encoder layer for one batch element; returns x2 (S, H) float32."""
    xb = x_ref[0]                                   # (S, H) bf16 activations
    S, H = xb.shape
    xf = xb.astype(jnp.float32)                     # f32 copy for residual / LN
    # Hoisted, loop-invariant mask broadcast (JAX does not CSE broadcast_in_dim).
    mask2d = jnp.broadcast_to(mask_ref[0], (S, S))  # additive mask, f32
    scale = 1.0 / math.sqrt(head_dim)

    # --- multi-head self-attention -------------------------------------------
    # fori_loop over heads: one (S,S) f32 score tile live at a time; weights are
    # head-major so no lane slicing; per-head context folds straight into the
    # output projection accumulator (no concatenate).
    def head_body(h, acc):
        q = jnp.dot(xb, wq_ref[h], preferred_element_type=jnp.float32) + bq_ref[h]
        k = jnp.dot(xb, wk_ref[h], preferred_element_type=jnp.float32) + bk_ref[h]
        v = jnp.dot(xb, wv_ref[h], preferred_element_type=jnp.float32) + bv_ref[h]
        s = lax.dot_general(q.astype(jnp.bfloat16), k.astype(jnp.bfloat16),
                            (((1,), (1,)), ((), ())),
                            preferred_element_type=jnp.float32) * scale + mask2d
        m = jnp.max(s, axis=-1, keepdims=True)
        p = jnp.exp(s - m)                                          # f32 (v5e-safe)
        p = p * pl.reciprocal(jnp.sum(p, axis=-1, keepdims=True), approx=True)
        ctx = jnp.dot(p.astype(jnp.bfloat16), v.astype(jnp.bfloat16),
                      preferred_element_type=jnp.float32)           # (S, dh)
        return acc + jnp.dot(ctx.astype(jnp.bfloat16), wo_ref[h],
                             preferred_element_type=jnp.float32)    # (S, H)

    attn = lax.fori_loop(0, n_heads, head_body, jnp.zeros((S, H), jnp.float32))
    x1 = _layer_norm(attn + bo_ref[...] + xf, ln1g_ref[...], ln1b_ref[...], eps)

    # --- FFN, tiled over the intermediate dim ---------------------------------
    # The (S, I) f32 GELU intermediate never materializes: each ffn_chunk-wide
    # slice of W1/W2 is applied and accumulated into an (S, H) f32 accumulator.
    x1b = x1.astype(jnp.bfloat16)
    inter = w1_ref.shape[1]
    n_chunks = inter // ffn_chunk

    def ffn_body(c, acc):
        off = pl.multiple_of(c * ffn_chunk, ffn_chunk)
        hc = (jnp.dot(x1b, w1_ref[:, pl.ds(off, ffn_chunk)],
                      preferred_element_type=jnp.float32)
              + b1_ref[:, pl.ds(off, ffn_chunk)])
        hc = _gelu_tanh(hc)                          # f32 transcendentals (v5e-safe)
        return acc + jnp.dot(hc.astype(jnp.bfloat16), w2_ref[pl.ds(off, ffn_chunk), :],
                             preferred_element_type=jnp.float32)

    h2 = lax.fori_loop(0, n_chunks, ffn_body, jnp.zeros((S, H), jnp.float32))
    x2 = _layer_norm(h2 + b2_ref[...] + x1, ln2g_ref[...], ln2b_ref[...], eps)
    return x2


def _encoder_layer_kernel(x_ref, mask_ref,
                          wq, bq, wk, bk, wv, bv, wo, bo, ln1g, ln1b,
                          w1, b1, w2, b2, ln2g, ln2b, o_ref,
                          *, n_heads, head_dim, ffn_chunk, eps):
    x2 = _layer_core(x_ref, mask_ref, wq, bq, wk, bk, wv, bv, wo, bo,
                     ln1g, ln1b, w1, b1, w2, b2, ln2g, ln2b,
                     n_heads=n_heads, head_dim=head_dim, ffn_chunk=ffn_chunk, eps=eps)
    o_ref[0] = x2.astype(o_ref.dtype)                # bf16 inter-layer activations


def _encoder_layer_head_kernel(x_ref, mask_ref,
                               wq, bq, wk, bk, wv, bv, wo, bo, ln1g, ln1b,
                               w1, b1, w2, b2, ln2g, ln2b,
                               pw, pb, cw, cb, o_ref,
                               *, n_heads, head_dim, ffn_chunk, eps):
    """Last encoder layer fused with BERT pooler (tanh on [CLS]) and the classifier
    head Dropout(identity) -> Linear -> Tanh.  Output is only (1, 1, n_classes)."""
    x2 = _layer_core(x_ref, mask_ref, wq, bq, wk, bk, wv, bv, wo, bo,
                     ln1g, ln1b, w1, b1, w2, b2, ln2g, ln2b,
                     n_heads=n_heads, head_dim=head_dim, ffn_chunk=ffn_chunk, eps=eps)
    cls = x2[0:1, :].astype(jnp.bfloat16)            # [CLS] row
    pooled = jnp.tanh(jnp.dot(cls, pw[...], preferred_element_type=jnp.float32) + pb[...])
    logits = jnp.dot(pooled.astype(jnp.bfloat16), cw[...],
                     preferred_element_type=jnp.float32) + cb[...]
    o_ref[0] = jnp.tanh(logits).astype(o_ref.dtype)


# ----------------------------- pallas_call wrappers ---------------------------

def _resident_spec(arr):
    """Whole-array input with a constant index map: DMA'd to VMEM once, reused for
    every batch grid step, SINGLE-buffered (double-buffering a constant block only
    doubles its VMEM footprint)."""
    zeros = (0,) * arr.ndim
    return pl.BlockSpec(arr.shape, lambda b, _z=zeros: _z,
                        pipeline_mode=pl.Buffered(1))


def _layer_vmem_limit(S, H, inter, chunk, resident_arrays):
    wbytes = sum(int(a.size) * a.dtype.itemsize for a in resident_arrays)  # 1-buffered
    act = 2 * 2 * (S * H * 2) + 2 * (S * 4)          # double-buffered bf16 act blocks + mask
    live = 4 * (S * S + 8 * S * H + 2 * S * chunk)   # f32 scores/residuals/FFN chunk
    est = int(1.3 * (wbytes + act + live)) + (4 << 20)
    return max(32 << 20, min(est, 128 << 20))


def _layer_cost_estimate(B, S, H, inter, n_heads):
    dh = H // n_heads
    flops = (2 * B * S * H * 3 * H             # Q/K/V projections
             + 4 * B * n_heads * S * S * dh    # scores + p@v
             + 2 * B * S * H * H               # output projection
             + 4 * B * S * H * inter)          # FFN up + down
    transcendentals = B * n_heads * S * S + B * S * inter + B * n_heads * S + 4 * B * S
    bytes_accessed = (2 * B * S * H * 2 + B * S * 4            # bf16 acts in/out + mask
                      + (4 * H * H + 2 * H * inter) * 2        # bf16 weights
                      + (3 * H + H + inter + H + 4 * H) * 4)   # biases + LN params
    return pl.CostEstimate(flops=int(flops), transcendentals=int(transcendentals),
                           bytes_accessed=int(bytes_accessed))


def embedding_layernorm(x, gamma, beta, *, eps=1e-12, block_rows=512):
    """Row-tiled LayerNorm over (B*S, H); emits bf16 activations."""
    M, H = x.shape
    tm = min(block_rows, M)
    return pl.pallas_call(
        functools.partial(_embedding_ln_kernel, eps=eps),
        out_shape=jax.ShapeDtypeStruct((M, H), jnp.bfloat16),
        grid=(pl.cdiv(M, tm),),
        in_specs=[pl.BlockSpec((tm, H), lambda i: (i, 0)),
                  pl.BlockSpec((1, H), lambda i: (0, 0), pipeline_mode=pl.Buffered(1)),
                  pl.BlockSpec((1, H), lambda i: (0, 0), pipeline_mode=pl.Buffered(1))],
        out_specs=pl.BlockSpec((tm, H), lambda i: (i, 0)),
        compiler_params=pltpu.CompilerParams(
            dimension_semantics=("parallel",), vmem_limit_bytes=32 << 20),
    )(x, gamma, beta)


def encoder_layer(x, bias, lp, *, n_heads, ffn_chunk=512, head_params=None, eps=1e-12):
    """x: (B, S, H) bf16; bias: (B, 1, S) additive mask; lp: layer params.
    If head_params is given, the pooler+classifier are fused in and the output is
    (B, 1, n_classes) logits instead of (B, S, H) activations."""
    B, S, H = x.shape
    dh = H // n_heads
    inter = lp["w1"].shape[1]
    chunk = min(ffn_chunk, inter)
    assert inter % chunk == 0, "intermediate size must be a multiple of ffn_chunk"

    weights = [lp["wq"], lp["bq"], lp["wk"], lp["bk"], lp["wv"], lp["bv"],
               lp["wo"], lp["bo"], lp["ln1_g"], lp["ln1_b"],
               lp["w1"], lp["b1"], lp["w2"], lp["b2"], lp["ln2_g"], lp["ln2_b"]]
    in_specs = [pl.BlockSpec((1, S, H), lambda b: (b, 0, 0)),   # activations (bf16)
                pl.BlockSpec((1, 1, S), lambda b: (b, 0, 0))]   # attention mask bias
    in_specs += [_resident_spec(a) for a in weights]
    args = [x, bias] + list(weights)
    resident = list(weights)

    common = dict(n_heads=n_heads, head_dim=dh, ffn_chunk=chunk, eps=eps)
    if head_params is None:
        kernel = functools.partial(_encoder_layer_kernel, **common)
        out_shape = jax.ShapeDtypeStruct((B, S, H), jnp.bfloat16)
        out_specs = pl.BlockSpec((1, S, H), lambda b: (b, 0, 0))
    else:
        kernel = functools.partial(_encoder_layer_head_kernel, **common)
        pw, pb, cw, cb = head_params
        in_specs += [_resident_spec(a) for a in head_params]
        args += list(head_params)
        resident += list(head_params)
        C = cw.shape[1]
        out_shape = jax.ShapeDtypeStruct((B, 1, C), jnp.float32)
        out_specs = pl.BlockSpec((1, 1, C), lambda b: (b, 0, 0))

    return pl.pallas_call(
        kernel,
        out_shape=out_shape,
        grid=(B,),   # "parallel": on v7x each TensorCore takes a batch element (keep B even)
        in_specs=in_specs,
        out_specs=out_specs,
        compiler_params=pltpu.CompilerParams(
            dimension_semantics=("parallel",),
            vmem_limit_bytes=_layer_vmem_limit(S, H, inter, chunk, resident)),
        cost_estimate=_layer_cost_estimate(B, S, H, inter, n_heads),
    )(*args)


# ----------------------------- model (glue) -----------------------------------

def protein_classifier_forward(params, input_ids, attention_mask, *, cfg):
    B, S = input_ids.shape
    H = cfg["hidden"]

    # Embedding lookups are gather glue (plain JAX / XLA); LayerNorm runs in Pallas.
    x = (jnp.take(params["word_emb"], input_ids, axis=0)
         + params["pos_emb"][None, :S, :]
         + params["type_emb"][0][None, None, :])
    x = embedding_layernorm(x.reshape(B * S, H),
                            params["emb_ln_g"], params["emb_ln_b"]).reshape(B, S, H)

    # Additive attention mask: 0 for valid tokens, -1e9 for padding. Computed once.
    bias = (1.0 - attention_mask.astype(jnp.float32))[:, None, :] * -1e9     # (B, 1, S)

    head = (params["pool_w"], params["pool_b"], params["cls_w"], params["cls_b"])
    for lp in params["layers"][:-1]:
        x = encoder_layer(x, bias, lp, n_heads=cfg["n_heads"], ffn_chunk=cfg["ffn_chunk"])
    # Last layer fuses pooler + classifier; no (B,S,H) writeback for it.
    logits = encoder_layer(x, bias, params["layers"][-1], n_heads=cfg["n_heads"],
                           ffn_chunk=cfg["ffn_chunk"], head_params=head)
    return logits.reshape(B, cfg["n_classes"])


def init_params(key, cfg):
    H, I, V, P, C, NH = (cfg["hidden"], cfg["intermediate"], cfg["vocab"],
                         cfg["max_pos"], cfg["n_classes"], cfg["n_heads"])
    dh = H // NH
    keys = iter(jax.random.split(key, 16 + 16 * cfg["n_layers"]))

    def nrm(shape, dtype=jnp.float32, scale=0.02):
        return (scale * jax.random.normal(next(keys), shape)).astype(dtype)

    zeros = lambda *s: jnp.zeros(s, jnp.float32)
    ones = lambda *s: jnp.ones(s, jnp.float32)

    params = {
        "word_emb": nrm((V, H)),
        "pos_emb": nrm((P, H)),
        "type_emb": nrm((2, H)),
        "emb_ln_g": ones(1, H), "emb_ln_b": zeros(1, H),
        "layers": [],
        # pooler dense: bf16 weight for MXU, pre-shaped f32 bias
        "pool_w": nrm((H, H), jnp.bfloat16), "pool_b": zeros(1, H),
    }
    for _ in range(cfg["n_layers"]):
        params["layers"].append({
            # head-major Q/K/V/O weights -> the kernel never slices the lane dim per head
            "wq": nrm((NH, H, dh), jnp.bfloat16), "bq": zeros(NH, 1, dh),
            "wk": nrm((NH, H, dh), jnp.bfloat16), "bk": zeros(NH, 1, dh),
            "wv": nrm((NH, H, dh), jnp.bfloat16), "bv": zeros(NH, 1, dh),
            "wo": nrm((NH, dh, H), jnp.bfloat16), "bo": zeros(1, H),
            "ln1_g": ones(1, H), "ln1_b": zeros(1, H),
            "w1": nrm((H, I), jnp.bfloat16), "b1": zeros(1, I),
            "w2": nrm((I, H), jnp.bfloat16), "b2": zeros(1, H),
            "ln2_g": ones(1, H), "ln2_b": zeros(1, H),
        })
    # classifier head: xavier_uniform_ weight, zero bias (matches init_weights())
    bound = math.sqrt(6.0 / (H + C))
    params["cls_w"] = jax.random.uniform(next(keys), (H, C), jnp.float32,
                                         -bound, bound).astype(jnp.bfloat16)
    params["cls_b"] = zeros(1, C)
    return params


if __name__ == "__main__":
    # Small shapes; intermediate=256 with ffn_chunk=128 exercises the FFN I-tiling loop.
    cfg = dict(vocab=30, hidden=64, n_heads=2, n_layers=2, intermediate=256,
               max_pos=40, n_classes=4, ffn_chunk=128)
    B, S = 2, 8

    key = jax.random.PRNGKey(0)
    k_params, k_ids = jax.random.split(key)
    params = init_params(k_params, cfg)

    input_ids = jax.random.randint(k_ids, (B, S), 0, cfg["vocab"], dtype=jnp.int32)
    attention_mask = jnp.concatenate(
        [jnp.ones((B, 6), jnp.int32), jnp.zeros((B, 2), jnp.int32)], axis=1)

    fwd = jax.jit(functools.partial(protein_classifier_forward, cfg=cfg))
    out = jax.block_until_ready(fwd(params, input_ids, attention_mask))

    assert out.shape == (B, cfg["n_classes"])
    assert bool(jnp.all(jnp.isfinite(out)))
    assert bool(jnp.all(jnp.abs(out) <= 1.0))   # Tanh output range
    print("KERNEL_OK")
</pallas_src>

<mosaic_0001>
module attributes {stable_mosaic.version = 11 : i64} {
  func.func @_embedding_ln_kernel(%arg0: i32, %arg1: memref<16x64xf32, #tpu.memory_space<vmem>>, %arg2: memref<1x64xf32, #tpu.memory_space<vmem>>, %arg3: memref<1x64xf32, #tpu.memory_space<vmem>>, %arg4: memref<16x64xbf16, #tpu.memory_space<vmem>>) attributes {dimension_semantics = [#tpu.dimension_semantics<parallel>], iteration_bounds = array<i64: 1>, scalar_prefetch = 0 : i64, scratch_operands = 0 : i64, tpu.core_type = #tpu.core_type<tc>, window_params = [{transform_indices = @transform_0, window_bounds = array<i64: 16, 64>}, {pipeline_mode = #tpu.pipeline_mode<synchronous>, transform_indices = @transform_1, window_bounds = array<i64: 1, 64>}, {pipeline_mode = #tpu.pipeline_mode<synchronous>, transform_indices = @transform_2, window_bounds = array<i64: 1, 64>}, {transform_indices = @transform_3, window_bounds = array<i64: 16, 64>}]} {
    %c0 = arith.constant 0 : index
    %c0_0 = arith.constant 0 : index
    %0 = vector.load %arg1[%c0, %c0_0] : memref<16x64xf32, #tpu.memory_space<vmem>>, vector<16x64xf32>
    %c0_1 = arith.constant 0 : index
    %c0_2 = arith.constant 0 : index
    %1 = vector.load %arg2[%c0_1, %c0_2] : memref<1x64xf32, #tpu.memory_space<vmem>>, vector<1x64xf32>
    %c0_3 = arith.constant 0 : index
    %c0_4 = arith.constant 0 : index
    %2 = vector.load %arg3[%c0_3, %c0_4] : memref<1x64xf32, #tpu.memory_space<vmem>>, vector<1x64xf32>
    %cst = arith.constant dense<0.000000e+00> : vector<16xf32>
    %3 = vector.multi_reduction <add>, %0, %cst [1] : vector<16x64xf32> to vector<16xf32>
    %4 = vector.shape_cast %3 : vector<16xf32> to vector<16x1xf32>
    %cst_5 = arith.constant 6.400000e+01 : f32
    %5 = vector.broadcast %cst_5 : f32 to vector<16x1xf32>
    %6 = arith.divf %4, %5 : vector<16x1xf32>
    %7 = vector.broadcast %6 : vector<16x1xf32> to vector<16x64xf32>
    %8 = arith.subf %0, %7 : vector<16x64xf32>
    %9 = arith.mulf %8, %8 : vector<16x64xf32>
    %cst_6 = arith.constant dense<0.000000e+00> : vector<16xf32>
    %10 = vector.multi_reduction <add>, %9, %cst_6 [1] : vector<16x64xf32> to vector<16xf32>
    %11 = vector.shape_cast %10 : vector<16xf32> to vector<16x1xf32>
    %cst_7 = arith.constant 6.400000e+01 : f32
    %12 = vector.broadcast %cst_7 : f32 to vector<16x1xf32>
    %13 = arith.divf %11, %12 : vector<16x1xf32>
    %14 = vector.broadcast %6 : vector<16x1xf32> to vector<16x64xf32>
    %15 = arith.subf %0, %14 : vector<16x64xf32>
    %cst_8 = arith.constant 9.99999996E-13 : f32
    %16 = vector.broadcast %cst_8 : f32 to vector<16x1xf32>
    %17 = arith.addf %13, %16 : vector<16x1xf32>
    %18 = math.rsqrt %17 : vector<16x1xf32>
    %19 = vector.broadcast %18 : vector<16x1xf32> to vector<16x64xf32>
    %20 = arith.mulf %15, %19 : vector<16x64xf32>
    %21 = vector.broadcast %1 : vector<1x64xf32> to vector<16x64xf32>
    %22 = arith.mulf %20, %21 : vector<16x64xf32>
    %23 = vector.broadcast %2 : vector<1x64xf32> to vector<16x64xf32>
    %24 = arith.addf %22, %23 : vector<16x64xf32>
    %25 = arith.truncf %24 : vector<16x64xf32> to vector<16x64xbf16>
    %c0_9 = arith.constant 0 : index
    %c0_10 = arith.constant 0 : index
    %26 = vector.load %arg4[%c0_9, %c0_10] : memref<16x64xbf16, #tpu.memory_space<vmem>>, vector<16x64xbf16>
    tpu.vector_store %arg4[%c0_9, %c0_10], %25 {strides = array<i32>} : memref<16x64xbf16, #tpu.memory_space<vmem>>, vector<16x64xbf16>,
    return
  }
  func.func @transform_0(%arg0: i32) -> (i32, i32) {
    %c0_i32 = arith.constant 0 : i32
    %c0_i32_0 = arith.constant 0 : i32
    return %arg0, %c0_i32 : i32, i32
  }
  func.func @transform_1(%arg0: i32) -> (i32, i32) {
    %c0_i32 = arith.constant 0 : i32
    %c0_i32_0 = arith.constant 0 : i32
    %c0_i32_1 = arith.constant 0 : i32
    return %c0_i32, %c0_i32_0 : i32, i32
  }
  func.func @transform_2(%arg0: i32) -> (i32, i32) {
    %c0_i32 = arith.constant 0 : i32
    %c0_i32_0 = arith.constant 0 : i32
    %c0_i32_1 = arith.constant 0 : i32
    return %c0_i32, %c0_i32_0 : i32, i32
  }
  func.func @transform_3(%arg0: i32) -> (i32, i32) {
    %c0_i32 = arith.constant 0 : i32
    %c0_i32_0 = arith.constant 0 : i32
    return %arg0, %c0_i32 : i32, i32
  }
}

module attributes {stable_mosaic.version = 11 : i64} {
  func.func @_encoder_layer_head_kernel(%arg0: i32, %arg1: memref<1x8x64xbf16, #tpu.memory_space<vmem>>, %arg2: memref<1x1x8xf32, #tpu.memory_space<vmem>>, %arg3: memref<2x64x32xbf16, #tpu.memory_space<vmem>>, %arg4: memref<2x1x32xf32, #tpu.memory_space<vmem>>, %arg5: memref<2x64x32xbf16, #tpu.memory_space<vmem>>, %arg6: memref<2x1x32xf32, #tpu.memory_space<vmem>>, %arg7: memref<2x64x32xbf16, #tpu.memory_space<vmem>>, %arg8: memref<2x1x32xf32, #tpu.memory_space<vmem>>, %arg9: memref<2x32x64xbf16, #tpu.memory_space<vmem>>, %arg10: memref<1x64xf32, #tpu.memory_space<vmem>>, %arg11: memref<1x64xf32, #tpu.memory_space<vmem>>, %arg12: memref<1x64xf32, #tpu.memory_space<vmem>>, %arg13: memref<64x256xbf16, #tpu.memory_space<vmem>>, %arg14: memref<1x256xf32, #tpu.memory_space<vmem>>, %arg15: memref<256x64xbf16, #tpu.memory_space<vmem>>, %arg16: memref<1x64xf32, #tpu.memory_space<vmem>>, %arg17: memref<1x64xf32, #tpu.memory_space<vmem>>, %arg18: memref<1x64xf32, #tpu.memory_space<vmem>>, %arg19: memref<64x64xbf16, #tpu.memory_space<vmem>>, %arg20: memref<1x64xf32, #tpu.memory_space<vmem>>, %arg21: memref<64x4xbf16, #tpu.memory_space<vmem>>, %arg22: memref<1x4xf32, #tpu.memory_space<vmem>>, %arg23: memref<1x1x4xf32, #tpu.memory_space<vmem>>) attributes {dimension_semantics = [#tpu.dimension_semantics<parallel>], iteration_bounds = array<i64: 2>, scalar_prefetch = 0 : i64, scratch_operands = 0 : i64, tpu.core_type = #tpu.core_type<tc>, window_params = [{transform_indices = @transform_0, window_bounds = array<i64: 1, 8, 64>}, {transform_indices = @transform_1, window_bounds = array<i64: 1, 1, 8>}, {pipeline_mode = #tpu.pipeline_mode<synchronous>, transform_indices = @transform_2, window_bounds = array<i64: 2, 64, 32>}, {pipeline_mode = #tpu.pipeline_mode<synchronous>, transform_indices = @transform_3, window_bounds = array<i64: 2, 1, 32>}, {pipeline_mode = #tpu.pipeline_mode<synchronous>, transform_indices = @transform_4, window_bounds = array<i64: 2, 64, 32>}, {pipeline_mode = #tpu.pipeline_mode<synchronous>, transform_indices = @transform_5, window_bounds = array<i64: 2, 1, 32>}, {pipeline_mode = #tpu.pipeline_mode<synchronous>, transform_indices = @transform_6, window_bounds = array<i64: 2, 64, 32>}, {pipeline_mode = #tpu.pipeline_mode<synchronous>, transform_indices = @transform_7, window_bounds = array<i64: 2, 1, 32>}, {pipeline_mode = #tpu.pipeline_mode<synchronous>, transform_indices = @transform_8, window_bounds = array<i64: 2, 32, 64>}, {pipeline_mode = #tpu.pipeline_mode<synchronous>, transform_indices = @transform_9, window_bounds = array<i64: 1, 64>}, {pipeline_mode = #tpu.pipeline_mode<synchronous>, transform_indices = @transform_10, window_bounds = array<i64: 1, 64>}, {pipeline_mode = #tpu.pipeline_mode<synchronous>, transform_indices = @transform_11, window_bounds = array<i64: 1, 64>}, {pipeline_mode = #tpu.pipeline_mode<synchronous>, transform_indices = @transform_12, window_bounds = array<i64: 64, 256>}, {pipeline_mode = #tpu.pipeline_mode<synchronous>, transform_indices = @transform_13, window_bounds = array<i64: 1, 256>}, {pipeline_mode = #tpu.pipeline_mode<synchronous>, transform_indices = @transform_14, window_bounds = array<i64: 256, 64>}, {pipeline_mode = #tpu.pipeline_mode<synchronous>, transform_indices = @transform_15, window_bounds = array<i64: 1, 64>}, {pipeline_mode = #tpu.pipeline_mode<synchronous>, transform_indices = @transform_16, window_bounds = array<i64: 1, 64>}, {pipeline_mode = #tpu.pipeline_mode<synchronous>, transform_indices = @transform_17, window_bounds = array<i64: 1, 64>}, {pipeline_mode = #tpu.pipeline_mode<synchronous>, transform_indices = @transform_18, window_bounds = array<i64: 64, 64>}, {pipeline_mode = #tpu.pipeline_mode<synchronous>, transform_indices = @transform_19, window_bounds = array<i64: 1, 64>}, {pipeline_mode = #tpu.pipeline_mode<synchronous>, transform_indices = @transform_20, window_bounds = array<i64: 64, 4>}, {pipeline_mode = #tpu.pipeline_mode<synchronous>, transform_indices = @transform_21, window_bounds = array<i64: 1, 4>}, {transform_indices = @transform_22, window_bounds = array<i64: 1, 1, 4>}]} {
    %c0 = arith.constant 0 : index
    %c0_0 = arith.constant 0 : index
    %c0_1 = arith.constant 0 : index
    %0 = vector.load %arg1[%c0, %c0_0, %c0_1] : memref<1x8x64xbf16, #tpu.memory_space<vmem>>, vector<1x8x64xbf16>
    %1 = vector.shape_cast %0 : vector<1x8x64xbf16> to vector<8x64xbf16>
    %2 = arith.extf %1 : vector<8x64xbf16> to vector<8x64xf32>
    %c0_2 = arith.constant 0 : index
    %c0_3 = arith.constant 0 : index
    %c0_4 = arith.constant 0 : index
    %3 = vector.load %arg2[%c0_2, %c0_3, %c0_4] : memref<1x1x8xf32, #tpu.memory_space<vmem>>, vector<1x1x8xf32>
    %4 = vector.shape_cast %3 : vector<1x1x8xf32> to vector<1x8xf32>
    %5 = vector.shape_cast %4 : vector<1x8xf32> to vector<1x8xf32>
    %6 = vector.broadcast %5 : vector<1x8xf32> to vector<8x8xf32>
    %cst = arith.constant 0.000000e+00 : f32
    %7 = vector.broadcast %cst : f32 to vector<8x64xf32>
    %c0_i32 = arith.constant 0 : i32
    %c2_i32 = arith.constant 2 : i32
    %8 = arith.addi %c0_i32, %c2_i32 : i32
    %c1_i32 = arith.constant 1 : i32
    %9 = scf.for %arg24 = %c0_i32 to %8 step %c1_i32 iter_args(%arg25 = %7) -> (vector<8x64xf32>)  : i32 {
      %86 = arith.index_cast %arg24 : i32 to index
      %c0_46 = arith.constant 0 : index
      %c0_47 = arith.constant 0 : index
      %87 = vector.load %arg3[%86, %c0_46, %c0_47] : memref<2x64x32xbf16, #tpu.memory_space<vmem>>, vector<1x64x32xbf16>
      %88 = vector.shape_cast %87 : vector<1x64x32xbf16> to vector<64x32xbf16>
      %cst_48 = arith.constant dense<0.000000e+00> : vector<8x32xf32>
      %89 = tpu.matmul %1, %88, %cst_48 {dimension_numbers = #tpu.dot_dimension_numbers<[1], [0], [0], [1], [0, 0, 1, 1], [], []>} : vector<8x64xbf16>, vector<64x32xbf16>, vector<8x32xf32> -> vector<8x32xf32>
      %90 = arith.index_cast %arg24 : i32 to index
      %c0_49 = arith.constant 0 : index
      %c0_50 = arith.constant 0 : index
      %91 = vector.load %arg4[%90, %c0_49, %c0_50] : memref<2x1x32xf32, #tpu.memory_space<vmem>>, vector<1x1x32xf32>
      %92 = vector.shape_cast %91 : vector<1x1x32xf32> to vector<1x32xf32>
      %93 = vector.broadcast %92 : vector<1x32xf32> to vector<8x32xf32>
      %94 = arith.addf %89, %93 : vector<8x32xf32>
      %95 = arith.index_cast %arg24 : i32 to index
      %c0_51 = arith.constant 0 : index
      %c0_52 = arith.constant 0 : index
      %96 = vector.load %arg5[%95, %c0_51, %c0_52] : memref<2x64x32xbf16, #tpu.memory_space<vmem>>, vector<1x64x32xbf16>
      %97 = vector.shape_cast %96 : vector<1x64x32xbf16> to vector<64x32xbf16>
      %cst_53 = arith.constant dense<0.000000e+00> : vector<8x32xf32>
      %98 = tpu.matmul %1, %97, %cst_53 {dimension_numbers = #tpu.dot_dimension_numbers<[1], [0], [0], [1], [0, 0, 1, 1], [], []>} : vector<8x64xbf16>, vector<64x32xbf16>, vector<8x32xf32> -> vector<8x32xf32>
      %99 = arith.index_cast %arg24 : i32 to index
      %c0_54 = arith.constant 0 : index
      %c0_55 = arith.constant 0 : index
      %100 = vector.load %arg6[%99, %c0_54, %c0_55] : memref<2x1x32xf32, #tpu.memory_space<vmem>>, vector<1x1x32xf32>
      %101 = vector.shape_cast %100 : vector<1x1x32xf32> to vector<1x32xf32>
      %102 = vector.broadcast %101 : vector<1x32xf32> to vector<8x32xf32>
      %103 = arith.addf %98, %102 : vector<8x32xf32>
      %104 = arith.index_cast %arg24 : i32 to index
      %c0_56 = arith.constant 0 : index
      %c0_57 = arith.constant 0 : index
      %105 = vector.load %arg7[%104, %c0_56, %c0_57] : memref<2x64x32xbf16, #tpu.memory_space<vmem>>, vector<1x64x32xbf16>
      %106 = vector.shape_cast %105 : vector<1x64x32xbf16> to vector<64x32xbf16>
      %cst_58 = arith.constant dense<0.000000e+00> : vector<8x32xf32>
      %107 = tpu.matmul %1, %106, %cst_58 {dimension_numbers = #tpu.dot_dimension_numbers<[1], [0], [0], [1], [0, 0, 1, 1], [], []>} : vector<8x64xbf16>, vector<64x32xbf16>, vector<8x32xf32> -> vector<8x32xf32>
      %108 = arith.index_cast %arg24 : i32 to index
      %c0_59 = arith.constant 0 : index
      %c0_60 = arith.constant 0 : index
      %109 = vector.load %arg8[%108, %c0_59, %c0_60] : memref<2x1x32xf32, #tpu.memory_space<vmem>>, vector<1x1x32xf32>
      %110 = vector.shape_cast %109 : vector<1x1x32xf32> to vector<1x32xf32>
      %111 = vector.broadcast %110 : vector<1x32xf32> to vector<8x32xf32>
      %112 = arith.addf %107, %111 : vector<8x32xf32>
      %113 = arith.truncf %94 : vector<8x32xf32> to vector<8x32xbf16>
      %114 = arith.truncf %103 : vector<8x32xf32> to vector<8x32xbf16>
      %cst_61 = arith.constant dense<0.000000e+00> : vector<8x8xf32>
      %115 = tpu.matmul %113, %114, %cst_61 {dimension_numbers = #tpu.dot_dimension_numbers<[1], [1], [0], [0], [0, 0, 1, 0], [], []>} : vector<8x32xbf16>, vector<8x32xbf16>, vector<8x8xf32> -> vector<8x8xf32>
      %cst_62 = arith.constant 0.176776692 : f32
      %116 = vector.broadcast %cst_62 : f32 to vector<8x8xf32>
      %117 = arith.mulf %115, %116 : vector<8x8xf32>
      %118 = arith.addf %117, %6 : vector<8x8xf32>
      %cst_63 = arith.constant dense<0xFF800000> : vector<8xf32>
      %119 = vector.multi_reduction <maximumf>, %118, %cst_63 [1] : vector<8x8xf32> to vector<8xf32>
      %120 = vector.shape_cast %119 : vector<8xf32> to vector<8x1xf32>
      %121 = vector.broadcast %120 : vector<8x1xf32> to vector<8x8xf32>
      %122 = arith.subf %118, %121 : vector<8x8xf32>
      %123 = math.exp %122 : vector<8x8xf32>
      %cst_64 = arith.constant dense<0.000000e+00> : vector<8xf32>
      %124 = vector.multi_reduction <add>, %123, %cst_64 [1] : vector<8x8xf32> to vector<8xf32>
      %125 = vector.shape_cast %124 : vector<8xf32> to vector<8x1xf32>
      %126 = tpu.reciprocal %125 {approx = true} : vector<8x1xf32> -> vector<8x1xf32>
      %127 = vector.broadcast %126 : vector<8x1xf32> to vector<8x8xf32>
      %128 = arith.mulf %123, %127 : vector<8x8xf32>
      %129 = arith.truncf %128 : vector<8x8xf32> to vector<8x8xbf16>
      %130 = arith.truncf %112 : vector<8x32xf32> to vector<8x32xbf16>
      %cst_65 = arith.constant dense<0.000000e+00> : vector<8x32xf32>
      %131 = tpu.matmul %129, %130, %cst_65 {dimension_numbers = #tpu.dot_dimension_numbers<[1], [0], [0], [1], [0, 0, 1, 1], [], []>} : vector<8x8xbf16>, vector<8x32xbf16>, vector<8x32xf32> -> vector<8x32xf32>
      %132 = arith.truncf %131 : vector<8x32xf32> to vector<8x32xbf16>
      %133 = arith.index_cast %arg24 : i32 to index
      %c0_66 = arith.constant 0 : index
      %c0_67 = arith.constant 0 : index
      %134 = vector.load %arg9[%133, %c0_66, %c0_67] : memref<2x32x64xbf16, #tpu.memory_space<vmem>>, vector<1x32x64xbf16>
      %135 = vector.shape_cast %134 : vector<1x32x64xbf16> to vector<32x64xbf16>
      %cst_68 = arith.constant dense<0.000000e+00> : vector<8x64xf32>
      %136 = tpu.matmul %132, %135, %cst_68 {dimension_numbers = #tpu.dot_dimension_numbers<[1], [0], [0], [1], [0, 0, 1, 1], [], []>} : vector<8x32xbf16>, vector<32x64xbf16>, vector<8x64xf32> -> vector<8x64xf32>
      %137 = arith.addf %arg25, %136 : vector<8x64xf32>
      scf.yield %137 : vector<8x64xf32>
    }
    %c2_i32_5 = arith.constant 2 : i32
    %c0_6 = arith.constant 0 : index
    %c0_7 = arith.constant 0 : index
    %10 = vector.load %arg10[%c0_6, %c0_7] : memref<1x64xf32, #tpu.memory_space<vmem>>, vector<1x64xf32>
    %11 = vector.broadcast %10 : vector<1x64xf32> to vector<8x64xf32>
    %12 = arith.addf %9, %11 : vector<8x64xf32>
    %13 = arith.addf %12, %2 : vector<8x64xf32>
    %c0_8 = arith.constant 0 : index
    %c0_9 = arith.constant 0 : index
    %14 = vector.load %arg11[%c0_8, %c0_9] : memref<1x64xf32, #tpu.memory_space<vmem>>, vector<1x64xf32>
    %c0_10 = arith.constant 0 : index
    %c0_11 = arith.constant 0 : index
    %15 = vector.load %arg12[%c0_10, %c0_11] : memref<1x64xf32, #tpu.memory_space<vmem>>, vector<1x64xf32>
    %cst_12 = arith.constant dense<0.000000e+00> : vector<8xf32>
    %16 = vector.multi_reduction <add>, %13, %cst_12 [1] : vector<8x64xf32> to vector<8xf32>
    %17 = vector.shape_cast %16 : vector<8xf32> to vector<8x1xf32>
    %cst_13 = arith.constant 6.400000e+01 : f32
    %18 = vector.broadcast %cst_13 : f32 to vector<8x1xf32>
    %19 = arith.divf %17, %18 : vector<8x1xf32>
    %20 = vector.broadcast %19 : vector<8x1xf32> to vector<8x64xf32>
    %21 = arith.subf %13, %20 : vector<8x64xf32>
    %22 = arith.mulf %21, %21 : vector<8x64xf32>
    %cst_14 = arith.constant dense<0.000000e+00> : vector<8xf32>
    %23 = vector.multi_reduction <add>, %22, %cst_14 [1] : vector<8x64xf32> to vector<8xf32>
    %24 = vector.shape_cast %23 : vector<8xf32> to vector<8x1xf32>
    %cst_15 = arith.constant 6.400000e+01 : f32
    %25 = vector.broadcast %cst_15 : f32 to vector<8x1xf32>
    %26 = arith.divf %24, %25 : vector<8x1xf32>
    %27 = vector.broadcast %19 : vector<8x1xf32> to vector<8x64xf32>
    %28 = arith.subf %13, %27 : vector<8x64xf32>
    %cst_16 = arith.constant 9.99999996E-13 : f32
    %29 = vector.broadcast %cst_16 : f32 to vector<8x1xf32>
    %30 = arith.addf %26, %29 : vector<8x1xf32>
    %31 = math.rsqrt %30 : vector<8x1xf32>
    %32 = vector.broadcast %31 : vector<8x1xf32> to vector<8x64xf32>
    %33 = arith.mulf %28, %32 : vector<8x64xf32>
    %34 = vector.broadcast %14 : vector<1x64xf32> to vector<8x64xf32>
    %35 = arith.mulf %33, %34 : vector<8x64xf32>
    %36 = vector.broadcast %15 : vector<1x64xf32> to vector<8x64xf32>
    %37 = arith.addf %35, %36 : vector<8x64xf32>
    %38 = arith.truncf %37 : vector<8x64xf32> to vector<8x64xbf16>
    %cst_17 = arith.constant 0.000000e+00 : f32
    %39 = vector.broadcast %cst_17 : f32 to vector<8x64xf32>
    %c0_i32_18 = arith.constant 0 : i32
    %c2_i32_19 = arith.constant 2 : i32
    %40 = arith.addi %c0_i32_18, %c2_i32_19 : i32
    %c1_i32_20 = arith.constant 1 : i32
    %41 = scf.for %arg24 = %c0_i32_18 to %40 step %c1_i32_20 iter_args(%arg25 = %39) -> (vector<8x64xf32>)  : i32 {
      %c128_i32 = arith.constant 128 : i32
      %86 = arith.muli %arg24, %c128_i32 : i32
      %87 = tpu.assume_multiple %86, 128 : i32
      %c0_46 = arith.constant 0 : index
      %88 = arith.index_cast %87 : i32 to index
      %89 = vector.load %arg13[%c0_46, %88] : memref<64x256xbf16, #tpu.memory_space<vmem>>, vector<64x128xbf16>
      %cst_47 = arith.constant dense<0.000000e+00> : vector<8x128xf32>
      %90 = tpu.matmul %38, %89, %cst_47 {dimension_numbers = #tpu.dot_dimension_numbers<[1], [0], [0], [1], [0, 0, 1, 1], [], []>} : vector<8x64xbf16>, vector<64x128xbf16>, vector<8x128xf32> -> vector<8x128xf32>
      %c0_48 = arith.constant 0 : index
      %91 = arith.index_cast %87 : i32 to index
      %92 = vector.load %arg14[%c0_48, %91] : memref<1x256xf32, #tpu.memory_space<vmem>>, vector<1x128xf32>
      %93 = vector.broadcast %92 : vector<1x128xf32> to vector<8x128xf32>
      %94 = arith.addf %90, %93 : vector<8x128xf32>
      %cst_49 = arith.constant 5.000000e-01 : f32
      %95 = vector.broadcast %cst_49 : f32 to vector<8x128xf32>
      %96 = arith.mulf %95, %94 : vector<8x128xf32>
      %cst_50 = arith.constant 4.471500e-02 : f32
      %97 = vector.broadcast %cst_50 : f32 to vector<8x128xf32>
      %98 = arith.mulf %97, %94 : vector<8x128xf32>
      %99 = arith.mulf %98, %94 : vector<8x128xf32>
      %100 = arith.mulf %99, %94 : vector<8x128xf32>
      %101 = arith.addf %94, %100 : vector<8x128xf32>
      %cst_51 = arith.constant 0.797884583 : f32
      %102 = vector.broadcast %cst_51 : f32 to vector<8x128xf32>
      %103 = arith.mulf %102, %101 : vector<8x128xf32>
      %104 = math.tanh %103 : vector<8x128xf32>
      %cst_52 = arith.constant 1.000000e+00 : f32
      %105 = vector.broadcast %cst_52 : f32 to vector<8x128xf32>
      %106 = arith.addf %105, %104 : vector<8x128xf32>
      %107 = arith.mulf %96, %106 : vector<8x128xf32>
      %108 = arith.truncf %107 : vector<8x128xf32> to vector<8x128xbf16>
      %109 = arith.index_cast %87 : i32 to index
      %c0_53 = arith.constant 0 : index
      %110 = vector.load %arg15[%109, %c0_53] : memref<256x64xbf16, #tpu.memory_space<vmem>>, vector<128x64xbf16>
      %cst_54 = arith.constant dense<0.000000e+00> : vector<8x64xf32>
      %111 = tpu.matmul %108, %110, %cst_54 {dimension_numbers = #tpu.dot_dimension_numbers<[1], [0], [0], [1], [0, 0, 1, 1], [], []>} : vector<8x128xbf16>, vector<128x64xbf16>, vector<8x64xf32> -> vector<8x64xf32>
      %112 = arith.addf %arg25, %111 : vector<8x64xf32>
      scf.yield %112 : vector<8x64xf32>
    }
    %c2_i32_21 = arith.constant 2 : i32
    %c0_22 = arith.constant 0 : index
    %c0_23 = arith.constant 0 : index
    %42 = vector.load %arg16[%c0_22, %c0_23] : memref<1x64xf32, #tpu.memory_space<vmem>>, vector<1x64xf32>
    %43 = vector.broadcast %42 : vector<1x64xf32> to vector<8x64xf32>
    %44 = arith.addf %41, %43 : vector<8x64xf32>
    %45 = arith.addf %44, %37 : vector<8x64xf32>
    %c0_24 = arith.constant 0 : index
    %c0_25 = arith.constant 0 : index
    %46 = vector.load %arg17[%c0_24, %c0_25] : memref<1x64xf32, #tpu.memory_space<vmem>>, vector<1x64xf32>
    %c0_26 = arith.constant 0 : index
    %c0_27 = arith.constant 0 : index
    %47 = vector.load %arg18[%c0_26, %c0_27] : memref<1x64xf32, #tpu.memory_space<vmem>>, vector<1x64xf32>
    %cst_28 = arith.constant dense<0.000000e+00> : vector<8xf32>
    %48 = vector.multi_reduction <add>, %45, %cst_28 [1] : vector<8x64xf32> to vector<8xf32>
    %49 = vector.shape_cast %48 : vector<8xf32> to vector<8x1xf32>
    %cst_29 = arith.constant 6.400000e+01 : f32
    %50 = vector.broadcast %cst_29 : f32 to vector<8x1xf32>
    %51 = arith.divf %49, %50 : vector<8x1xf32>
    %52 = vector.broadcast %51 : vector<8x1xf32> to vector<8x64xf32>
    %53 = arith.subf %45, %52 : vector<8x64xf32>
    %54 = arith.mulf %53, %53 : vector<8x64xf32>
    %cst_30 = arith.constant dense<0.000000e+00> : vector<8xf32>
    %55 = vector.multi_reduction <add>, %54, %cst_30 [1] : vector<8x64xf32> to vector<8xf32>
    %56 = vector.shape_cast %55 : vector<8xf32> to vector<8x1xf32>
    %cst_31 = arith.constant 6.400000e+01 : f32
    %57 = vector.broadcast %cst_31 : f32 to vector<8x1xf32>
    %58 = arith.divf %56, %57 : vector<8x1xf32>
    %59 = vector.broadcast %51 : vector<8x1xf32> to vector<8x64xf32>
    %60 = arith.subf %45, %59 : vector<8x64xf32>
    %cst_32 = arith.constant 9.99999996E-13 : f32
    %61 = vector.broadcast %cst_32 : f32 to vector<8x1xf32>
    %62 = arith.addf %58, %61 : vector<8x1xf32>
    %63 = math.rsqrt %62 : vector<8x1xf32>
    %64 = vector.broadcast %63 : vector<8x1xf32> to vector<8x64xf32>
    %65 = arith.mulf %60, %64 : vector<8x64xf32>
    %66 = vector.broadcast %46 : vector<1x64xf32> to vector<8x64xf32>
    %67 = arith.mulf %65, %66 : vector<8x64xf32>
    %68 = vector.broadcast %47 : vector<1x64xf32> to vector<8x64xf32>
    %69 = arith.addf %67, %68 : vector<8x64xf32>
    %70 = vector.extract_strided_slice %69 {offsets = [0, 0], sizes = [1, 64], strides = [1, 1]} : vector<8x64xf32> to vector<1x64xf32>
    %71 = arith.truncf %70 : vector<1x64xf32> to vector<1x64xbf16>
    %c0_33 = arith.constant 0 : index
    %c0_34 = arith.constant 0 : index
    %72 = vector.load %arg19[%c0_33, %c0_34] : memref<64x64xbf16, #tpu.memory_space<vmem>>, vector<64x64xbf16>
    %cst_35 = arith.constant dense<0.000000e+00> : vector<1x64xf32>
    %73 = tpu.matmul %71, %72, %cst_35 {dimension_numbers = #tpu.dot_dimension_numbers<[1], [0], [0], [1], [0, 0, 1, 1], [], []>} : vector<1x64xbf16>, vector<64x64xbf16>, vector<1x64xf32> -> vector<1x64xf32>
    %c0_36 = arith.constant 0 : index
    %c0_37 = arith.constant 0 : index
    %74 = vector.load %arg20[%c0_36, %c0_37] : memref<1x64xf32, #tpu.memory_space<vmem>>, vector<1x64xf32>
    %75 = arith.addf %73, %74 : vector<1x64xf32>
    %76 = math.tanh %75 : vector<1x64xf32>
    %77 = arith.truncf %76 : vector<1x64xf32> to vector<1x64xbf16>
    %c0_38 = arith.constant 0 : index
    %c0_39 = arith.constant 0 : index
    %78 = vector.load %arg21[%c0_38, %c0_39] : memref<64x4xbf16, #tpu.memory_space<vmem>>, vector<64x4xbf16>
    %cst_40 = arith.constant dense<0.000000e+00> : vector<1x4xf32>
    %79 = tpu.matmul %77, %78, %cst_40 {dimension_numbers = #tpu.dot_dimension_numbers<[1], [0], [0], [1], [0, 0, 1, 1], [], []>} : vector<1x64xbf16>, vector<64x4xbf16>, vector<1x4xf32> -> vector<1x4xf32>
    %c0_41 = arith.constant 0 : index
    %c0_42 = arith.constant 0 : index
    %80 = vector.load %arg22[%c0_41, %c0_42] : memref<1x4xf32, #tpu.memory_space<vmem>>, vector<1x4xf32>
    %81 = arith.addf %79, %80 : vector<1x4xf32>
    %82 = math.tanh %81 : vector<1x4xf32>
    %c0_43 = arith.constant 0 : index
    %c0_44 = arith.constant 0 : index
    %c0_45 = arith.constant 0 : index
    %83 = vector.load %arg23[%c0_43, %c0_44, %c0_45] : memref<1x1x4xf32, #tpu.memory_space<vmem>>, vector<1x1x4xf32>
    %84 = vector.shape_cast %83 : vector<1x1x4xf32> to vector<1x4xf32>
    %85 = vector.shape_cast %82 : vector<1x4xf32> to vector<1x1x4xf32>
    tpu.vector_store %arg23[%c0_43, %c0_44, %c0_45], %85 {strides = array<i32>} : memref<1x1x4xf32, #tpu.memory_space<vmem>>, vector<1x1x4xf32>,
    return
  }
  func.func @transform_0(%arg0: i32) -> (i32, i32, i32) {
    %c0_i32 = arith.constant 0 : i32
    %c0_i32_0 = arith.constant 0 : i32
    %c0_i32_1 = arith.constant 0 : i32
    return %arg0, %c0_i32, %c0_i32_0 : i32, i32, i32
  }
  func.func @transform_1(%arg0: i32) -> (i32, i32, i32) {
    %c0_i32 = arith.constant 0 : i32
    %c0_i32_0 = arith.constant 0 : i32
    %c0_i32_1 = arith.constant 0 : i32
    return %arg0, %c0_i32, %c0_i32_0 : i32, i32, i32
  }
  func.func @transform_2(%arg0: i32) -> (i32, i32, i32) {
    %c0_i32 = arith.constant 0 : i32
    %c0_i32_0 = arith.constant 0 : i32
    %c0_i32_1 = arith.constant 0 : i32
    %c0_i32_2 = arith.constant 0 : i32
    return %c0_i32, %c0_i32_0, %c0_i32_1 : i32, i32, i32
  }
  func.func @transform_3(%arg0: i32) -> (i32, i32, i32) {
    %c0_i32 = arith.constant 0 : i32
    %c0_i32_0 = arith.constant 0 : i32
    %c0_i32_1 = arith.constant 0 : i32
    %c0_i32_2 = arith.constant 0 : i32
    return %c0_i32, %c0_i32_0, %c0_i32_1 : i32, i32, i32
  }
  func.func @transform_4(%arg0: i32) -> (i32, i32, i32) {
    %c0_i32 = arith.constant 0 : i32
    %c0_i32_0 = arith.constant 0 : i32
    %c0_i32_1 = arith.constant 0 : i32
    %c0_i32_2 = arith.constant 0 : i32
    return %c0_i32, %c0_i32_0, %c0_i32_1 : i32, i32, i32
  }
  func.func @transform_5(%arg0: i32) -> (i32, i32, i32) {
    %c0_i32 = arith.constant 0 : i32
    %c0_i32_0 = arith.constant 0 : i32
    %c0_i32_1 = arith.constant 0 : i32
    %c0_i32_2 = arith.constant 0 : i32
    return %c0_i32, %c0_i32_0, %c0_i32_1 : i32, i32, i32
  }
  func.func @transform_6(%arg0: i32) -> (i32, i32, i32) {
    %c0_i32 = arith.constant 0 : i32
    %c0_i32_0 = arith.constant 0 : i32
    %c0_i32_1 = arith.constant 0 : i32
    %c0_i32_2 = arith.constant 0 : i32
    return %c0_i32, %c0_i32_0, %c0_i32_1 : i32, i32, i32
  }
  func.func @transform_7(%arg0: i32) -> (i32, i32, i32) {
    %c0_i32 = arith.constant 0 : i32
    %c0_i32_0 = arith.constant 0 : i32
    %c0_i32_1 = arith.constant 0 : i32
    %c0_i32_2 = arith.constant 0 : i32
    return %c0_i32, %c0_i32_0, %c0_i32_1 : i32, i32, i32
  }
  func.func @transform_8(%arg0: i32) -> (i32, i32, i32) {
    %c0_i32 = arith.constant 0 : i32
    %c0_i32_0 = arith.constant 0 : i32
    %c0_i32_1 = arith.constant 0 : i32
    %c0_i32_2 = arith.constant 0 : i32
    return %c0_i32, %c0_i32_0, %c0_i32_1 : i32, i32, i32
  }
  func.func @transform_9(%arg0: i32) -> (i32, i32) {
    %c0_i32 = arith.constant 0 : i32
    %c0_i32_0 = arith.constant 0 : i32
    %c0_i32_1 = arith.constant 0 : i32
    return %c0_i32, %c0_i32_0 : i32, i32
  }
  func.func @transform_10(%arg0: i32) -> (i32, i32) {
    %c0_i32 = arith.constant 0 : i32
    %c0_i32_0 = arith.constant 0 : i32
    %c0_i32_1 = arith.constant 0 : i32
    return %c0_i32, %c0_i32_0 : i32, i32
  }
  func.func @transform_11(%arg0: i32) -> (i32, i32) {
    %c0_i32 = arith.constant 0 : i32
    %c0_i32_0 = arith.constant 0 : i32
    %c0_i32_1 = arith.constant 0 : i32
    return %c0_i32, %c0_i32_0 : i32, i32
  }
  func.func @transform_12(%arg0: i32) -> (i32, i32) {
    %c0_i32 = arith.constant 0 : i32
    %c0_i32_0 = arith.constant 0 : i32
    %c0_i32_1 = arith.constant 0 : i32
    return %c0_i32, %c0_i32_0 : i32, i32
  }
  func.func @transform_13(%arg0: i32) -> (i32, i32) {
    %c0_i32 = arith.constant 0 : i32
    %c0_i32_0 = arith.constant 0 : i32
    %c0_i32_1 = arith.constant 0 : i32
    return %c0_i32, %c0_i32_0 : i32, i32
  }
  func.func @transform_14(%arg0: i32) -> (i32, i32) {
    %c0_i32 = arith.constant 0 : i32
    %c0_i32_0 = arith.constant 0 : i32
    %c0_i32_1 = arith.constant 0 : i32
    return %c0_i32, %c0_i32_0 : i32, i32
  }
  func.func @transform_15(%arg0: i32) -> (i32, i32) {
    %c0_i32 = arith.constant 0 : i32
    %c0_i32_0 = arith.constant 0 : i32
    %c0_i32_1 = arith.constant 0 : i32
    return %c0_i32, %c0_i32_0 : i32, i32
  }
  func.func @transform_16(%arg0: i32) -> (i32, i32) {
    %c0_i32 = arith.constant 0 : i32
    %c0_i32_0 = arith.constant 0 : i32
    %c0_i32_1 = arith.constant 0 : i32
    return %c0_i32, %c0_i32_0 : i32, i32
  }
  func.func @transform_17(%arg0: i32) -> (i32, i32) {
    %c0_i32 = arith.constant 0 : i32
    %c0_i32_0 = arith.constant 0 : i32
    %c0_i32_1 = arith.constant 0 : i32
    return %c0_i32, %c0_i32_0 : i32, i32
  }
  func.func @transform_18(%arg0: i32) -> (i32, i32) {
    %c0_i32 = arith.constant 0 : i32
    %c0_i32_0 = arith.constant 0 : i32
    %c0_i32_1 = arith.constant 0 : i32
    return %c0_i32, %c0_i32_0 : i32, i32
  }
  func.func @transform_19(%arg0: i32) -> (i32, i32) {
    %c0_i32 = arith.constant 0 : i32
    %c0_i32_0 = arith.constant 0 : i32
    %c0_i32_1 = arith.constant 0 : i32
    return %c0_i32, %c0_i32_0 : i32, i32
  }
  func.func @transform_20(%arg0: i32) -> (i32, i32) {
    %c0_i32 = arith.constant 0 : i32
    %c0_i32_0 = arith.constant 0 : i32
    %c0_i32_1 = arith.constant 0 : i32
    return %c0_i32, %c0_i32_0 : i32, i32
  }
  func.func @transform_21(%arg0: i32) -> (i32, i32) {
    %c0_i32 = arith.constant 0 : i32
    %c0_i32_0 = arith.constant 0 : i32
    %c0_i32_1 = arith.constant 0 : i32
    return %c0_i32, %c0_i32_0 : i32, i32
  }
  func.func @transform_22(%arg0: i32) -> (i32, i32, i32) {
    %c0_i32 = arith.constant 0 : i32
    %c0_i32_0 = arith.constant 0 : i32
    %c0_i32_1 = arith.constant 0 : i32
    return %arg0, %c0_i32, %c0_i32_0 : i32, i32, i32
  }
}

module attributes {stable_mosaic.version = 11 : i64} {
  func.func @_encoder_layer_kernel(%arg0: i32, %arg1: memref<1x8x64xbf16, #tpu.memory_space<vmem>>, %arg2: memref<1x1x8xf32, #tpu.memory_space<vmem>>, %arg3: memref<2x64x32xbf16, #tpu.memory_space<vmem>>, %arg4: memref<2x1x32xf32, #tpu.memory_space<vmem>>, %arg5: memref<2x64x32xbf16, #tpu.memory_space<vmem>>, %arg6: memref<2x1x32xf32, #tpu.memory_space<vmem>>, %arg7: memref<2x64x32xbf16, #tpu.memory_space<vmem>>, %arg8: memref<2x1x32xf32, #tpu.memory_space<vmem>>, %arg9: memref<2x32x64xbf16, #tpu.memory_space<vmem>>, %arg10: memref<1x64xf32, #tpu.memory_space<vmem>>, %arg11: memref<1x64xf32, #tpu.memory_space<vmem>>, %arg12: memref<1x64xf32, #tpu.memory_space<vmem>>, %arg13: memref<64x256xbf16, #tpu.memory_space<vmem>>, %arg14: memref<1x256xf32, #tpu.memory_space<vmem>>, %arg15: memref<256x64xbf16, #tpu.memory_space<vmem>>, %arg16: memref<1x64xf32, #tpu.memory_space<vmem>>, %arg17: memref<1x64xf32, #tpu.memory_space<vmem>>, %arg18: memref<1x64xf32, #tpu.memory_space<vmem>>, %arg19: memref<1x8x64xbf16, #tpu.memory_space<vmem>>) attributes {dimension_semantics = [#tpu.dimension_semantics<parallel>], iteration_bounds = array<i64: 2>, scalar_prefetch = 0 : i64, scratch_operands = 0 : i64, tpu.core_type = #tpu.core_type<tc>, window_params = [{transform_indices = @transform_0, window_bounds = array<i64: 1, 8, 64>}, {transform_indices = @transform_1, window_bounds = array<i64: 1, 1, 8>}, {pipeline_mode = #tpu.pipeline_mode<synchronous>, transform_indices = @transform_2, window_bounds = array<i64: 2, 64, 32>}, {pipeline_mode = #tpu.pipeline_mode<synchronous>, transform_indices = @transform_3, window_bounds = array<i64: 2, 1, 32>}, {pipeline_mode = #tpu.pipeline_mode<synchronous>, transform_indices = @transform_4, window_bounds = array<i64: 2, 64, 32>}, {pipeline_mode = #tpu.pipeline_mode<synchronous>, transform_indices = @transform_5, window_bounds = array<i64: 2, 1, 32>}, {pipeline_mode = #tpu.pipeline_mode<synchronous>, transform_indices = @transform_6, window_bounds = array<i64: 2, 64, 32>}, {pipeline_mode = #tpu.pipeline_mode<synchronous>, transform_indices = @transform_7, window_bounds = array<i64: 2, 1, 32>}, {pipeline_mode = #tpu.pipeline_mode<synchronous>, transform_indices = @transform_8, window_bounds = array<i64: 2, 32, 64>}, {pipeline_mode = #tpu.pipeline_mode<synchronous>, transform_indices = @transform_9, window_bounds = array<i64: 1, 64>}, {pipeline_mode = #tpu.pipeline_mode<synchronous>, transform_indices = @transform_10, window_bounds = array<i64: 1, 64>}, {pipeline_mode = #tpu.pipeline_mode<synchronous>, transform_indices = @transform_11, window_bounds = array<i64: 1, 64>}, {pipeline_mode = #tpu.pipeline_mode<synchronous>, transform_indices = @transform_12, window_bounds = array<i64: 64, 256>}, {pipeline_mode = #tpu.pipeline_mode<synchronous>, transform_indices = @transform_13, window_bounds = array<i64: 1, 256>}, {pipeline_mode = #tpu.pipeline_mode<synchronous>, transform_indices = @transform_14, window_bounds = array<i64: 256, 64>}, {pipeline_mode = #tpu.pipeline_mode<synchronous>, transform_indices = @transform_15, window_bounds = array<i64: 1, 64>}, {pipeline_mode = #tpu.pipeline_mode<synchronous>, transform_indices = @transform_16, window_bounds = array<i64: 1, 64>}, {pipeline_mode = #tpu.pipeline_mode<synchronous>, transform_indices = @transform_17, window_bounds = array<i64: 1, 64>}, {transform_indices = @transform_18, window_bounds = array<i64: 1, 8, 64>}]} {
    %c0 = arith.constant 0 : index
    %c0_0 = arith.constant 0 : index
    %c0_1 = arith.constant 0 : index
    %0 = vector.load %arg1[%c0, %c0_0, %c0_1] : memref<1x8x64xbf16, #tpu.memory_space<vmem>>, vector<1x8x64xbf16>
    %1 = vector.shape_cast %0 : vector<1x8x64xbf16> to vector<8x64xbf16>
    %2 = arith.extf %1 : vector<8x64xbf16> to vector<8x64xf32>
    %c0_2 = arith.constant 0 : index
    %c0_3 = arith.constant 0 : index
    %c0_4 = arith.constant 0 : index
    %3 = vector.load %arg2[%c0_2, %c0_3, %c0_4] : memref<1x1x8xf32, #tpu.memory_space<vmem>>, vector<1x1x8xf32>
    %4 = vector.shape_cast %3 : vector<1x1x8xf32> to vector<1x8xf32>
    %5 = vector.shape_cast %4 : vector<1x8xf32> to vector<1x8xf32>
    %6 = vector.broadcast %5 : vector<1x8xf32> to vector<8x8xf32>
    %cst = arith.constant 0.000000e+00 : f32
    %7 = vector.broadcast %cst : f32 to vector<8x64xf32>
    %c0_i32 = arith.constant 0 : i32
    %c2_i32 = arith.constant 2 : i32
    %8 = arith.addi %c0_i32, %c2_i32 : i32
    %c1_i32 = arith.constant 1 : i32
    %9 = scf.for %arg20 = %c0_i32 to %8 step %c1_i32 iter_args(%arg21 = %7) -> (vector<8x64xf32>)  : i32 {
      %74 = arith.index_cast %arg20 : i32 to index
      %c0_36 = arith.constant 0 : index
      %c0_37 = arith.constant 0 : index
      %75 = vector.load %arg3[%74, %c0_36, %c0_37] : memref<2x64x32xbf16, #tpu.memory_space<vmem>>, vector<1x64x32xbf16>
      %76 = vector.shape_cast %75 : vector<1x64x32xbf16> to vector<64x32xbf16>
      %cst_38 = arith.constant dense<0.000000e+00> : vector<8x32xf32>
      %77 = tpu.matmul %1, %76, %cst_38 {dimension_numbers = #tpu.dot_dimension_numbers<[1], [0], [0], [1], [0, 0, 1, 1], [], []>} : vector<8x64xbf16>, vector<64x32xbf16>, vector<8x32xf32> -> vector<8x32xf32>
      %78 = arith.index_cast %arg20 : i32 to index
      %c0_39 = arith.constant 0 : index
      %c0_40 = arith.constant 0 : index
      %79 = vector.load %arg4[%78, %c0_39, %c0_40] : memref<2x1x32xf32, #tpu.memory_space<vmem>>, vector<1x1x32xf32>
      %80 = vector.shape_cast %79 : vector<1x1x32xf32> to vector<1x32xf32>
      %81 = vector.broadcast %80 : vector<1x32xf32> to vector<8x32xf32>
      %82 = arith.addf %77, %81 : vector<8x32xf32>
      %83 = arith.index_cast %arg20 : i32 to index
      %c0_41 = arith.constant 0 : index
      %c0_42 = arith.constant 0 : index
      %84 = vector.load %arg5[%83, %c0_41, %c0_42] : memref<2x64x32xbf16, #tpu.memory_space<vmem>>, vector<1x64x32xbf16>
      %85 = vector.shape_cast %84 : vector<1x64x32xbf16> to vector<64x32xbf16>
      %cst_43 = arith.constant dense<0.000000e+00> : vector<8x32xf32>
      %86 = tpu.matmul %1, %85, %cst_43 {dimension_numbers = #tpu.dot_dimension_numbers<[1], [0], [0], [1], [0, 0, 1, 1], [], []>} : vector<8x64xbf16>, vector<64x32xbf16>, vector<8x32xf32> -> vector<8x32xf32>
      %87 = arith.index_cast %arg20 : i32 to index
      %c0_44 = arith.constant 0 : index
      %c0_45 = arith.constant 0 : index
      %88 = vector.load %arg6[%87, %c0_44, %c0_45] : memref<2x1x32xf32, #tpu.memory_space<vmem>>, vector<1x1x32xf32>
      %89 = vector.shape_cast %88 : vector<1x1x32xf32> to vector<1x32xf32>
      %90 = vector.broadcast %89 : vector<1x32xf32> to vector<8x32xf32>
      %91 = arith.addf %86, %90 : vector<8x32xf32>
      %92 = arith.index_cast %arg20 : i32 to index
      %c0_46 = arith.constant 0 : index
      %c0_47 = arith.constant 0 : index
      %93 = vector.load %arg7[%92, %c0_46, %c0_47] : memref<2x64x32xbf16, #tpu.memory_space<vmem>>, vector<1x64x32xbf16>
      %94 = vector.shape_cast %93 : vector<1x64x32xbf16> to vector<64x32xbf16>
      %cst_48 = arith.constant dense<0.000000e+00> : vector<8x32xf32>
      %95 = tpu.matmul %1, %94, %cst_48 {dimension_numbers = #tpu.dot_dimension_numbers<[1], [0], [0], [1], [0, 0, 1, 1], [], []>} : vector<8x64xbf16>, vector<64x32xbf16>, vector<8x32xf32> -> vector<8x32xf32>
      %96 = arith.index_cast %arg20 : i32 to index
      %c0_49 = arith.constant 0 : index
      %c0_50 = arith.constant 0 : index
      %97 = vector.load %arg8[%96, %c0_49, %c0_50] : memref<2x1x32xf32, #tpu.memory_space<vmem>>, vector<1x1x32xf32>
      %98 = vector.shape_cast %97 : vector<1x1x32xf32> to vector<1x32xf32>
      %99 = vector.broadcast %98 : vector<1x32xf32> to vector<8x32xf32>
      %100 = arith.addf %95, %99 : vector<8x32xf32>
      %101 = arith.truncf %82 : vector<8x32xf32> to vector<8x32xbf16>
      %102 = arith.truncf %91 : vector<8x32xf32> to vector<8x32xbf16>
      %cst_51 = arith.constant dense<0.000000e+00> : vector<8x8xf32>
      %103 = tpu.matmul %101, %102, %cst_51 {dimension_numbers = #tpu.dot_dimension_numbers<[1], [1], [0], [0], [0, 0, 1, 0], [], []>} : vector<8x32xbf16>, vector<8x32xbf16>, vector<8x8xf32> -> vector<8x8xf32>
      %cst_52 = arith.constant 0.176776692 : f32
      %104 = vector.broadcast %cst_52 : f32 to vector<8x8xf32>
      %105 = arith.mulf %103, %104 : vector<8x8xf32>
      %106 = arith.addf %105, %6 : vector<8x8xf32>
      %cst_53 = arith.constant dense<0xFF800000> : vector<8xf32>
      %107 = vector.multi_reduction <maximumf>, %106, %cst_53 [1] : vector<8x8xf32> to vector<8xf32>
      %108 = vector.shape_cast %107 : vector<8xf32> to vector<8x1xf32>
      %109 = vector.broadcast %108 : vector<8x1xf32> to vector<8x8xf32>
      %110 = arith.subf %106, %109 : vector<8x8xf32>
      %111 = math.exp %110 : vector<8x8xf32>
      %cst_54 = arith.constant dense<0.000000e+00> : vector<8xf32>
      %112 = vector.multi_reduction <add>, %111, %cst_54 [1] : vector<8x8xf32> to vector<8xf32>
      %113 = vector.shape_cast %112 : vector<8xf32> to vector<8x1xf32>
      %114 = tpu.reciprocal %113 {approx = true} : vector<8x1xf32> -> vector<8x1xf32>
      %115 = vector.broadcast %114 : vector<8x1xf32> to vector<8x8xf32>
      %116 = arith.mulf %111, %115 : vector<8x8xf32>
      %117 = arith.truncf %116 : vector<8x8xf32> to vector<8x8xbf16>
      %118 = arith.truncf %100 : vector<8x32xf32> to vector<8x32xbf16>
      %cst_55 = arith.constant dense<0.000000e+00> : vector<8x32xf32>
      %119 = tpu.matmul %117, %118, %cst_55 {dimension_numbers = #tpu.dot_dimension_numbers<[1], [0], [0], [1], [0, 0, 1, 1], [], []>} : vector<8x8xbf16>, vector<8x32xbf16>, vector<8x32xf32> -> vector<8x32xf32>
      %120 = arith.truncf %119 : vector<8x32xf32> to vector<8x32xbf16>
      %121 = arith.index_cast %arg20 : i32 to index
      %c0_56 = arith.constant 0 : index
      %c0_57 = arith.constant 0 : index
      %122 = vector.load %arg9[%121, %c0_56, %c0_57] : memref<2x32x64xbf16, #tpu.memory_space<vmem>>, vector<1x32x64xbf16>
      %123 = vector.shape_cast %122 : vector<1x32x64xbf16> to vector<32x64xbf16>
      %cst_58 = arith.constant dense<0.000000e+00> : vector<8x64xf32>
      %124 = tpu.matmul %120, %123, %cst_58 {dimension_numbers = #tpu.dot_dimension_numbers<[1], [0], [0], [1], [0, 0, 1, 1], [], []>} : vector<8x32xbf16>, vector<32x64xbf16>, vector<8x64xf32> -> vector<8x64xf32>
      %125 = arith.addf %arg21, %124 : vector<8x64xf32>
      scf.yield %125 : vector<8x64xf32>
    }
    %c2_i32_5 = arith.constant 2 : i32
    %c0_6 = arith.constant 0 : index
    %c0_7 = arith.constant 0 : index
    %10 = vector.load %arg10[%c0_6, %c0_7] : memref<1x64xf32, #tpu.memory_space<vmem>>, vector<1x64xf32>
    %11 = vector.broadcast %10 : vector<1x64xf32> to vector<8x64xf32>
    %12 = arith.addf %9, %11 : vector<8x64xf32>
    %13 = arith.addf %12, %2 : vector<8x64xf32>
    %c0_8 = arith.constant 0 : index
    %c0_9 = arith.constant 0 : index
    %14 = vector.load %arg11[%c0_8, %c0_9] : memref<1x64xf32, #tpu.memory_space<vmem>>, vector<1x64xf32>
    %c0_10 = arith.constant 0 : index
    %c0_11 = arith.constant 0 : index
    %15 = vector.load %arg12[%c0_10, %c0_11] : memref<1x64xf32, #tpu.memory_space<vmem>>, vector<1x64xf32>
    %cst_12 = arith.constant dense<0.000000e+00> : vector<8xf32>
    %16 = vector.multi_reduction <add>, %13, %cst_12 [1] : vector<8x64xf32> to vector<8xf32>
    %17 = vector.shape_cast %16 : vector<8xf32> to vector<8x1xf32>
    %cst_13 = arith.constant 6.400000e+01 : f32
    %18 = vector.broadcast %cst_13 : f32 to vector<8x1xf32>
    %19 = arith.divf %17, %18 : vector<8x1xf32>
    %20 = vector.broadcast %19 : vector<8x1xf32> to vector<8x64xf32>
    %21 = arith.subf %13, %20 : vector<8x64xf32>
    %22 = arith.mulf %21, %21 : vector<8x64xf32>
    %cst_14 = arith.constant dense<0.000000e+00> : vector<8xf32>
    %23 = vector.multi_reduction <add>, %22, %cst_14 [1] : vector<8x64xf32> to vector<8xf32>
    %24 = vector.shape_cast %23 : vector<8xf32> to vector<8x1xf32>
    %cst_15 = arith.constant 6.400000e+01 : f32
    %25 = vector.broadcast %cst_15 : f32 to vector<8x1xf32>
    %26 = arith.divf %24, %25 : vector<8x1xf32>
    %27 = vector.broadcast %19 : vector<8x1xf32> to vector<8x64xf32>
    %28 = arith.subf %13, %27 : vector<8x64xf32>
    %cst_16 = arith.constant 9.99999996E-13 : f32
    %29 = vector.broadcast %cst_16 : f32 to vector<8x1xf32>
    %30 = arith.addf %26, %29 : vector<8x1xf32>
    %31 = math.rsqrt %30 : vector<8x1xf32>
    %32 = vector.broadcast %31 : vector<8x1xf32> to vector<8x64xf32>
    %33 = arith.mulf %28, %32 : vector<8x64xf32>
    %34 = vector.broadcast %14 : vector<1x64xf32> to vector<8x64xf32>
    %35 = arith.mulf %33, %34 : vector<8x64xf32>
    %36 = vector.broadcast %15 : vector<1x64xf32> to vector<8x64xf32>
    %37 = arith.addf %35, %36 : vector<8x64xf32>
    %38 = arith.truncf %37 : vector<8x64xf32> to vector<8x64xbf16>
    %cst_17 = arith.constant 0.000000e+00 : f32
    %39 = vector.broadcast %cst_17 : f32 to vector<8x64xf32>
    %c0_i32_18 = arith.constant 0 : i32
    %c2_i32_19 = arith.constant 2 : i32
    %40 = arith.addi %c0_i32_18, %c2_i32_19 : i32
    %c1_i32_20 = arith.constant 1 : i32
    %41 = scf.for %arg20 = %c0_i32_18 to %40 step %c1_i32_20 iter_args(%arg21 = %39) -> (vector<8x64xf32>)  : i32 {
      %c128_i32 = arith.constant 128 : i32
      %74 = arith.muli %arg20, %c128_i32 : i32
      %75 = tpu.assume_multiple %74, 128 : i32
      %c0_36 = arith.constant 0 : index
      %76 = arith.index_cast %75 : i32 to index
      %77 = vector.load %arg13[%c0_36, %76] : memref<64x256xbf16, #tpu.memory_space<vmem>>, vector<64x128xbf16>
      %cst_37 = arith.constant dense<0.000000e+00> : vector<8x128xf32>
      %78 = tpu.matmul %38, %77, %cst_37 {dimension_numbers = #tpu.dot_dimension_numbers<[1], [0], [0], [1], [0, 0, 1, 1], [], []>} : vector<8x64xbf16>, vector<64x128xbf16>, vector<8x128xf32> -> vector<8x128xf32>
      %c0_38 = arith.constant 0 : index
      %79 = arith.index_cast %75 : i32 to index
      %80 = vector.load %arg14[%c0_38, %79] : memref<1x256xf32, #tpu.memory_space<vmem>>, vector<1x128xf32>
      %81 = vector.broadcast %80 : vector<1x128xf32> to vector<8x128xf32>
      %82 = arith.addf %78, %81 : vector<8x128xf32>
      %cst_39 = arith.constant 5.000000e-01 : f32
      %83 = vector.broadcast %cst_39 : f32 to vector<8x128xf32>
      %84 = arith.mulf %83, %82 : vector<8x128xf32>
      %cst_40 = arith.constant 4.471500e-02 : f32
      %85 = vector.broadcast %cst_40 : f32 to vector<8x128xf32>
      %86 = arith.mulf %85, %82 : vector<8x128xf32>
      %87 = arith.mulf %86, %82 : vector<8x128xf32>
      %88 = arith.mulf %87, %82 : vector<8x128xf32>
      %89 = arith.addf %82, %88 : vector<8x128xf32>
      %cst_41 = arith.constant 0.797884583 : f32
      %90 = vector.broadcast %cst_41 : f32 to vector<8x128xf32>
      %91 = arith.mulf %90, %89 : vector<8x128xf32>
      %92 = math.tanh %91 : vector<8x128xf32>
      %cst_42 = arith.constant 1.000000e+00 : f32
      %93 = vector.broadcast %cst_42 : f32 to vector<8x128xf32>
      %94 = arith.addf %93, %92 : vector<8x128xf32>
      %95 = arith.mulf %84, %94 : vector<8x128xf32>
      %96 = arith.truncf %95 : vector<8x128xf32> to vector<8x128xbf16>
      %97 = arith.index_cast %75 : i32 to index
      %c0_43 = arith.constant 0 : index
      %98 = vector.load %arg15[%97, %c0_43] : memref<256x64xbf16, #tpu.memory_space<vmem>>, vector<128x64xbf16>
      %cst_44 = arith.constant dense<0.000000e+00> : vector<8x64xf32>
      %99 = tpu.matmul %96, %98, %cst_44 {dimension_numbers = #tpu.dot_dimension_numbers<[1], [0], [0], [1], [0, 0, 1, 1], [], []>} : vector<8x128xbf16>, vector<128x64xbf16>, vector<8x64xf32> -> vector<8x64xf32>
      %100 = arith.addf %arg21, %99 : vector<8x64xf32>
      scf.yield %100 : vector<8x64xf32>
    }
    %c2_i32_21 = arith.constant 2 : i32
    %c0_22 = arith.constant 0 : index
    %c0_23 = arith.constant 0 : index
    %42 = vector.load %arg16[%c0_22, %c0_23] : memref<1x64xf32, #tpu.memory_space<vmem>>, vector<1x64xf32>
    %43 = vector.broadcast %42 : vector<1x64xf32> to vector<8x64xf32>
    %44 = arith.addf %41, %43 : vector<8x64xf32>
    %45 = arith.addf %44, %37 : vector<8x64xf32>
    %c0_24 = arith.constant 0 : index
    %c0_25 = arith.constant 0 : index
    %46 = vector.load %arg17[%c0_24, %c0_25] : memref<1x64xf32, #tpu.memory_space<vmem>>, vector<1x64xf32>
    %c0_26 = arith.constant 0 : index
    %c0_27 = arith.constant 0 : index
    %47 = vector.load %arg18[%c0_26, %c0_27] : memref<1x64xf32, #tpu.memory_space<vmem>>, vector<1x64xf32>
    %cst_28 = arith.constant dense<0.000000e+00> : vector<8xf32>
    %48 = vector.multi_reduction <add>, %45, %cst_28 [1] : vector<8x64xf32> to vector<8xf32>
    %49 = vector.shape_cast %48 : vector<8xf32> to vector<8x1xf32>
    %cst_29 = arith.constant 6.400000e+01 : f32
    %50 = vector.broadcast %cst_29 : f32 to vector<8x1xf32>
    %51 = arith.divf %49, %50 : vector<8x1xf32>
    %52 = vector.broadcast %51 : vector<8x1xf32> to vector<8x64xf32>
    %53 = arith.subf %45, %52 : vector<8x64xf32>
    %54 = arith.mulf %53, %53 : vector<8x64xf32>
    %cst_30 = arith.constant dense<0.000000e+00> : vector<8xf32>
    %55 = vector.multi_reduction <add>, %54, %cst_30 [1] : vector<8x64xf32> to vector<8xf32>
    %56 = vector.shape_cast %55 : vector<8xf32> to vector<8x1xf32>
    %cst_31 = arith.constant 6.400000e+01 : f32
    %57 = vector.broadcast %cst_31 : f32 to vector<8x1xf32>
    %58 = arith.divf %56, %57 : vector<8x1xf32>
    %59 = vector.broadcast %51 : vector<8x1xf32> to vector<8x64xf32>
    %60 = arith.subf %45, %59 : vector<8x64xf32>
    %cst_32 = arith.constant 9.99999996E-13 : f32
    %61 = vector.broadcast %cst_32 : f32 to vector<8x1xf32>
    %62 = arith.addf %58, %61 : vector<8x1xf32>
    %63 = math.rsqrt %62 : vector<8x1xf32>
    %64 = vector.broadcast %63 : vector<8x1xf32> to vector<8x64xf32>
    %65 = arith.mulf %60, %64 : vector<8x64xf32>
    %66 = vector.broadcast %46 : vector<1x64xf32> to vector<8x64xf32>
    %67 = arith.mulf %65, %66 : vector<8x64xf32>
    %68 = vector.broadcast %47 : vector<1x64xf32> to vector<8x64xf32>
    %69 = arith.addf %67, %68 : vector<8x64xf32>
    %70 = arith.truncf %69 : vector<8x64xf32> to vector<8x64xbf16>
    %c0_33 = arith.constant 0 : index
    %c0_34 = arith.constant 0 : index
    %c0_35 = arith.constant 0 : index
    %71 = vector.load %arg19[%c0_33, %c0_34, %c0_35] : memref<1x8x64xbf16, #tpu.memory_space<vmem>>, vector<1x8x64xbf16>
    %72 = vector.shape_cast %71 : vector<1x8x64xbf16> to vector<8x64xbf16>
    %73 = vector.shape_cast %70 : vector<8x64xbf16> to vector<1x8x64xbf16>
    tpu.vector_store %arg19[%c0_33, %c0_34, %c0_35], %73 {strides = array<i32>} : memref<1x8x64xbf16, #tpu.memory_space<vmem>>, vector<1x8x64xbf16>,
    return
  }
  func.func @transform_0(%arg0: i32) -> (i32, i32, i32) {
    %c0_i32 = arith.constant 0 : i32
    %c0_i32_0 = arith.constant 0 : i32
    %c0_i32_1 = arith.constant 0 : i32
    return %arg0, %c0_i32, %c0_i32_0 : i32, i32, i32
  }
  func.func @transform_1(%arg0: i32) -> (i32, i32, i32) {
    %c0_i32 = arith.constant 0 : i32
    %c0_i32_0 = arith.constant 0 : i32
    %c0_i32_1 = arith.constant 0 : i32
    return %arg0, %c0_i32, %c0_i32_0 : i32, i32, i32
  }
  func.func @transform_2(%arg0: i32) -> (i32, i32, i32) {
    %c0_i32 = arith.constant 0 : i32
    %c0_i32_0 = arith.constant 0 : i32
    %c0_i32_1 = arith.constant 0 : i32
    %c0_i32_2 = arith.constant 0 : i32
    return %c0_i32, %c0_i32_0, %c0_i32_1 : i32, i32, i32
  }
  func.func @transform_3(%arg0: i32) -> (i32, i32, i32) {
    %c0_i32 = arith.constant 0 : i32
    %c0_i32_0 = arith.constant 0 : i32
    %c0_i32_1 = arith.constant 0 : i32
    %c0_i32_2 = arith.constant 0 : i32
    return %c0_i32, %c0_i32_0, %c0_i32_1 : i32, i32, i32
  }
  func.func @transform_4(%arg0: i32) -> (i32, i32, i32) {
    %c0_i32 = arith.constant 0 : i32
    %c0_i32_0 = arith.constant 0 : i32
    %c0_i32_1 = arith.constant 0 : i32
    %c0_i32_2 = arith.constant 0 : i32
    return %c0_i32, %c0_i32_0, %c0_i32_1 : i32, i32, i32
  }
  func.func @transform_5(%arg0: i32) -> (i32, i32, i32) {
    %c0_i32 = arith.constant 0 : i32
    %c0_i32_0 = arith.constant 0 : i32
    %c0_i32_1 = arith.constant 0 : i32
    %c0_i32_2 = arith.constant 0 : i32
    return %c0_i32, %c0_i32_0, %c0_i32_1 : i32, i32, i32
  }
  func.func @transform_6(%arg0: i32) -> (i32, i32, i32) {
    %c0_i32 = arith.constant 0 : i32
    %c0_i32_0 = arith.constant 0 : i32
    %c0_i32_1 = arith.constant 0 : i32
    %c0_i32_2 = arith.constant 0 : i32
    return %c0_i32, %c0_i32_0, %c0_i32_1 : i32, i32, i32
  }
  func.func @transform_7(%arg0: i32) -> (i32, i32, i32) {
    %c0_i32 = arith.constant 0 : i32
    %c0_i32_0 = arith.constant 0 : i32
    %c0_i32_1 = arith.constant 0 : i32
    %c0_i32_2 = arith.constant 0 : i32
    return %c0_i32, %c0_i32_0, %c0_i32_1 : i32, i32, i32
  }
  func.func @transform_8(%arg0: i32) -> (i32, i32, i32) {
    %c0_i32 = arith.constant 0 : i32
    %c0_i32_0 = arith.constant 0 : i32
    %c0_i32_1 = arith.constant 0 : i32
    %c0_i32_2 = arith.constant 0 : i32
    return %c0_i32, %c0_i32_0, %c0_i32_1 : i32, i32, i32
  }
  func.func @transform_9(%arg0: i32) -> (i32, i32) {
    %c0_i32 = arith.constant 0 : i32
    %c0_i32_0 = arith.constant 0 : i32
    %c0_i32_1 = arith.constant 0 : i32
    return %c0_i32, %c0_i32_0 : i32, i32
  }
  func.func @transform_10(%arg0: i32) -> (i32, i32) {
    %c0_i32 = arith.constant 0 : i32
    %c0_i32_0 = arith.constant 0 : i32
    %c0_i32_1 = arith.constant 0 : i32
    return %c0_i32, %c0_i32_0 : i32, i32
  }
  func.func @transform_11(%arg0: i32) -> (i32, i32) {
    %c0_i32 = arith.constant 0 : i32
    %c0_i32_0 = arith.constant 0 : i32
    %c0_i32_1 = arith.constant 0 : i32
    return %c0_i32, %c0_i32_0 : i32, i32
  }
  func.func @transform_12(%arg0: i32) -> (i32, i32) {
    %c0_i32 = arith.constant 0 : i32
    %c0_i32_0 = arith.constant 0 : i32
    %c0_i32_1 = arith.constant 0 : i32
    return %c0_i32, %c0_i32_0 : i32, i32
  }
  func.func @transform_13(%arg0: i32) -> (i32, i32) {
    %c0_i32 = arith.constant 0 : i32
    %c0_i32_0 = arith.constant 0 : i32
    %c0_i32_1 = arith.constant 0 : i32
    return %c0_i32, %c0_i32_0 : i32, i32
  }
  func.func @transform_14(%arg0: i32) -> (i32, i32) {
    %c0_i32 = arith.constant 0 : i32
    %c0_i32_0 = arith.constant 0 : i32
    %c0_i32_1 = arith.constant 0 : i32
    return %c0_i32, %c0_i32_0 : i32, i32
  }
  func.func @transform_15(%arg0: i32) -> (i32, i32) {
    %c0_i32 = arith.constant 0 : i32
    %c0_i32_0 = arith.constant 0 : i32
    %c0_i32_1 = arith.constant 0 : i32
    return %c0_i32, %c0_i32_0 : i32, i32
  }
  func.func @transform_16(%arg0: i32) -> (i32, i32) {
    %c0_i32 = arith.constant 0 : i32
    %c0_i32_0 = arith.constant 0 : i32
    %c0_i32_1 = arith.constant 0 : i32
    return %c0_i32, %c0_i32_0 : i32, i32
  }
  func.func @transform_17(%arg0: i32) -> (i32, i32) {
    %c0_i32 = arith.constant 0 : i32
    %c0_i32_0 = arith.constant 0 : i32
    %c0_i32_1 = arith.constant 0 : i32
    return %c0_i32, %c0_i32_0 : i32, i32
  }
  func.func @transform_18(%arg0: i32) -> (i32, i32, i32) {
    %c0_i32 = arith.constant 0 : i32
    %c0_i32_0 = arith.constant 0 : i32
    %c0_i32_1 = arith.constant 0 : i32
    return %arg0, %c0_i32, %c0_i32_0 : i32, i32, i32
  }
}

</mosaic_0001>

<llo_original>
// kernel: protein_classifier_forward.3
$region0: #{protein_classifier_forward.3}
  #allocation0 [shape = 'u32[]', space=smem, size = 0x4, offset = 0x4, fixed_abs, tag = 'smem constant byte address 0x4 - core index']
  #allocation1 [shape = 'u32[144,128]{1,0:T(1,128)}', space=vmem, size = 0x12000, scoped, tag = 'internal scratch']
  %s0 = inlined_call_operand.vmem [shape: f32[16,64], index: 0, kind: input, shape index: {}]
  %s1 = inlined_call_operand.vmem [shape: f32[1,64], index: 1, kind: input, shape index: {}]
  %s2 = inlined_call_operand.vmem [shape: f32[1,64], index: 2, kind: input, shape index: {}]
  %s3 = inlined_call_operand.vmem [shape: bf16[16,64], index: 3, kind: output, shape index: {}]
  %s4 = sld [smem:[#allocation0]]
  $region22: #{protein_classifier_forward.3} parent=0
    _
  %s6 = ssub.s32 1, %s4
  %s7 = scalar_select 0, %s6, %s4
  // Predicated region
  $region2: #{protein_classifier_forward.3} parent=0 // pred_check
    _
  $region3: #{protein_classifier_forward.3} parent=0 // pred_check_branch
    %9 = sbr.rel (0) target = $region5
  $region4: #{protein_classifier_forward.3} parent=0 // pred_region
    _
  $region5: #{protein_classifier_forward.3} parent=0 // pred_fallthru
    _
  // Predicated region
  $region6: #{protein_classifier_forward.3} parent=0 // pred_check
    _
  $region7: #{protein_classifier_forward.3} parent=0 // pred_check_branch
    %11 = sbr.rel (0) target = $region9
  $region8: #{protein_classifier_forward.3} parent=0 // pred_region
    _
  $region9: #{protein_classifier_forward.3} parent=0 // pred_fallthru
    _
  // Predicated region
  $region10: #{protein_classifier_forward.3} parent=0 // pred_check
    _
  $region11: #{protein_classifier_forward.3} parent=0 // pred_check_branch
    %13 = sbr.rel (0) target = $region13
  $region12: #{protein_classifier_forward.3} parent=0 // pred_region
    _
  $region13: #{protein_classifier_forward.3} parent=0 // pred_fallthru
    _
  %v14 = vld [vmem:[%s0] sm:$0xff]
  %v15 = vld [vmem:[%s0 + $0x8] sm:$0xff]
  %v16 = vld [vmem:[%s1] sm:$0x1]
  %v17 = vld [vmem:[%s2] sm:$0x1]
  %vm18 = vcmask 523264
  %v19 = vsel %vm18, %v14, 0.0
  %20 = vadd.xlane.f32.xlu0 %v19
  %v21 = vpop.xlane.xlu0 %20
  %v22 = vsel %vm18, %v15, 0.0
  %23 = vadd.xlane.f32.xlu0 %v22
  %v24 = vpop.xlane.xlu0 %23
  %v25 = vrcp.pop 64.0
  %v26 = vmul.f32 %v21, %v25
  %v27 = vmul.f32 %v24, %v25
  %v28 = vsub.f32 %v14, %v26
  %v29 = vsub.f32 %v15, %v27
  %v30 = vmul.f32 %v28, %v28
  %v31 = vmul.f32 %v29, %v29
  %v32 = vsel %vm18, %v30, 0.0
  %33 = vadd.xlane.f32.xlu0 %v32
  %v34 = vpop.xlane.xlu0 %33
  %v35 = vsel %vm18, %v31, 0.0
  %36 = vadd.xlane.f32.xlu0 %v35
  %v37 = vpop.xlane.xlu0 %36
  %v38 = vmul.f32 %v34, %v25
  %v39 = vmul.f32 %v37, %v25
  %v40 = vadd.f32 %v38, 1e-12
  %v41 = vadd.f32 %v39, 1e-12
  %v42 = vrsqrt.pop %v40
  %v43 = vrsqrt.pop %v41
  %v44 = vmul.f32 %v28, %v42
  %v45 = vmul.f32 %v29, %v43
  %v47 = vlaneseq
  %v48 = vshrl.u32 %v47, 7
  %v49 = vsub.s32 0, %v48
  %v50 = vrot.slane %v16, %v49
  %v52 = vmul.f32 %v44, %v50
  %v53 = vmul.f32 %v45, %v50
  %v55 = vlaneseq
  %v56 = vshrl.u32 %v55, 7
  %v57 = vsub.s32 0, %v56
  %v58 = vrot.slane %v17, %v57
  %v60 = vadd.f32 %v52, %v58
  %v61 = vadd.f32 %v53, %v58
  %v62 = vpack.c.bf16 %v61, %v60
  %v64 = vunpack.c.l.b16 %v62
  %v65 = vunpack.c.h.b16 %v62
  %v66 = vpack.c.b16 %v64, %v64
  %v67 = vpack.c.b16 %v65, %v65
  %vm70 = vcmask 519168
  %71 = vst.msk [vmem:[%s3] sm:$0xf] %vm70, %v66
  %72 = vst.msk [vmem:[%s3 + $0x4] sm:$0xf] %vm70, %v67
  // Predicated region
  $region14: #{protein_classifier_forward.3} parent=0 // pred_check
    _
  $region15: #{protein_classifier_forward.3} parent=0 // pred_check_branch
    %74 = sbr.rel (0) target = $region17
  $region16: #{protein_classifier_forward.3} parent=0 // pred_region
    _
  $region17: #{protein_classifier_forward.3} parent=0 // pred_fallthru
    _
  // Predicated region
  $region18: #{protein_classifier_forward.3} parent=0 // pred_check
    _
  $region19: #{protein_classifier_forward.3} parent=0 // pred_check_branch
    %76 = sbr.rel (0) target = $region21
  $region20: #{protein_classifier_forward.3} parent=0 // pred_region
    _
  $region21: #{protein_classifier_forward.3} parent=0 // pred_fallthru
    _

// kernel: protein_classifier_forward.4
$region0: #{protein_classifier_forward.4}
  #allocation0 [shape = 'u32[]', space=smem, size = 0x4, offset = 0x4, fixed_abs, tag = 'smem constant byte address 0x4 - core index']
  #allocation1 [shape = 'u32[144,128]{1,0:T(1,128)}', space=vmem, size = 0x12000, scoped, tag = 'internal scratch']
  %s0 = inlined_call_operand.vmem [shape: bf16[2,8,64], index: 0, kind: input, shape index: {}]
  %s1 = inlined_call_operand.vmem [shape: f32[2,1,8], index: 1, kind: input, shape index: {}]
  %s2 = inlined_call_operand.vmem [shape: bf16[2,64,32], index: 2, kind: input, shape index: {}]
  %s3 = inlined_call_operand.vmem [shape: f32[2,1,32], index: 3, kind: input, shape index: {}]
  %s4 = inlined_call_operand.vmem [shape: bf16[2,64,32], index: 4, kind: input, shape index: {}]
  %s5 = inlined_call_operand.vmem [shape: f32[2,1,32], index: 5, kind: input, shape index: {}]
  %s6 = inlined_call_operand.vmem [shape: bf16[2,64,32], index: 6, kind: input, shape index: {}]
  %s7 = inlined_call_operand.vmem [shape: f32[2,1,32], index: 7, kind: input, shape index: {}]
  %s8 = inlined_call_operand.vmem [shape: bf16[2,32,64], index: 8, kind: input, shape index: {}]
  %s9 = inlined_call_operand.vmem [shape: f32[1,64], index: 9, kind: input, shape index: {}]
  %s10 = inlined_call_operand.vmem [shape: f32[1,64], index: 10, kind: input, shape index: {}]
  %s11 = inlined_call_operand.vmem [shape: f32[1,64], index: 11, kind: input, shape index: {}]
  %s12 = inlined_call_operand.vmem [shape: bf16[64,256], index: 12, kind: input, shape index: {}]
  %s13 = inlined_call_operand.vmem [shape: f32[1,256], index: 13, kind: input, shape index: {}]
  %s14 = inlined_call_operand.vmem [shape: bf16[256,64], index: 14, kind: input, shape index: {}]
  %s15 = inlined_call_operand.vmem [shape: f32[1,64], index: 15, kind: input, shape index: {}]
  %s16 = inlined_call_operand.vmem [shape: f32[1,64], index: 16, kind: input, shape index: {}]
  %s17 = inlined_call_operand.vmem [shape: f32[1,64], index: 17, kind: input, shape index: {}]
  %s18 = inlined_call_operand.vmem [shape: bf16[2,8,64], index: 18, kind: output, shape index: {}]
  %s19 = sld [smem:[#allocation0]]
  $region119: #{protein_classifier_forward.4} parent=0
    _
  %s21 = ssub.s32 1, %s19
  %s22 = scalar_select 0, %s21, %s19
  loop: start=0, step=1, limit=4
  $region2: #{protein_classifier_forward.4} parent=0 // loop_pre_header
    _
  $region3: #{protein_classifier_forward.4} parent=0 // loop_header
    %s24 = sphi 0, %s28
    %p25 = scmp.ge.s32.totalorder %s24, 4
    %s34 = sphi 0, %s36
    %s37 = sphi 0, %s34
    %s38 = sphi 0, %s37
    %s54 = sphi 0, %s38
    %s60 = sphi 0, %s62
    %s63 = sphi 0, %s60
    %s64 = sphi 0, %s63
    %s80 = sphi 0, %s64
    %s84 = sphi 0, %s84
    %s86 = sphi 0, %s84
    %s87 = sphi 0, %s86
    %s101 = sphi 0, %s87
    %s105 = sphi 0, %s105
    %s107 = sphi 0, %s105
    %s108 = sphi 0, %s107
    %s122 = sphi 0, %s108
    %s126 = sphi 0, %s126
    %s128 = sphi 0, %s126
    %s129 = sphi 0, %s128
    %s143 = sphi 0, %s129
    %s147 = sphi 0, %s147
    %s149 = sphi 0, %s147
    %s150 = sphi 0, %s149
    %s164 = sphi 0, %s150
    %s168 = sphi 0, %s168
    %s170 = sphi 0, %s168
    %s171 = sphi 0, %s170
    %s185 = sphi 0, %s171
    %s189 = sphi 0, %s189
    %s191 = sphi 0, %s189
    %s192 = sphi 0, %s191
    %s206 = sphi 0, %s192
    %s210 = sphi 0, %s210
    %s212 = sphi 0, %s210
    %s213 = sphi 0, %s212
    %s227 = sphi 0, %s213
    %s231 = sphi 0, %s231
    %s233 = sphi 0, %s231
    %s234 = sphi 0, %s233
    %s248 = sphi 0, %s234
    %s252 = sphi 0, %s252
    %s254 = sphi 0, %s252
    %s255 = sphi 0, %s254
    %s269 = sphi 0, %s255
    %s273 = sphi 0, %s273
    %s275 = sphi 0, %s273
    %s276 = sphi 0, %s275
    %s290 = sphi 0, %s276
    %s294 = sphi 0, %s294
    %s296 = sphi 0, %s294
    %s297 = sphi 0, %s296
    %s311 = sphi 0, %s297
    %s315 = sphi 0, %s315
    %s317 = sphi 0, %s315
    %s318 = sphi 0, %s317
    %s332 = sphi 0, %s318
    %s336 = sphi 0, %s336
    %s338 = sphi 0, %s336
    %s339 = sphi 0, %s338
    %s353 = sphi 0, %s339
    %s357 = sphi 0, %s357
    %s359 = sphi 0, %s357
    %s360 = sphi 0, %s359
    %s374 = sphi 0, %s360
    %s378 = sphi 0, %s378
    %s380 = sphi 0, %s378
    %s381 = sphi 0, %s380
    %s395 = sphi 0, %s381
    %s399 = sphi 0, %s399
    %s401 = sphi 0, %s399
    %s402 = sphi 0, %s401
    %s416 = sphi 0, %s402
    %s422 = sphi 0, %s424
    %s425 = sphi 0, %s422
    %s426 = sphi 0, %s425
    %s442 = sphi 0, %s426
  $region4: #{protein_classifier_forward.4} parent=0 // loop_header_branch
    %27 = sbr.rel (%p25) target = $region8
  $region5: #{protein_classifier_forward.4} parent=0 // loop_body
    %s29 = ssub.s32 %s24, 1
    %s30 = ssub.s32 %s24, 2
    %s31 = sadd.s32 %s24, 1
    %s32 = ssub.s32 %s24, %s31
    %p33 = scmp.eq.s32.totalorder %s32, 0
    %s35 = sadd.s32 %s34, 1
    %s36 = scalar_select %p33, %s34, %s35
    %p39 = pneg %p33
    %p40 = scmp.eq.s32.totalorder %s24, 1
    %p41 = por %p39, %p40
    %p42 = scmp.ne.s32.totalorder %s34, %s37
    %p43 = scmp.eq.s32.totalorder %s24, 0
    %p44 = por %p42, %p43
    %p45 = scmp.ne.s32.totalorder %s34, %s37
    %p46 = scmp.eq.s32.totalorder %s29, 1
    %p47 = por %p45, %p46
    %p48 = scmp.ne.s32.totalorder %s37, %s38
    %p49 = scmp.eq.s32.totalorder %s29, 0
    %p50 = por %p48, %p49
    %p51 = scmp.ne.s32.totalorder %s37, %s38
    %p52 = scmp.eq.s32.totalorder %s30, 1
    %p53 = por %p51, %p52
    %p55 = scmp.ne.s32.totalorder %s38, %s54
    %p56 = scmp.eq.s32.totalorder %s30, 0
    %p57 = por %p55, %p56
    %s58 = ssub.s32 %s24, %s31
    %p59 = scmp.eq.s32.totalorder %s58, 0
    %s61 = sadd.s32 %s60, 1
    %s62 = scalar_select %p59, %s60, %s61
    %p65 = pneg %p59
    %p66 = scmp.eq.s32.totalorder %s24, 1
    %p67 = por %p65, %p66
    %p68 = scmp.ne.s32.totalorder %s60, %s63
    %p69 = scmp.eq.s32.totalorder %s24, 0
    %p70 = por %p68, %p69
    %p71 = scmp.ne.s32.totalorder %s60, %s63
    %p72 = scmp.eq.s32.totalorder %s29, 1
    %p73 = por %p71, %p72
    %p74 = scmp.ne.s32.totalorder %s63, %s64
    %p75 = scmp.eq.s32.totalorder %s29, 0
    %p76 = por %p74, %p75
    %p77 = scmp.ne.s32.totalorder %s63, %s64
    %p78 = scmp.eq.s32.totalorder %s30, 1
    %p79 = por %p77, %p78
    %p81 = scmp.ne.s32.totalorder %s64, %s80
    %p82 = scmp.eq.s32.totalorder %s30, 0
    %p83 = por %p81, %p82
    %s85 = sadd.s32 %s84, 1
    %p88 = scmp.eq.s32.totalorder %s24, 1
    %p89 = scmp.ne.s32.totalorder %s84, %s86
    %p90 = scmp.eq.s32.totalorder %s24, 0
    %p91 = por %p89, %p90
    %p92 = scmp.ne.s32.totalorder %s84, %s86
    %p93 = scmp.eq.s32.totalorder %s29, 1
    %p94 = por %p92, %p93
    %p95 = scmp.ne.s32.totalorder %s86, %s87
    %p96 = scmp.eq.s32.totalorder %s29, 0
    %p97 = por %p95, %p96
    %p98 = scmp.ne.s32.totalorder %s86, %s87
    %p99 = scmp.eq.s32.totalorder %s30, 1
    %p100 = por %p98, %p99
    %p102 = scmp.ne.s32.totalorder %s87, %s101
    %p103 = scmp.eq.s32.totalorder %s30, 0
    %p104 = por %p102, %p103
    %s106 = sadd.s32 %s105, 1
    %p109 = scmp.eq.s32.totalorder %s24, 1
    %p110 = scmp.ne.s32.totalorder %s105, %s107
    %p111 = scmp.eq.s32.totalorder %s24, 0
    %p112 = por %p110, %p111
    %p113 = scmp.ne.s32.totalorder %s105, %s107
    %p114 = scmp.eq.s32.totalorder %s29, 1
    %p115 = por %p113, %p114
    %p116 = scmp.ne.s32.totalorder %s107, %s108
    %p117 = scmp.eq.s32.totalorder %s29, 0
    %p118 = por %p116, %p117
    %p119 = scmp.ne.s32.totalorder %s107, %s108
    %p120 = scmp.eq.s32.totalorder %s30, 1
    %p121 = por %p119, %p120
    %p123 = scmp.ne.s32.totalorder %s108, %s122
    %p124 = scmp.eq.s32.totalorder %s30, 0
    %p125 = por %p123, %p124
    %s127 = sadd.s32 %s126, 1
    %p130 = scmp.eq.s32.totalorder %s24, 1
    %p131 = scmp.ne.s32.totalorder %s126, %s128
    %p132 = scmp.eq.s32.totalorder %s24, 0
    %p133 = por %p131, %p132
    %p134 = scmp.ne.s32.totalorder %s126, %s128
    %p135 = scmp.eq.s32.totalorder %s29, 1
    %p136 = por %p134, %p135
    %p137 = scmp.ne.s32.totalorder %s128, %s129
    %p138 = scmp.eq.s32.totalorder %s29, 0
    %p139 = por %p137, %p138
    %p140 = scmp.ne.s32.totalorder %s128, %s129
    %p141 = scmp.eq.s32.totalorder %s30, 1
    %p142 = por %p140, %p141
    %p144 = scmp.ne.s32.totalorder %s129, %s143
    %p145 = scmp.eq.s32.totalorder %s30, 0
    %p146 = por %p144, %p145
    %s148 = sadd.s32 %s147, 1
    %p151 = scmp.eq.s32.totalorder %s24, 1
    %p152 = scmp.ne.s32.totalorder %s147, %s149
    %p153 = scmp.eq.s32.totalorder %s24, 0
    %p154 = por %p152, %p153
    %p155 = scmp.ne.s32.totalorder %s147, %s149
    %p156 = scmp.eq.s32.totalorder %s29, 1
    %p157 = por %p155, %p156
    %p158 = scmp.ne.s32.totalorder %s149, %s150
    %p159 = scmp.eq.s32.totalorder %s29, 0
    %p160 = por %p158, %p159
    %p161 = scmp.ne.s32.totalorder %s149, %s150
    %p162 = scmp.eq.s32.totalorder %s30, 1
    %p163 = por %p161, %p162
    %p165 = scmp.ne.s32.totalorder %s150, %s164
    %p166 = scmp.eq.s32.totalorder %s30, 0
    %p167 = por %p165, %p166
    %s169 = sadd.s32 %s168, 1
    %p172 = scmp.eq.s32.totalorder %s24, 1
    %p173 = scmp.ne.s32.totalorder %s168, %s170
    %p174 = scmp.eq.s32.totalorder %s24, 0
    %p175 = por %p173, %p174
    %p176 = scmp.ne.s32.totalorder %s168, %s170
    %p177 = scmp.eq.s32.totalorder %s29, 1
    %p178 = por %p176, %p177
    %p179 = scmp.ne.s32.totalorder %s170, %s171
    %p180 = scmp.eq.s32.totalorder %s29, 0
    %p181 = por %p179, %p180
    %p182 = scmp.ne.s32.totalorder %s170, %s171
    %p183 = scmp.eq.s32.totalorder %s30, 1
    %p184 = por %p182, %p183
    %p186 = scmp.ne.s32.totalorder %s171, %s185
    %p187 = scmp.eq.s32.totalorder %s30, 0
    %p188 = por %p186, %p187
    %s190 = sadd.s32 %s189, 1
    %p193 = scmp.eq.s32.totalorder %s24, 1
    %p194 = scmp.ne.s32.totalorder %s189, %s191
    %p195 = scmp.eq.s32.totalorder %s24, 0
    %p196 = por %p194, %p195
    %p197 = scmp.ne.s32.totalorder %s189, %s191
    %p198 = scmp.eq.s32.totalorder %s29, 1
    %p199 = por %p197, %p198
    %p200 = scmp.ne.s32.totalorder %s191, %s192
    %p201 = scmp.eq.s32.totalorder %s29, 0
    %p202 = por %p200, %p201
    %p203 = scmp.ne.s32.totalorder %s191, %s192
    %p204 = scmp.eq.s32.totalorder %s30, 1
    %p205 = por %p203, %p204
    %p207 = scmp.ne.s32.totalorder %s192, %s206
    %p208 = scmp.eq.s32.totalorder %s30, 0
    %p209 = por %p207, %p208
    %s211 = sadd.s32 %s210, 1
    %p214 = scmp.eq.s32.totalorder %s24, 1
    %p215 = scmp.ne.s32.totalorder %s210, %s212
    %p216 = scmp.eq.s32.totalorder %s24, 0
    %p217 = por %p215, %p216
    %p218 = scmp.ne.s32.totalorder %s210, %s212
    %p219 = scmp.eq.s32.totalorder %s29, 1
    %p220 = por %p218, %p219
    %p221 = scmp.ne.s32.totalorder %s212, %s213
    %p222 = scmp.eq.s32.totalorder %s29, 0
    %p223 = por %p221, %p222
    %p224 = scmp.ne.s32.totalorder %s212, %s213
    %p225 = scmp.eq.s32.totalorder %s30, 1
    %p226 = por %p224, %p225
    %p228 = scmp.ne.s32.totalorder %s213, %s227
    %p229 = scmp.eq.s32.totalorder %s30, 0
    %p230 = por %p228, %p229
    %s232 = sadd.s32 %s231, 1
    %p235 = scmp.eq.s32.totalorder %s24, 1
    %p236 = scmp.ne.s32.totalorder %s231, %s233
    %p237 = scmp.eq.s32.totalorder %s24, 0
    %p238 = por %p236, %p237
    %p239 = scmp.ne.s32.totalorder %s231, %s233
    %p240 = scmp.eq.s32.totalorder %s29, 1
    %p241 = por %p239, %p240
    %p242 = scmp.ne.s32.totalorder %s233, %s234
    %p243 = scmp.eq.s32.totalorder %s29, 0
    %p244 = por %p242, %p243
    %p245 = scmp.ne.s32.totalorder %s233, %s234
    %p246 = scmp.eq.s32.totalorder %s30, 1
    %p247 = por %p245, %p246
    %p249 = scmp.ne.s32.totalorder %s234, %s248
    %p250 = scmp.eq.s32.totalorder %s30, 0
    %p251 = por %p249, %p250
    %s253 = sadd.s32 %s252, 1
    %p256 = scmp.eq.s32.totalorder %s24, 1
    %p257 = scmp.ne.s32.totalorder %s252, %s254
    %p258 = scmp.eq.s32.totalorder %s24, 0
    %p259 = por %p257, %p258
    %p260 = scmp.ne.s32.totalorder %s252, %s254
    %p261 = scmp.eq.s32.totalorder %s29, 1
    %p262 = por %p260, %p261
    %p263 = scmp.ne.s32.totalorder %s254, %s255
    %p264 = scmp.eq.s32.totalorder %s29, 0
    %p265 = por %p263, %p264
    %p266 = scmp.ne.s32.totalorder %s254, %s255
    %p267 = scmp.eq.s32.totalorder %s30, 1
    %p268 = por %p266, %p267
    %p270 = scmp.ne.s32.totalorder %s255, %s269
    %p271 = scmp.eq.s32.totalorder %s30, 0
    %p272 = por %p270, %p271
    %s274 = sadd.s32 %s273, 1
    %p277 = scmp.eq.s32.totalorder %s24, 1
    %p278 = scmp.ne.s32.totalorder %s273, %s275
    %p279 = scmp.eq.s32.totalorder %s24, 0
    %p280 = por %p278, %p279
    %p281 = scmp.ne.s32.totalorder %s273, %s275
    %p282 = scmp.eq.s32.totalorder %s29, 1
    %p283 = por %p281, %p282
    %p284 = scmp.ne.s32.totalorder %s275, %s276
    %p285 = scmp.eq.s32.totalorder %s29, 0
    %p286 = por %p284, %p285
    %p287 = scmp.ne.s32.totalorder %s275, %s276
    %p288 = scmp.eq.s32.totalorder %s30, 1
    %p289 = por %p287, %p288
    %p291 = scmp.ne.s32.totalorder %s276, %s290
    %p292 = scmp.eq.s32.totalorder %s30, 0
    %p293 = por %p291, %p292
    %s295 = sadd.s32 %s294, 1
    %p298 = scmp.eq.s32.totalorder %s24, 1
    %p299 = scmp.ne.s32.totalorder %s294, %s296
    %p300 = scmp.eq.s32.totalorder %s24, 0
    %p301 = por %p299, %p300
    %p302 = scmp.ne.s32.totalorder %s294, %s296
    %p303 = scmp.eq.s32.totalorder %s29, 1
    %p304 = por %p302, %p303
    %p305 = scmp.ne.s32.totalorder %s296, %s297
    %p306 = scmp.eq.s32.totalorder %s29, 0
    %p307 = por %p305, %p306
    %p308 = scmp.ne.s32.totalorder %s296, %s297
    %p309 = scmp.eq.s32.totalorder %s30, 1
    %p310 = por %p308, %p309
    %p312 = scmp.ne.s32.totalorder %s297, %s311
    %p313 = scmp.eq.s32.totalorder %s30, 0
    %p314 = por %p312, %p313
    %s316 = sadd.s32 %s315, 1
    %p319 = scmp.eq.s32.totalorder %s24, 1
    %p320 = scmp.ne.s32.totalorder %s315, %s317
    %p321 = scmp.eq.s32.totalorder %s24, 0
    %p322 = por %p320, %p321
    %p323 = scmp.ne.s32.totalorder %s315, %s317
    %p324 = scmp.eq.s32.totalorder %s29, 1
    %p325 = por %p323, %p324
    %p326 = scmp.ne.s32.totalorder %s317, %s318
    %p327 = scmp.eq.s32.totalorder %s29, 0
    %p328 = por %p326, %p327
    %p329 = scmp.ne.s32.totalorder %s317, %s318
    %p330 = scmp.eq.s32.totalorder %s30, 1
    %p331 = por %p329, %p330
    %p333 = scmp.ne.s32.totalorder %s318, %s332
    %p334 = scmp.eq.s32.totalorder %s30, 0
    %p335 = por %p333, %p334
    %s337 = sadd.s32 %s336, 1
    %p340 = scmp.eq.s32.totalorder %s24, 1
    %p341 = scmp.ne.s32.totalorder %s336, %s338
    %p342 = scmp.eq.s32.totalorder %s24, 0
    %p343 = por %p341, %p342
    %p344 = scmp.ne.s32.totalorder %s336, %s338
    %p345 = scmp.eq.s32.totalorder %s29, 1
    %p346 = por %p344, %p345
    %p347 = scmp.ne.s32.totalorder %s338, %s339
    %p348 = scmp.eq.s32.totalorder %s29, 0
    %p349 = por %p347, %p348
    %p350 = scmp.ne.s32.totalorder %s338, %s339
    %p351 = scmp.eq.s32.totalorder %s30, 1
    %p352 = por %p350, %p351
    %p354 = scmp.ne.s32.totalorder %s339, %s353
    %p355 = scmp.eq.s32.totalorder %s30, 0
    %p356 = por %p354, %p355
    %s358 = sadd.s32 %s357, 1
    %p361 = scmp.eq.s32.totalorder %s24, 1
    %p362 = scmp.ne.s32.totalorder %s357, %s359
    %p363 = scmp.eq.s32.totalorder %s24, 0
    %p364 = por %p362, %p363
    %p365 = scmp.ne.s32.totalorder %s357, %s359
    %p366 = scmp.eq.s32.totalorder %s29, 1
    %p367 = por %p365, %p366
    %p368 = scmp.ne.s32.totalorder %s359, %s360
    %p369 = scmp.eq.s32.totalorder %s29, 0
    %p370 = por %p368, %p369
    %p371 = scmp.ne.s32.totalorder %s359, %s360
    %p372 = scmp.eq.s32.totalorder %s30, 1
    %p373 = por %p371, %p372
    %p375 = scmp.ne.s32.totalorder %s360, %s374
    %p376 = scmp.eq.s32.totalorder %s30, 0
    %p377 = por %p375, %p376
    %s379 = sadd.s32 %s378, 1
    %p382 = scmp.eq.s32.totalorder %s24, 1
    %p383 = scmp.ne.s32.totalorder %s378, %s380
    %p384 = scmp.eq.s32.totalorder %s24, 0
    %p385 = por %p383, %p384
    %p386 = scmp.ne.s32.totalorder %s378, %s380
    %p387 = scmp.eq.s32.totalorder %s29, 1
    %p388 = por %p386, %p387
    %p389 = scmp.ne.s32.totalorder %s380, %s381
    %p390 = scmp.eq.s32.totalorder %s29, 0
    %p391 = por %p389, %p390
    %p392 = scmp.ne.s32.totalorder %s380, %s381
    %p393 = scmp.eq.s32.totalorder %s30, 1
    %p394 = por %p392, %p393
    %p396 = scmp.ne.s32.totalorder %s381, %s395
    %p397 = scmp.eq.s32.totalorder %s30, 0
    %p398 = por %p396, %p397
    %s400 = sadd.s32 %s399, 1
    %p403 = scmp.eq.s32.totalorder %s24, 1
    %p404 = scmp.ne.s32.totalorder %s399, %s401
    %p405 = scmp.eq.s32.totalorder %s24, 0
    %p406 = por %p404, %p405
    %p407 = scmp.ne.s32.totalorder %s399, %s401
    %p408 = scmp.eq.s32.totalorder %s29, 1
    %p409 = por %p407, %p408
    %p410 = scmp.ne.s32.totalorder %s401, %s402
    %p411 = scmp.eq.s32.totalorder %s29, 0
    %p412 = por %p410, %p411
    %p413 = scmp.ne.s32.totalorder %s401, %s402
    %p414 = scmp.eq.s32.totalorder %s30, 1
    %p415 = por %p413, %p414
    %p417 = scmp.ne.s32.totalorder %s402, %s416
    %p418 = scmp.eq.s32.totalorder %s30, 0
    %p419 = por %p417, %p418
    %s420 = ssub.s32 %s24, %s31
    %p421 = scmp.eq.s32.totalorder %s420, 0
    %s423 = sadd.s32 %s422, 1
    %s424 = scalar_select %p421, %s422, %s423
    %p427 = pneg %p421
    %p428 = scmp.eq.s32.totalorder %s24, 1
    %p429 = por %p427, %p428
    %p430 = scmp.ne.s32.totalorder %s422, %s425
    %p431 = scmp.eq.s32.totalorder %s24, 0
    %p432 = por %p430, %p431
    %p433 = scmp.ne.s32.totalorder %s422, %s425
    %p434 = scmp.eq.s32.totalorder %s29, 1
    %p435 = por %p433, %p434
    %p436 = scmp.ne.s32.totalorder %s425, %s426
    %p437 = scmp.eq.s32.totalorder %s29, 0
    %p438 = por %p436, %p437
    %p439 = scmp.ne.s32.totalorder %s425, %s426
    %p440 = scmp.eq.s32.totalorder %s30, 1
    %p441 = por %p439, %p440
    %p443 = scmp.ne.s32.totalorder %s426, %s442
    %p444 = scmp.eq.s32.totalorder %s30, 0
    %p445 = por %p443, %p444
    %p446 = scmp.le.s32.totalorder 1, %s24
    %p447 = scmp.lt.s32.totalorder %s24, 3
    %p448 = pnand %p446, %p447
    %p449 = pneg %p448
    // Predicated region
    $region9: #{protein_classifier_forward.4} parent=5 // pred_check
      _
    $region10: #{protein_classifier_forward.4} parent=5 // pred_check_branch
      %451 = sbr.rel (%p448) target = $region12
    $region11: #{protein_classifier_forward.4} parent=5 // pred_region
      %s452 = ssub.s32 %s24, 1
      // Predicated region
      $region13: #{protein_classifier_forward.4} parent=11 // pred_check
        %p453 = pneg %p97
      $region14: #{protein_classifier_forward.4} parent=11 // pred_check_branch
        %455 = sbr.rel (%p453) target = $region16
      $region15: #{protein_classifier_forward.4} parent=11 // pred_region
        _
      $region16: #{protein_classifier_forward.4} parent=11 // pred_fallthru
        _
      // Predicated region
      $region17: #{protein_classifier_forward.4} parent=11 // pred_check
        %p456 = pneg %p118
      $region18: #{protein_classifier_forward.4} parent=11 // pred_check_branch
        %458 = sbr.rel (%p456) target = $region20
      $region19: #{protein_classifier_forward.4} parent=11 // pred_region
        _
      $region20: #{protein_classifier_forward.4} parent=11 // pred_fallthru
        _
      // Predicated region
      $region21: #{protein_classifier_forward.4} parent=11 // pred_check
        %p459 = pneg %p139
      $region22: #{protein_classifier_forward.4} parent=11 // pred_check_branch
        %461 = sbr.rel (%p459) target = $region24
      $region23: #{protein_classifier_forward.4} parent=11 // pred_region
        _
      $region24: #{protein_classifier_forward.4} parent=11 // pred_fallthru
        _
      // Predicated region
      $region25: #{protein_classifier_forward.4} parent=11 // pred_check
        %p462 = pneg %p160
      $region26: #{protein_classifier_forward.4} parent=11 // pred_check_branch
        %464 = sbr.rel (%p462) target = $region28
      $region27: #{protein_classifier_forward.4} parent=11 // pred_region
        _
      $region28: #{protein_classifier_forward.4} parent=11 // pred_fallthru
        _
      // Predicated region
      $region29: #{protein_classifier_forward.4} parent=11 // pred_check
        %p465 = pneg %p181
      $region30: #{protein_classifier_forward.4} parent=11 // pred_check_branch
        %467 = sbr.rel (%p465) target = $region32
      $region31: #{protein_classifier_forward.4} parent=11 // pred_region
        _
      $region32: #{protein_classifier_forward.4} parent=11 // pred_fallthru
        _
      // Predicated region
      $region33: #{protein_classifier_forward.4} parent=11 // pred_check
        %p468 = pneg %p202
      $region34: #{protein_classifier_forward.4} parent=11 // pred_check_branch
        %470 = sbr.rel (%p468) target = $region36
      $region35: #{protein_classifier_forward.4} parent=11 // pred_region
        _
      $region36: #{protein_classifier_forward.4} parent=11 // pred_fallthru
        _
      // Predicated region
      $region37: #{protein_classifier_forward.4} parent=11 // pred_check
        %p471 = pneg %p223
      $region38: #{protein_classifier_forward.4} parent=11 // pred_check_branch
        %473 = sbr.rel (%p471) target = $region40
      $region39: #{protein_classifier_forward.4} parent=11 // pred_region
        _
      $region40: #{protein_classifier_forward.4} parent=11 // pred_fallthru
        _
      // Predicated region
      $region41: #{protein_classifier_forward.4} parent=11 // pred_check
        %p474 = pneg %p244
      $region42: #{protein_classifier_forward.4} parent=11 // pred_check_branch
        %476 = sbr.rel (%p474) target = $region44
      $region43: #{protein_classifier_forward.4} parent=11 // pred_region
        _
      $region44: #{protein_classifier_forward.4} parent=11 // pred_fallthru
        _
      // Predicated region
      $region45: #{protein_classifier_forward.4} parent=11 // pred_check
        %p477 = pneg %p265
      $region46: #{protein_classifier_forward.4} parent=11 // pred_check_branch
        %479 = sbr.rel (%p477) target = $region48
      $region47: #{protein_classifier_forward.4} parent=11 // pred_region
        _
      $region48: #{protein_classifier_forward.4} parent=11 // pred_fallthru
        _
      // Predicated region
      $region49: #{protein_classifier_forward.4} parent=11 // pred_check
        %p480 = pneg %p286
      $region50: #{protein_classifier_forward.4} parent=11 // pred_check_branch
        %482 = sbr.rel (%p480) target = $region52
      $region51: #{protein_classifier_forward.4} parent=11 // pred_region
        _
      $region52: #{protein_classifier_forward.4} parent=11 // pred_fallthru
        _
      // Predicated region
      $region53: #{protein_classifier_forward.4} parent=11 // pred_check
        %p483 = pneg %p307
      $region54: #{protein_classifier_forward.4} parent=11 // pred_check_branch
        %485 = sbr.rel (%p483) target = $region56
      $region55: #{protein_classifier_forward.4} parent=11 // pred_region
        _
      $region56: #{protein_classifier_forward.4} parent=11 // pred_fallthru
        _
      // Predicated region
      $region57: #{protein_classifier_forward.4} parent=11 // pred_check
        %p486 = pneg %p328
      $region58: #{protein_classifier_forward.4} parent=11 // pred_check_branch
        %488 = sbr.rel (%p486) target = $region60
      $region59: #{protein_classifier_forward.4} parent=11 // pred_region
        _
      $region60: #{protein_classifier_forward.4} parent=11 // pred_fallthru
        _
      // Predicated region
      $region61: #{protein_classifier_forward.4} parent=11 // pred_check
        %p489 = pneg %p349
      $region62: #{protein_classifier_forward.4} parent=11 // pred_check_branch
        %491 = sbr.rel (%p489) target = $region64
      $region63: #{protein_classifier_forward.4} parent=11 // pred_region
        _
      $region64: #{protein_classifier_forward.4} parent=11 // pred_fallthru
        _
      // Predicated region
      $region65: #{protein_classifier_forward.4} parent=11 // pred_check
        %p492 = pneg %p370
      $region66: #{protein_classifier_forward.4} parent=11 // pred_check_branch
        %494 = sbr.rel (%p492) target = $region68
      $region67: #{protein_classifier_forward.4} parent=11 // pred_region
        _
      $region68: #{protein_classifier_forward.4} parent=11 // pred_fallthru
        _
      // Predicated region
      $region69: #{protein_classifier_forward.4} parent=11 // pred_check
        %p495 = pneg %p391
      $region70: #{protein_classifier_forward.4} parent=11 // pred_check_branch
        %497 = sbr.rel (%p495) target = $region72
      $region71: #{protein_classifier_forward.4} parent=11 // pred_region
        _
      $region72: #{protein_classifier_forward.4} parent=11 // pred_fallthru
        _
      // Predicated region
      $region73: #{protein_classifier_forward.4} parent=11 // pred_check
        %p498 = pneg %p412
      $region74: #{protein_classifier_forward.4} parent=11 // pred_check_branch
        %500 = sbr.rel (%p498) target = $region76
      $region75: #{protein_classifier_forward.4} parent=11 // pred_region
        _
      $region76: #{protein_classifier_forward.4} parent=11 // pred_fallthru
        _
    $region12: #{protein_classifier_forward.4} parent=5 // pred_fallthru
      _
    %p501 = scmp.lt.s32.totalorder %s24, 2
    // Predicated region
    $region77: #{protein_classifier_forward.4} parent=5 // pred_check
      %p502 = pneg %p501
    $region78: #{protein_classifier_forward.4} parent=5 // pred_check_branch
      %504 = sbr.rel (%p502) target = $region80
    $region79: #{protein_classifier_forward.4} parent=5 // pred_region
      // Predicated region
      $region81: #{protein_classifier_forward.4} parent=79 // pred_check
        %p505 = pneg %p44
      $region82: #{protein_classifier_forward.4} parent=79 // pred_check_branch
        %507 = sbr.rel (%p505) target = $region84
      $region83: #{protein_classifier_forward.4} parent=79 // pred_region
        %p508 = scmp.lt.s32.totalorder %s24, 1
        %s509 = scalar_select %p508, %s24, 1
        %s510 = smul.addr %s509, 4
        %s511 = scalar_lea.vmem %s0, %s510
      $region84: #{protein_classifier_forward.4} parent=79 // pred_fallthru
        _
      // Predicated region
      $region85: #{protein_classifier_forward.4} parent=79 // pred_check
        %p512 = pneg %p70
      $region86: #{protein_classifier_forward.4} parent=79 // pred_check_branch
        %514 = sbr.rel (%p512) target = $region88
      $region87: #{protein_classifier_forward.4} parent=79 // pred_region
        %p515 = scmp.lt.s32.totalorder %s24, 1
        %s516 = scalar_select %p515, %s24, 1
        %s517 = scalar_lea.vmem %s1, %s516
      $region88: #{protein_classifier_forward.4} parent=79 // pred_fallthru
        _
    $region80: #{protein_classifier_forward.4} parent=5 // pred_fallthru
      _
    %p518 = scmp.le.s32.totalorder 1, %s24
    %p519 = scmp.lt.s32.totalorder %s24, 3
    %p520 = pnand %p518, %p519
    %p521 = pneg %p520
    // Predicated region
    $region89: #{protein_classifier_forward.4} parent=5 // pred_check
      _
    $region90: #{protein_classifier_forward.4} parent=5 // pred_check_branch
      %523 = sbr.rel (%p520) target = $region92
    $region91: #{protein_classifier_forward.4} parent=5 // pred_region
      %s524 = ssub.s32 %s24, 1
      %p525 = scmp.lt.s32.totalorder %s29, 1
      %s526 = scalar_select %p525, %s29, 1
      %s527 = smul.addr %s526, 4
      %s528 = scalar_lea.vmem %s0, %s527
      %p529 = pneg %p50
      %p530 = pneg %p47
      %p531 = scmp.lt.s32.totalorder %s29, 1
      %s532 = scalar_select %p531, %s29, 1
      %s533 = scalar_lea.vmem %s1, %s532
      %p534 = pneg %p76
      %p535 = pneg %p73
      %p536 = pneg %p97
      %p537 = pneg %p94
      %p538 = pneg %p118
      %p539 = pneg %p115
      %p540 = pneg %p139
      %p541 = pneg %p136
      %p542 = pneg %p160
      %p543 = pneg %p157
      %p544 = pneg %p181
      %p545 = pneg %p178
      %p546 = pneg %p202
      %p547 = pneg %p199
      %p548 = pneg %p223
      %p549 = pneg %p220
      %p550 = pneg %p244
      %p551 = pneg %p241
      %p552 = pneg %p265
      %p553 = pneg %p262
      %p554 = pneg %p286
      %p555 = pneg %p283
      %p556 = pneg %p307
      %p557 = pneg %p304
      %p558 = pneg %p328
      %p559 = pneg %p325
      %p560 = pneg %p349
      %p561 = pneg %p346
      %p562 = pneg %p370
      %p563 = pneg %p367
      %p564 = pneg %p391
      %p565 = pneg %p388
      %p566 = pneg %p412
      %p567 = pneg %p409
      %p568 = pneg %p438
      %p569 = pneg %p435
      %p570 = scmp.lt.s32.totalorder %s29, 1
      %s571 = scalar_select %p570, %s29, 1
      %s572 = smul.addr %s571, 4
      %s573 = scalar_lea.vmem %s18, %s572
      %p574 = scmp.lt.s32.totalorder %s29, 1
      %s575 = scalar_select %p574, %s29, 1
      %s576 = smul.addr %s575, 4
      %s577 = scalar_lea.vmem %s0, %s576
      %p578 = scmp.lt.s32.totalorder %s29, 1
      %s579 = scalar_select %p578, %s29, 1
      %s580 = scalar_lea.vmem %s1, %s579
      %p581 = scmp.lt.s32.totalorder %s29, 1
      %s582 = scalar_select %p581, %s29, 1
      %s583 = smul.addr %s582, 4
      %s584 = scalar_lea.vmem %s18, %s583
      %v586 = vld [vmem:[%s577] sm:$0xf]
      %v587 = vunpack.c.l.bf16 %v586
      %v588 = vld [vmem:[%s580] sm:$0x1]
      %v590 = vlaneseq
      %v591 = vshrl.u32 %v590, 7
      %v592 = vsub.s32 0, %v591
      %v593 = vrot.slane %v588, %v592
      loop: start=0, step=1, limit=2
      $region93: #{protein_classifier_forward.4} parent=91 // loop_pre_header
        _
      $region94: #{protein_classifier_forward.4} parent=91 // loop_header
        %s596 = sphi 0, %s600
        %p597 = scmp.ge.s32.totalorder %s596, 2
        %v601 = vphi 0.0, %v1028
      $region95: #{protein_classifier_forward.4} parent=91 // loop_header_branch
        %599 = sbr.rel (%p597) target = $region99
      $region96: #{protein_classifier_forward.4} parent=91 // loop_body
        %s602 = smul.u32 %s596, 8
        %s603 = smul.addr %s602, 4
        %s604 = scalar_lea.vmem %s2, %s603
        %v605 = vld [vmem:[%s604] sm:$0xf]
        %v606 = vld [vmem:[%s604 + $0x4] sm:$0xf]
        %v607 = vld [vmem:[%s604 + $0x8] sm:$0xf]
        %v608 = vld [vmem:[%s604 + $0xc] sm:$0xf]
        %v609 = vld [vmem:[%s604 + $0x10] sm:$0xf]
        %v610 = vld [vmem:[%s604 + $0x14] sm:$0xf]
        %v611 = vld [vmem:[%s604 + $0x18] sm:$0xf]
        %v612 = vld [vmem:[%s604 + $0x1c] sm:$0xf]
        %s613 = scalar_lea.vmem %s3, %s596
        %v614 = vld [vmem:[%s613] sm:$0x1]
        %v616 = vlaneseq
        %v617 = vshrl.u32 %v616, 7
        %v618 = vsub.s32 0, %v617
        %v619 = vrot.slane %v614, %v618
        %v629 = vunpack.c.l.b16 %v605
        %v630 = vunpack.c.l.b16 %v606
        %v631 = vunpack.c.l.b16 %v607
        %v632 = vunpack.c.l.b16 %v608
        %v633 = vunpack.c.l.b16 %v609
        %v634 = vunpack.c.l.b16 %v610
        %v635 = vunpack.c.l.b16 %v611
        %v636 = vunpack.c.l.b16 %v612
        %v637 = vpack.c.b16 %v630, %v629
        %v638 = vpack.c.b16 %v632, %v631
        %v639 = vpack.c.b16 %v634, %v633
        %v640 = vpack.c.b16 %v636, %v635
        %vm645 = vcmask 523264
        %v647 = vsel %vm645, %v586, 0
        %649 = vmatprep.subr.bf16.mxu0 0
        %650 = vmatpush1.bf16.msra.mxu0 %v637
        %651 = vmatprep.subr.bf16.mxu0 0
        %652 = vmatpush1.bf16.msra.mxu0 %v638
        %653 = vmatprep.subr.bf16.mxu0 0
        %654 = vmatpush1.bf16.msra.mxu0 %v639
        %655 = vmatprep.subr.bf16.mxu0 0
        %656 = vmatpush1.bf16.msra.mxu0 %v640
        %657 = vmatprep.subr.bf16.mxu0 0
        %658 = vmatpush1.bf16.msra.mxu0 0
        %659 = vmatprep.subr.bf16.mxu0 0
        %660 = vmatpush1.bf16.msra.mxu0 0
        %661 = vmatprep.subr.bf16.mxu0 0
        %662 = vmatpush1.bf16.msra.mxu0 0
        %663 = vmatprep.subr.bf16.mxu0 0
        %664 = vmatpush1.bf16.msra.mxu0 0
        %665 = vmatprep.subr.bf16.mxu0 0
        %666 = vmatpush1.bf16.msra.mxu0 0
        %667 = vmatprep.subr.bf16.mxu0 0
        %668 = vmatpush1.bf16.msra.mxu0 0
        %669 = vmatprep.subr.bf16.mxu0 0
        %670 = vmatpush1.bf16.msra.mxu0 0
        %671 = vmatprep.subr.bf16.mxu0 0
        %672 = vmatpush1.bf16.msra.mxu0 0
        %673 = vmatprep.subr.bf16.mxu0 0
        %674 = vmatpush1.bf16.msra.mxu0 0
        %675 = vmatprep.subr.bf16.mxu0 0
        %676 = vmatpush1.bf16.msra.mxu0 0
        %677 = vmatprep.subr.bf16.mxu0 0
        %678 = vmatpush1.bf16.msra.mxu0 0
        %679 = vmatprep.subr.bf16.mxu0 0
        %680 = vmatpush1.bf16.msra.mxu0 0
        %681 = vmatprep.mubr.bf16.mxu0 0
        %682 = vmatmul.mubr.bf16.gmra.mrb[0].mxu0 %v647
        %v683 = vpop.f32.mrb[0].mxu0
        %v684 = vadd.f32 %v619, %v683
        %v685 = vpop.f32.mrb[0].mxu0
        %v686 = vpop.f32.mrb[0].mxu0
        %v687 = vpop.f32.mrb[0].mxu0
        %688 = vdwg.mxu0
        %s689 = smul.addr %s602, 4
        %s690 = scalar_lea.vmem %s4, %s689
        %v691 = vld [vmem:[%s690] sm:$0xf]
        %v692 = vld [vmem:[%s690 + $0x4] sm:$0xf]
        %v693 = vld [vmem:[%s690 + $0x8] sm:$0xf]
        %v694 = vld [vmem:[%s690 + $0xc] sm:$0xf]
        %v695 = vld [vmem:[%s690 + $0x10] sm:$0xf]
        %v696 = vld [vmem:[%s690 + $0x14] sm:$0xf]
        %v697 = vld [vmem:[%s690 + $0x18] sm:$0xf]
        %v698 = vld [vmem:[%s690 + $0x1c] sm:$0xf]
        %s699 = scalar_lea.vmem %s5, %s596
        %v700 = vld [vmem:[%s699] sm:$0x1]
        %v702 = vlaneseq
        %v703 = vshrl.u32 %v702, 7
        %v704 = vsub.s32 0, %v703
        %v705 = vrot.slane %v700, %v704
        %v715 = vunpack.c.l.b16 %v691
        %v716 = vunpack.c.l.b16 %v692
        %v717 = vunpack.c.l.b16 %v693
        %v718 = vunpack.c.l.b16 %v694
        %v719 = vunpack.c.l.b16 %v695
        %v720 = vunpack.c.l.b16 %v696
        %v721 = vunpack.c.l.b16 %v697
        %v722 = vunpack.c.l.b16 %v698
        %v723 = vpack.c.b16 %v716, %v715
        %v724 = vpack.c.b16 %v718, %v717
        %v725 = vpack.c.b16 %v720, %v719
        %v726 = vpack.c.b16 %v722, %v721
        %731 = vmatprep.subr.bf16.mxu0 0
        %732 = vmatpush1.bf16.msra.mxu0 %v723
        %733 = vmatprep.subr.bf16.mxu0 0
        %734 = vmatpush1.bf16.msra.mxu0 %v724
        %735 = vmatprep.subr.bf16.mxu0 0
        %736 = vmatpush1.bf16.msra.mxu0 %v725
        %737 = vmatprep.subr.bf16.mxu0 0
        %738 = vmatpush1.bf16.msra.mxu0 %v726
        %739 = vmatprep.subr.bf16.mxu0 0
        %740 = vmatpush1.bf16.msra.mxu0 0
        %741 = vmatprep.subr.bf16.mxu0 0
        %742 = vmatpush1.bf16.msra.mxu0 0
        %743 = vmatprep.subr.bf16.mxu0 0
        %744 = vmatpush1.bf16.msra.mxu0 0
        %745 = vmatprep.subr.bf16.mxu0 0
        %746 = vmatpush1.bf16.msra.mxu0 0
        %747 = vmatprep.subr.bf16.mxu0 0
        %748 = vmatpush1.bf16.msra.mxu0 0
        %749 = vmatprep.subr.bf16.mxu0 0
        %750 = vmatpush1.bf16.msra.mxu0 0
        %751 = vmatprep.subr.bf16.mxu0 0
        %752 = vmatpush1.bf16.msra.mxu0 0
        %753 = vmatprep.subr.bf16.mxu0 0
        %754 = vmatpush1.bf16.msra.mxu0 0
        %755 = vmatprep.subr.bf16.mxu0 0
        %756 = vmatpush1.bf16.msra.mxu0 0
        %757 = vmatprep.subr.bf16.mxu0 0
        %758 = vmatpush1.bf16.msra.mxu0 0
        %759 = vmatprep.subr.bf16.mxu0 0
        %760 = vmatpush1.bf16.msra.mxu0 0
        %761 = vmatprep.subr.bf16.mxu0 0
        %762 = vmatpush1.bf16.msra.mxu0 0
        %763 = vmatprep.mubr.bf16.mxu0 0
        %764 = vmatmul.mubr.bf16.gmra.mrb[0].mxu0 %v647
        %v765 = vpop.f32.mrb[0].mxu0
        %v766 = vadd.f32 %v705, %v765
        %v767 = vpop.f32.mrb[0].mxu0
        %v768 = vpop.f32.mrb[0].mxu0
        %v769 = vpop.f32.mrb[0].mxu0
        %770 = vdwg.mxu0
        %s771 = smul.addr %s602, 4
        %s772 = scalar_lea.vmem %s6, %s771
        %v773 = vld [vmem:[%s772] sm:$0xf]
        %v774 = vld [vmem:[%s772 + $0x4] sm:$0xf]
        %v775 = vld [vmem:[%s772 + $0x8] sm:$0xf]
        %v776 = vld [vmem:[%s772 + $0xc] sm:$0xf]
        %v777 = vld [vmem:[%s772 + $0x10] sm:$0xf]
        %v778 = vld [vmem:[%s772 + $0x14] sm:$0xf]
        %v779 = vld [vmem:[%s772 + $0x18] sm:$0xf]
        %v780 = vld [vmem:[%s772 + $0x1c] sm:$0xf]
        %s781 = scalar_lea.vmem %s7, %s596
        %v782 = vld [vmem:[%s781] sm:$0x1]
        %v784 = vlaneseq
        %v785 = vshrl.u32 %v784, 7
        %v786 = vsub.s32 0, %v785
        %v787 = vrot.slane %v782, %v786
        %v797 = vunpack.c.l.b16 %v773
        %v798 = vunpack.c.l.b16 %v774
        %v799 = vunpack.c.l.b16 %v775
        %v800 = vunpack.c.l.b16 %v776
        %v801 = vunpack.c.l.b16 %v777
        %v802 = vunpack.c.l.b16 %v778
        %v803 = vunpack.c.l.b16 %v779
        %v804 = vunpack.c.l.b16 %v780
        %v805 = vpack.c.b16 %v798, %v797
        %v806 = vpack.c.b16 %v800, %v799
        %v807 = vpack.c.b16 %v802, %v801
        %v808 = vpack.c.b16 %v804, %v803
        %813 = vmatprep.subr.bf16.mxu0 0
        %814 = vmatpush1.bf16.msra.mxu0 %v805
        %815 = vmatprep.subr.bf16.mxu0 0
        %816 = vmatpush1.bf16.msra.mxu0 %v806
        %817 = vmatprep.subr.bf16.mxu0 0
        %818 = vmatpush1.bf16.msra.mxu0 %v807
        %819 = vmatprep.subr.bf16.mxu0 0
        %820 = vmatpush1.bf16.msra.mxu0 %v808
        %821 = vmatprep.subr.bf16.mxu0 0
        %822 = vmatpush1.bf16.msra.mxu0 0
        %823 = vmatprep.subr.bf16.mxu0 0
        %824 = vmatpush1.bf16.msra.mxu0 0
        %825 = vmatprep.subr.bf16.mxu0 0
        %826 = vmatpush1.bf16.msra.mxu0 0
        %827 = vmatprep.subr.bf16.mxu0 0
        %828 = vmatpush1.bf16.msra.mxu0 0
        %829 = vmatprep.subr.bf16.mxu0 0
        %830 = vmatpush1.bf16.msra.mxu0 0
        %831 = vmatprep.subr.bf16.mxu0 0
        %832 = vmatpush1.bf16.msra.mxu0 0
        %833 = vmatprep.subr.bf16.mxu0 0
        %834 = vmatpush1.bf16.msra.mxu0 0
        %835 = vmatprep.subr.bf16.mxu0 0
        %836 = vmatpush1.bf16.msra.mxu0 0
        %837 = vmatprep.subr.bf16.mxu0 0
        %838 = vmatpush1.bf16.msra.mxu0 0
        %839 = vmatprep.subr.bf16.mxu0 0
        %840 = vmatpush1.bf16.msra.mxu0 0
        %841 = vmatprep.subr.bf16.mxu0 0
        %842 = vmatpush1.bf16.msra.mxu0 0
        %843 = vmatprep.subr.bf16.mxu0 0
        %844 = vmatpush1.bf16.msra.mxu0 0
        %845 = vmatprep.mubr.bf16.mxu0 0
        %846 = vmatmul.mubr.bf16.gmra.mrb[0].mxu0 %v647
        %v847 = vpop.f32.mrb[0].mxu0
        %v848 = vadd.f32 %v787, %v847
        %v849 = vpop.f32.mrb[0].mxu0
        %v850 = vpop.f32.mrb[0].mxu0
        %v851 = vpop.f32.mrb[0].mxu0
        %852 = vdwg.mxu0
        %v853 = vpack.c.bf16 %v684, %v684
        %v854 = vpack.c.bf16 %v766, %v766
        %vm855 = vcmask 261120
        %v857 = vsel %vm855, %v853, 0
        %v860 = vsel %vm855, %v854, 0
        %862 = vmatprep.subr.bf16.mxu0 0
        %863 = vmatpush1.bf16.xpose.msra.mxu0 %v860
        %864 = vmatprep.subr.bf16.mxu0 0
        %865 = vmatpush1.bf16.xpose.msra.mxu0 0
        %866 = vmatprep.subr.bf16.mxu0 0
        %867 = vmatpush1.bf16.xpose.msra.mxu0 0
        %868 = vmatprep.subr.bf16.mxu0 0
        %869 = vmatpush1.bf16.xpose.msra.mxu0 0
        %870 = vmatprep.subr.bf16.mxu0 0
        %871 = vmatpush1.bf16.xpose.msra.mxu0 0
        %872 = vmatprep.subr.bf16.mxu0 0
        %873 = vmatpush1.bf16.xpose.msra.mxu0 0
        %874 = vmatprep.subr.bf16.mxu0 0
        %875 = vmatpush1.bf16.xpose.msra.mxu0 0
        %876 = vmatprep.subr.bf16.mxu0 0
        %877 = vmatpush1.bf16.xpose.msra.mxu0 0
        %878 = vmatprep.subr.bf16.mxu0 0
        %879 = vmatpush1.bf16.xpose.msra.mxu0 0
        %880 = vmatprep.subr.bf16.mxu0 0
        %881 = vmatpush1.bf16.xpose.msra.mxu0 0
        %882 = vmatprep.subr.bf16.mxu0 0
        %883 = vmatpush1.bf16.xpose.msra.mxu0 0
        %884 = vmatprep.subr.bf16.mxu0 0
        %885 = vmatpush1.bf16.xpose.msra.mxu0 0
        %886 = vmatprep.subr.bf16.mxu0 0
        %887 = vmatpush1.bf16.xpose.msra.mxu0 0
        %888 = vmatprep.subr.bf16.mxu0 0
        %889 = vmatpush1.bf16.xpose.msra.mxu0 0
        %890 = vmatprep.subr.bf16.mxu0 0
        %891 = vmatpush1.bf16.xpose.msra.mxu0 0
        %892 = vmatprep.subr.bf16.mxu0 0
        %893 = vmatpush1.bf16.xpose.msra.mxu0 0
        %894 = vmatprep.mubr.bf16.mxu0 0
        %895 = vmatmul.mubr.bf16.gmra.mrb[0].mxu0 %v857
        %v896 = vpop.f32.mrb[0].mxu0
        %v897 = vadd.f32 0.0, %v896
        %v898 = vpop.f32.mrb[0].mxu0
        %v899 = vpop.f32.mrb[0].mxu0
        %v900 = vpop.f32.mrb[0].mxu0
        %901 = vdwg.mxu0
        %v902 = vmul.f32 %v897, 0.17677669
        %v903 = vadd.f32 %v902, %v593
        %vm904 = vcmask 64512
        %v905 = vsel %vm904, %v903, -inf
        %906 = vmax.xlane.f32.xlu0 %v905
        %v907 = vpop.xlane.xlu0 %906
        %v908 = vsub.f32 %v903, %v907
        %v909 = vmul.f32 %v908, 1.442695
        %v910 = vpow.pop %v909
        %v911 = vsel %vm904, %v910, 0.0
        %912 = vadd.xlane.f32.xlu0 %v911
        %v913 = vpop.xlane.xlu0 %912
        %v914 = vrcp.pop %v913
        %v915 = vmul.f32 %v910, %v914
        %v916 = vpack.c.bf16 %v915, %v915
        %v917 = vpack.c.bf16 %v848, %v848
        %v919 = vsel %vm904, %v916, 0
        %vm921 = vcmask 1043456
        %v923 = vsel %vm921, %v917, 0
        %925 = vmatprep.subr.bf16.mxu0 0
        %926 = vmatpush1.bf16.msra.mxu0 %v923
        %927 = vmatprep.subr.bf16.mxu0 0
        %928 = vmatpush1.bf16.msra.mxu0 0
        %929 = vmatprep.subr.bf16.mxu0 0
        %930 = vmatpush1.bf16.msra.mxu0 0
        %931 = vmatprep.subr.bf16.mxu0 0
        %932 = vmatpush1.bf16.msra.mxu0 0
        %933 = vmatprep.subr.bf16.mxu0 0
        %934 = vmatpush1.bf16.msra.mxu0 0
        %935 = vmatprep.subr.bf16.mxu0 0
        %936 = vmatpush1.bf16.msra.mxu0 0
        %937 = vmatprep.subr.bf16.mxu0 0
        %938 = vmatpush1.bf16.msra.mxu0 0
        %939 = vmatprep.subr.bf16.mxu0 0
        %940 = vmatpush1.bf16.msra.mxu0 0
        %941 = vmatprep.subr.bf16.mxu0 0
        %942 = vmatpush1.bf16.msra.mxu0 0
        %943 = vmatprep.subr.bf16.mxu0 0
        %944 = vmatpush1.bf16.msra.mxu0 0
        %945 = vmatprep.subr.bf16.mxu0 0
        %946 = vmatpush1.bf16.msra.mxu0 0
        %947 = vmatprep.subr.bf16.mxu0 0
        %948 = vmatpush1.bf16.msra.mxu0 0
        %949 = vmatprep.subr.bf16.mxu0 0
        %950 = vmatpush1.bf16.msra.mxu0 0
        %951 = vmatprep.subr.bf16.mxu0 0
        %952 = vmatpush1.bf16.msra.mxu0 0
        %953 = vmatprep.subr.bf16.mxu0 0
        %954 = vmatpush1.bf16.msra.mxu0 0
        %955 = vmatprep.subr.bf16.mxu0 0
        %956 = vmatpush1.bf16.msra.mxu0 0
        %957 = vmatprep.mubr.bf16.mxu0 0
        %958 = vmatmul.mubr.bf16.gmra.mrb[0].mxu0 %v919
        %v959 = vpop.f32.mrb[0].mxu0
        %v960 = vadd.f32 0.0, %v959
        %v961 = vpop.f32.mrb[0].mxu0
        %v962 = vpop.f32.mrb[0].mxu0
        %v963 = vpop.f32.mrb[0].mxu0
        %964 = vdwg.mxu0
        %v965 = vpack.c.bf16 %v960, %v960
        %s966 = smul.u32 %s596, 4
        %s967 = smul.addr %s966, 4
        %s968 = scalar_lea.vmem %s8, %s967
        %v969 = vld [vmem:[%s968] sm:$0xf]
        %v970 = vld [vmem:[%s968 + $0x4] sm:$0xf]
        %v971 = vld [vmem:[%s968 + $0x8] sm:$0xf]
        %v972 = vld [vmem:[%s968 + $0xc] sm:$0xf]
        %v977 = vunpack.c.l.b16 %v969
        %v978 = vunpack.c.l.b16 %v970
        %v979 = vunpack.c.l.b16 %v971
        %v980 = vunpack.c.l.b16 %v972
        %v981 = vpack.c.b16 %v978, %v977
        %v982 = vpack.c.b16 %v980, %v979
        %v986 = vsel %vm855, %v965, 0
        %988 = vmatprep.subr.bf16.mxu0 0
        %989 = vmatpush1.bf16.msra.mxu0 %v981
        %990 = vmatprep.subr.bf16.mxu0 0
        %991 = vmatpush1.bf16.msra.mxu0 %v982
        %992 = vmatprep.subr.bf16.mxu0 0
        %993 = vmatpush1.bf16.msra.mxu0 0
        %994 = vmatprep.subr.bf16.mxu0 0
        %995 = vmatpush1.bf16.msra.mxu0 0
        %996 = vmatprep.subr.bf16.mxu0 0
        %997 = vmatpush1.bf16.msra.mxu0 0
        %998 = vmatprep.subr.bf16.mxu0 0
        %999 = vmatpush1.bf16.msra.mxu0 0
        %1000 = vmatprep.subr.bf16.mxu0 0
        %1001 = vmatpush1.bf16.msra.mxu0 0
        %1002 = vmatprep.subr.bf16.mxu0 0
        %1003 = vmatpush1.bf16.msra.mxu0 0
        %1004 = vmatprep.subr.bf16.mxu0 0
        %1005 = vmatpush1.bf16.msra.mxu0 0
        %1006 = vmatprep.subr.bf16.mxu0 0
        %1007 = vmatpush1.bf16.msra.mxu0 0
        %1008 = vmatprep.subr.bf16.mxu0 0
        %1009 = vmatpush1.bf16.msra.mxu0 0
        %1010 = vmatprep.subr.bf16.mxu0 0
        %1011 = vmatpush1.bf16.msra.mxu0 0
        %1012 = vmatprep.subr.bf16.mxu0 0
        %1013 = vmatpush1.bf16.msra.mxu0 0
        %1014 = vmatprep.subr.bf16.mxu0 0
        %1015 = vmatpush1.bf16.msra.mxu0 0
        %1016 = vmatprep.subr.bf16.mxu0 0
        %1017 = vmatpush1.bf16.msra.mxu0 0
        %1018 = vmatprep.subr.bf16.mxu0 0
        %1019 = vmatpush1.bf16.msra.mxu0 0
        %1020 = vmatprep.mubr.bf16.mxu0 0
        %1021 = vmatmul.mubr.bf16.gmra.mrb[0].mxu0 %v986
        %v1022 = vpop.f32.mrb[0].mxu0
        %v1023 = vadd.f32 0.0, %v1022
        %v1024 = vpop.f32.mrb[0].mxu0
        %v1025 = vpop.f32.mrb[0].mxu0
        %v1026 = vpop.f32.mrb[0].mxu0
        %1027 = vdwg.mxu0
        %v1028 = vadd.f32 %v601, %v1023
      $region97: #{protein_classifier_forward.4} parent=91 // loop_footer
        %s600 = sadd.s32 1, %s596
      $region98: #{protein_classifier_forward.4} parent=91 // loop_footer_branch
        %595 = sbr.rel target = $region94
      $region99: #{protein_classifier_forward.4} parent=91 // loop_exit
        _
      %v1029 = vld [vmem:[%s9] sm:$0x1]
      %v1031 = vlaneseq
      %v1032 = vshrl.u32 %v1031, 7
      %v1033 = vsub.s32 0, %v1032
      %v1034 = vrot.slane %v1029, %v1033
      %v1036 = vadd.f32 %v601, %v1034
      %v1037 = vadd.f32 %v1036, %v587
      %v1038 = vld [vmem:[%s10] sm:$0x1]
      %v1039 = vld [vmem:[%s11] sm:$0x1]
      %vm1040 = vcmask 523264
      %v1041 = vsel %vm1040, %v1037, 0.0
      %1042 = vadd.xlane.f32.xlu0 %v1041
      %v1043 = vpop.xlane.xlu0 %1042
      %v1044 = vrcp.pop 64.0
      %v1045 = vmul.f32 %v1043, %v1044
      %v1046 = vsub.f32 %v1037, %v1045
      %v1047 = vmul.f32 %v1046, %v1046
      %v1048 = vsel %vm1040, %v1047, 0.0
      %1049 = vadd.xlane.f32.xlu0 %v1048
      %v1050 = vpop.xlane.xlu0 %1049
      %v1051 = vmul.f32 %v1050, %v1044
      %v1052 = vadd.f32 %v1051, 1e-12
      %v1053 = vrsqrt.pop %v1052
      %v1054 = vmul.f32 %v1046, %v1053
      %v1056 = vlaneseq
      %v1057 = vshrl.u32 %v1056, 7
      %v1058 = vsub.s32 0, %v1057
      %v1059 = vrot.slane %v1038, %v1058
      %v1061 = vmul.f32 %v1054, %v1059
      %v1063 = vlaneseq
      %v1064 = vshrl.u32 %v1063, 7
      %v1065 = vsub.s32 0, %v1064
      %v1066 = vrot.slane %v1039, %v1065
      %v1068 = vadd.f32 %v1061, %v1066
      %v1069 = vpack.c.bf16 %v1068, %v1068
      loop: start=0, step=1, limit=2
      $region100: #{protein_classifier_forward.4} parent=91 // loop_pre_header
        _
      $region101: #{protein_classifier_forward.4} parent=91 // loop_header
        %s1071 = sphi 0, %s1075
        %p1072 = scmp.ge.s32.totalorder %s1071, 2
        %v1076 = vphi 0.0, %v1283
      $region102: #{protein_classifier_forward.4} parent=91 // loop_header_branch
        %1074 = sbr.rel (%p1072) target = $region106
      $region103: #{protein_classifier_forward.4} parent=91 // loop_body
        %s1077 = smul.u32 %s1071, 128
        %s1078 = sshra.s32 %s1077, 7
        %s1079 = sand.u32 %s1077, 127
        %s1080 = smul.addr %s1078, 4
        %s1081 = scalar_lea.vmem %s12, %s1080
        %v1082 = vld [vmem:[%s1081] sm:$0xf]
        %v1083 = vld [vmem:[%s1081 + $0x8] sm:$0xf]
        %v1084 = vld [vmem:[%s1081 + $0x10] sm:$0xf]
        %v1085 = vld [vmem:[%s1081 + $0x18] sm:$0xf]
        %v1086 = vld [vmem:[%s1081 + $0x20] sm:$0xf]
        %v1087 = vld [vmem:[%s1081 + $0x28] sm:$0xf]
        %v1088 = vld [vmem:[%s1081 + $0x30] sm:$0xf]
        %v1089 = vld [vmem:[%s1081 + $0x38] sm:$0xf]
        %s1090 = scalar_lea.vmem %s13, %s1078
        %v1091 = vld [vmem:[%s1090] sm:$0x1]
        %v1093 = vlaneseq
        %v1094 = vshrl.u32 %v1093, 7
        %v1095 = vsub.s32 0, %v1094
        %v1096 = vrot.slane %v1091, %v1095
        %v1106 = vunpack.c.l.b16 %v1082
        %v1107 = vunpack.c.l.b16 %v1083
        %v1108 = vunpack.c.l.b16 %v1084
        %v1109 = vunpack.c.l.b16 %v1085
        %v1110 = vunpack.c.l.b16 %v1086
        %v1111 = vunpack.c.l.b16 %v1087
        %v1112 = vunpack.c.l.b16 %v1088
        %v1113 = vunpack.c.l.b16 %v1089
        %v1114 = vpack.c.b16 %v1107, %v1106
        %v1115 = vpack.c.b16 %v1109, %v1108
        %v1116 = vpack.c.b16 %v1111, %v1110
        %v1117 = vpack.c.b16 %v1113, %v1112
        %v1123 = vsel %vm1040, %v1069, 0
        %1125 = vmatprep.subr.bf16.mxu0 0
        %1126 = vmatpush1.bf16.msra.mxu0 %v1114
        %1127 = vmatprep.subr.bf16.mxu0 0
        %1128 = vmatpush1.bf16.msra.mxu0 %v1115
        %1129 = vmatprep.subr.bf16.mxu0 0
        %1130 = vmatpush1.bf16.msra.mxu0 %v1116
        %1131 = vmatprep.subr.bf16.mxu0 0
        %1132 = vmatpush1.bf16.msra.mxu0 %v1117
        %1133 = vmatprep.subr.bf16.mxu0 0
        %1134 = vmatpush1.bf16.msra.mxu0 0
        %1135 = vmatprep.subr.bf16.mxu0 0
        %1136 = vmatpush1.bf16.msra.mxu0 0
        %1137 = vmatprep.subr.bf16.mxu0 0
        %1138 = vmatpush1.bf16.msra.mxu0 0
        %1139 = vmatprep.subr.bf16.mxu0 0
        %1140 = vmatpush1.bf16.msra.mxu0 0
        %1141 = vmatprep.subr.bf16.mxu0 0
        %1142 = vmatpush1.bf16.msra.mxu0 0
        %1143 = vmatprep.subr.bf16.mxu0 0
        %1144 = vmatpush1.bf16.msra.mxu0 0
        %1145 = vmatprep.subr.bf16.mxu0 0
        %1146 = vmatpush1.bf16.msra.mxu0 0
        %1147 = vmatprep.subr.bf16.mxu0 0
        %1148 = vmatpush1.bf16.msra.mxu0 0
        %1149 = vmatprep.subr.bf16.mxu0 0
        %1150 = vmatpush1.bf16.msra.mxu0 0
        %1151 = vmatprep.subr.bf16.mxu0 0
        %1152 = vmatpush1.bf16.msra.mxu0 0
        %1153 = vmatprep.subr.bf16.mxu0 0
        %1154 = vmatpush1.bf16.msra.mxu0 0
        %1155 = vmatprep.subr.bf16.mxu0 0
        %1156 = vmatpush1.bf16.msra.mxu0 0
        %1157 = vmatprep.mubr.bf16.mxu0 0
        %1158 = vmatmul.mubr.bf16.gmra.mrb[0].mxu0 %v1123
        %v1159 = vpop.f32.mrb[0].mxu0
        %v1160 = vadd.f32 %v1096, %v1159
        %v1161 = vpop.f32.mrb[0].mxu0
        %v1162 = vpop.f32.mrb[0].mxu0
        %v1163 = vpop.f32.mrb[0].mxu0
        %1164 = vdwg.mxu0
        %v1165 = vmul.f32 %v1160, 0.5
        %v1166 = vmul.f32 %v1160, 0.044715
        %v1167 = vmul.f32 %v1166, %v1160
        %v1168 = vmul.f32 %v1167, %v1160
        %v1169 = vadd.f32 %v1160, %v1168
        %v1170 = vmul.f32 %v1169, 0.7978846
        %v1171 = vtanh.pop %v1170
        %v1172 = vadd.f32 %v1171, 1.0
        %v1173 = vmul.f32 %v1165, %v1172
        %v1174 = vpack.c.bf16 %v1173, %v1173
        %s1175 = sshra.s32 %s1077, 3
        %s1176 = sand.u32 %s1077, 7
        %s1177 = smul.addr %s1175, 4
        %s1178 = scalar_lea.vmem %s14, %s1177
        %v1179 = vld [vmem:[%s1178] sm:$0xf]
        %v1180 = vld [vmem:[%s1178 + $0x4] sm:$0xf]
        %v1181 = vld [vmem:[%s1178 + $0x8] sm:$0xf]
        %v1182 = vld [vmem:[%s1178 + $0xc] sm:$0xf]
        %v1183 = vld [vmem:[%s1178 + $0x10] sm:$0xf]
        %v1184 = vld [vmem:[%s1178 + $0x14] sm:$0xf]
        %v1185 = vld [vmem:[%s1178 + $0x18] sm:$0xf]
        %v1186 = vld [vmem:[%s1178 + $0x1c] sm:$0xf]
        %v1187 = vld [vmem:[%s1178 + $0x20] sm:$0xf]
        %v1188 = vld [vmem:[%s1178 + $0x24] sm:$0xf]
        %v1189 = vld [vmem:[%s1178 + $0x28] sm:$0xf]
        %v1190 = vld [vmem:[%s1178 + $0x2c] sm:$0xf]
        %v1191 = vld [vmem:[%s1178 + $0x30] sm:$0xf]
        %v1192 = vld [vmem:[%s1178 + $0x34] sm:$0xf]
        %v1193 = vld [vmem:[%s1178 + $0x38] sm:$0xf]
        %v1194 = vld [vmem:[%s1178 + $0x3c] sm:$0xf]
        %v1211 = vunpack.c.l.b16 %v1179
        %v1212 = vunpack.c.l.b16 %v1180
        %v1213 = vunpack.c.l.b16 %v1181
        %v1214 = vunpack.c.l.b16 %v1182
        %v1215 = vunpack.c.l.b16 %v1183
        %v1216 = vunpack.c.l.b16 %v1184
        %v1217 = vunpack.c.l.b16 %v1185
        %v1218 = vunpack.c.l.b16 %v1186
        %v1219 = vunpack.c.l.b16 %v1187
        %v1220 = vunpack.c.l.b16 %v1188
        %v1221 = vunpack.c.l.b16 %v1189
        %v1222 = vunpack.c.l.b16 %v1190
        %v1223 = vunpack.c.l.b16 %v1191
        %v1224 = vunpack.c.l.b16 %v1192
        %v1225 = vunpack.c.l.b16 %v1193
        %v1226 = vunpack.c.l.b16 %v1194
        %v1227 = vpack.c.b16 %v1212, %v1211
        %v1228 = vpack.c.b16 %v1214, %v1213
        %v1229 = vpack.c.b16 %v1216, %v1215
        %v1230 = vpack.c.b16 %v1218, %v1217
        %v1231 = vpack.c.b16 %v1220, %v1219
        %v1232 = vpack.c.b16 %v1222, %v1221
        %v1233 = vpack.c.b16 %v1224, %v1223
        %v1234 = vpack.c.b16 %v1226, %v1225
        %1243 = vmatprep.subr.bf16.mxu0 0
        %1244 = vmatpush1.bf16.msra.mxu0 %v1227
        %1245 = vmatprep.subr.bf16.mxu0 0
        %1246 = vmatpush1.bf16.msra.mxu0 %v1228
        %1247 = vmatprep.subr.bf16.mxu0 0
        %1248 = vmatpush1.bf16.msra.mxu0 %v1229
        %1249 = vmatprep.subr.bf16.mxu0 0
        %1250 = vmatpush1.bf16.msra.mxu0 %v1230
        %1251 = vmatprep.subr.bf16.mxu0 0
        %1252 = vmatpush1.bf16.msra.mxu0 %v1231
        %1253 = vmatprep.subr.bf16.mxu0 0
        %1254 = vmatpush1.bf16.msra.mxu0 %v1232
        %1255 = vmatprep.subr.bf16.mxu0 0
        %1256 = vmatpush1.bf16.msra.mxu0 %v1233
        %1257 = vmatprep.subr.bf16.mxu0 0
        %1258 = vmatpush1.bf16.msra.mxu0 %v1234
        %1259 = vmatprep.subr.bf16.mxu0 0
        %1260 = vmatpush1.bf16.msra.mxu0 0
        %1261 = vmatprep.subr.bf16.mxu0 0
        %1262 = vmatpush1.bf16.msra.mxu0 0
        %1263 = vmatprep.subr.bf16.mxu0 0
        %1264 = vmatpush1.bf16.msra.mxu0 0
        %1265 = vmatprep.subr.bf16.mxu0 0
        %1266 = vmatpush1.bf16.msra.mxu0 0
        %1267 = vmatprep.subr.bf16.mxu0 0
        %1268 = vmatpush1.bf16.msra.mxu0 0
        %1269 = vmatprep.subr.bf16.mxu0 0
        %1270 = vmatpush1.bf16.msra.mxu0 0
        %1271 = vmatprep.subr.bf16.mxu0 0
        %1272 = vmatpush1.bf16.msra.mxu0 0
        %1273 = vmatprep.subr.bf16.mxu0 0
        %1274 = vmatpush1.bf16.msra.mxu0 0
        %1275 = vmatprep.mubr.bf16.mxu0 0
        %1276 = vmatmul.mubr.bf16.gmra.mrb[0].mxu0 %v1174
        %v1277 = vpop.f32.mrb[0].mxu0
        %v1278 = vadd.f32 0.0, %v1277
        %v1279 = vpop.f32.mrb[0].mxu0
        %v1280 = vpop.f32.mrb[0].mxu0
        %v1281 = vpop.f32.mrb[0].mxu0
        %1282 = vdwg.mxu0
        %v1283 = vadd.f32 %v1076, %v1278
      $region104: #{protein_classifier_forward.4} parent=91 // loop_footer
        %s1075 = sadd.s32 1, %s1071
      $region105: #{protein_classifier_forward.4} parent=91 // loop_footer_branch
        %1070 = sbr.rel target = $region101
      $region106: #{protein_classifier_forward.4} parent=91 // loop_exit
        _
      %v1284 = vld [vmem:[%s15] sm:$0x1]
      %v1286 = vlaneseq
      %v1287 = vshrl.u32 %v1286, 7
      %v1288 = vsub.s32 0, %v1287
      %v1289 = vrot.slane %v1284, %v1288
      %v1291 = vadd.f32 %v1076, %v1289
      %v1292 = vadd.f32 %v1291, %v1068
      %v1293 = vld [vmem:[%s16] sm:$0x1]
      %v1294 = vld [vmem:[%s17] sm:$0x1]
      %v1295 = vsel %vm1040, %v1292, 0.0
      %1296 = vadd.xlane.f32.xlu0 %v1295
      %v1297 = vpop.xlane.xlu0 %1296
      %v1298 = vmul.f32 %v1297, %v1044
      %v1299 = vsub.f32 %v1292, %v1298
      %v1300 = vmul.f32 %v1299, %v1299
      %v1301 = vsel %vm1040, %v1300, 0.0
      %1302 = vadd.xlane.f32.xlu0 %v1301
      %v1303 = vpop.xlane.xlu0 %1302
      %v1304 = vmul.f32 %v1303, %v1044
      %v1305 = vadd.f32 %v1304, 1e-12
      %v1306 = vrsqrt.pop %v1305
      %v1307 = vmul.f32 %v1299, %v1306
      %v1309 = vlaneseq
      %v1310 = vshrl.u32 %v1309, 7
      %v1311 = vsub.s32 0, %v1310
      %v1312 = vrot.slane %v1293, %v1311
      %v1314 = vmul.f32 %v1307, %v1312
      %v1316 = vlaneseq
      %v1317 = vshrl.u32 %v1316, 7
      %v1318 = vsub.s32 0, %v1317
      %v1319 = vrot.slane %v1294, %v1318
      %v1321 = vadd.f32 %v1314, %v1319
      %v1322 = vpack.c.bf16 %v1321, %v1321
      %vm1323 = vcmask 519168
      %1324 = vst.msk [vmem:[%s584] sm:$0xf] %vm1323, %v1322
      %p1325 = scmp.lt.s32.totalorder %s29, 1
      %s1326 = scalar_select %p1325, %s29, 1
      %s1327 = smul.addr %s1326, 4
      %s1328 = scalar_lea.vmem %s18, %s1327
      // Predicated region
      $region107: #{protein_classifier_forward.4} parent=91 // pred_check
        %p1329 = pneg %p435
      $region108: #{protein_classifier_forward.4} parent=91 // pred_check_branch
        %1331 = sbr.rel (%p1329) target = $region110
      $region109: #{protein_classifier_forward.4} parent=91 // pred_region
        _
      $region110: #{protein_classifier_forward.4} parent=91 // pred_fallthru
        _
    $region92: #{protein_classifier_forward.4} parent=5 // pred_fallthru
      _
    %p1332 = scmp.le.s32.totalorder 2, %s24
    // Predicated region
    $region111: #{protein_classifier_forward.4} parent=5 // pred_check
      %p1333 = pneg %p1332
    $region112: #{protein_classifier_forward.4} parent=5 // pred_check_branch
      %1335 = sbr.rel (%p1333) target = $region114
    $region113: #{protein_classifier_forward.4} parent=5 // pred_region
      %s1336 = ssub.s32 %s24, 2
      // Predicated region
      $region115: #{protein_classifier_forward.4} parent=113 // pred_check
        %p1337 = pneg %p441
      $region116: #{protein_classifier_forward.4} parent=113 // pred_check_branch
        %1339 = sbr.rel (%p1337) target = $region118
      $region117: #{protein_classifier_forward.4} parent=113 // pred_region
        %p1340 = scmp.lt.s32.totalorder %s30, 1
        %s1341 = scalar_select %p1340, %s30, 1
        %s1342 = smul.addr %s1341, 4
        %s1343 = scalar_lea.vmem %s18, %s1342
      $region118: #{protein_classifier_forward.4} parent=113 // pred_fallthru
        _
    $region114: #{protein_classifier_forward.4} parent=5 // pred_fallthru
      _
  $region6: #{protein_classifier_forward.4} parent=0 // loop_footer
    %s28 = sadd.s32 1, %s24
  $region7: #{protein_classifier_forward.4} parent=0 // loop_footer_branch
    %23 = sbr.rel target = $region3
  $region8: #{protein_classifier_forward.4} parent=0 // loop_exit
    _

// kernel: protein_classifier_forward.5
$region0: #{protein_classifier_forward.5}
  #allocation0 [shape = 'u32[]', space=smem, size = 0x4, offset = 0x4, fixed_abs, tag = 'smem constant byte address 0x4 - core index']
  #allocation1 [shape = 'u32[144,128]{1,0:T(1,128)}', space=vmem, size = 0x12000, scoped, tag = 'internal scratch']
  %s0 = inlined_call_operand.vmem [shape: bf16[2,8,64], index: 0, kind: input, shape index: {}]
  %s1 = inlined_call_operand.vmem [shape: f32[2,1,8], index: 1, kind: input, shape index: {}]
  %s2 = inlined_call_operand.vmem [shape: bf16[2,64,32], index: 2, kind: input, shape index: {}]
  %s3 = inlined_call_operand.vmem [shape: f32[2,1,32], index: 3, kind: input, shape index: {}]
  %s4 = inlined_call_operand.vmem [shape: bf16[2,64,32], index: 4, kind: input, shape index: {}]
  %s5 = inlined_call_operand.vmem [shape: f32[2,1,32], index: 5, kind: input, shape index: {}]
  %s6 = inlined_call_operand.vmem [shape: bf16[2,64,32], index: 6, kind: input, shape index: {}]
  %s7 = inlined_call_operand.vmem [shape: f32[2,1,32], index: 7, kind: input, shape index: {}]
  %s8 = inlined_call_operand.vmem [shape: bf16[2,32,64], index: 8, kind: input, shape index: {}]
  %s9 = inlined_call_operand.vmem [shape: f32[1,64], index: 9, kind: input, shape index: {}]
  %s10 = inlined_call_operand.vmem [shape: f32[1,64], index: 10, kind: input, shape index: {}]
  %s11 = inlined_call_operand.vmem [shape: f32[1,64], index: 11, kind: input, shape index: {}]
  %s12 = inlined_call_operand.vmem [shape: bf16[64,256], index: 12, kind: input, shape index: {}]
  %s13 = inlined_call_operand.vmem [shape: f32[1,256], index: 13, kind: input, shape index: {}]
  %s14 = inlined_call_operand.vmem [shape: bf16[256,64], index: 14, kind: input, shape index: {}]
  %s15 = inlined_call_operand.vmem [shape: f32[1,64], index: 15, kind: input, shape index: {}]
  %s16 = inlined_call_operand.vmem [shape: f32[1,64], index: 16, kind: input, shape index: {}]
  %s17 = inlined_call_operand.vmem [shape: f32[1,64], index: 17, kind: input, shape index: {}]
  %s18 = inlined_call_operand.vmem [shape: bf16[64,64], index: 18, kind: input, shape index: {}]
  %s19 = inlined_call_operand.vmem [shape: f32[1,64], index: 19, kind: input, shape index: {}]
  %s20 = inlined_call_operand.vmem [shape: bf16[64,4], index: 20, kind: input, shape index: {}]
  %s21 = inlined_call_operand.vmem [shape: f32[1,4], index: 21, kind: input, shape index: {}]
  %s22 = inlined_call_operand.hbm [shape: f32[2,1,4], index: 22, kind: output, shape index: {}]
  %s23 = sld [smem:[#allocation0]]
  $region135: #{protein_classifier_forward.5} parent=0
    _
  %s25 = ssub.s32 1, %s23
  %s26 = scalar_select 0, %s25, %s23
  $region1: #{protein_classifier_forward.5} parent=0
    #allocation2 [shape = 'u8[1024]{0}', space=vmem, size = 0x400, scoped, tag = 'output window, operand 0']
    #allocation3 [shape = 's32[2]{0}', space=sflag, size = 0x8, scoped, tag = 'scoped memory for protein_classifier_forward.5']
    %27 = vsyncpa [#allocation3], 0
    %s28 = scalar_lea.sflag [#allocation3], 1
    %29 = vsyncpa %s28, 0
    loop: start=0, step=1, limit=4
    $region2: #{protein_classifier_forward.5} parent=1 // loop_pre_header
      _
    $region3: #{protein_classifier_forward.5} parent=1 // loop_header
      %s31 = sphi 0, %s35
      %p32 = scmp.ge.s32.totalorder %s31, 4
      %s41 = sphi 0, %s43
      %s44 = sphi 0, %s41
      %s45 = sphi 0, %s44
      %s61 = sphi 0, %s45
      %s67 = sphi 0, %s69
      %s70 = sphi 0, %s67
      %s71 = sphi 0, %s70
      %s87 = sphi 0, %s71
      %s91 = sphi 0, %s91
      %s93 = sphi 0, %s91
      %s94 = sphi 0, %s93
      %s108 = sphi 0, %s94
      %s112 = sphi 0, %s112
      %s114 = sphi 0, %s112
      %s115 = sphi 0, %s114
      %s129 = sphi 0, %s115
      %s133 = sphi 0, %s133
      %s135 = sphi 0, %s133
      %s136 = sphi 0, %s135
      %s150 = sphi 0, %s136
      %s154 = sphi 0, %s154
      %s156 = sphi 0, %s154
      %s157 = sphi 0, %s156
      %s171 = sphi 0, %s157
      %s175 = sphi 0, %s175
      %s177 = sphi 0, %s175
      %s178 = sphi 0, %s177
      %s192 = sphi 0, %s178
      %s196 = sphi 0, %s196
      %s198 = sphi 0, %s196
      %s199 = sphi 0, %s198
      %s213 = sphi 0, %s199
      %s217 = sphi 0, %s217
      %s219 = sphi 0, %s217
      %s220 = sphi 0, %s219
      %s234 = sphi 0, %s220
      %s238 = sphi 0, %s238
      %s240 = sphi 0, %s238
      %s241 = sphi 0, %s240
      %s255 = sphi 0, %s241
      %s259 = sphi 0, %s259
      %s261 = sphi 0, %s259
      %s262 = sphi 0, %s261
      %s276 = sphi 0, %s262
      %s280 = sphi 0, %s280
      %s282 = sphi 0, %s280
      %s283 = sphi 0, %s282
      %s297 = sphi 0, %s283
      %s301 = sphi 0, %s301
      %s303 = sphi 0, %s301
      %s304 = sphi 0, %s303
      %s318 = sphi 0, %s304
      %s322 = sphi 0, %s322
      %s324 = sphi 0, %s322
      %s325 = sphi 0, %s324
      %s339 = sphi 0, %s325
      %s343 = sphi 0, %s343
      %s345 = sphi 0, %s343
      %s346 = sphi 0, %s345
      %s360 = sphi 0, %s346
      %s364 = sphi 0, %s364
      %s366 = sphi 0, %s364
      %s367 = sphi 0, %s366
      %s381 = sphi 0, %s367
      %s385 = sphi 0, %s385
      %s387 = sphi 0, %s385
      %s388 = sphi 0, %s387
      %s402 = sphi 0, %s388
      %s406 = sphi 0, %s406
      %s408 = sphi 0, %s406
      %s409 = sphi 0, %s408
      %s423 = sphi 0, %s409
      %s427 = sphi 0, %s427
      %s429 = sphi 0, %s427
      %s430 = sphi 0, %s429
      %s444 = sphi 0, %s430
      %s448 = sphi 0, %s448
      %s450 = sphi 0, %s448
      %s451 = sphi 0, %s450
      %s465 = sphi 0, %s451
      %s469 = sphi 0, %s469
      %s471 = sphi 0, %s469
      %s472 = sphi 0, %s471
      %s486 = sphi 0, %s472
      %s490 = sphi 0, %s490
      %s492 = sphi 0, %s490
      %s493 = sphi 0, %s492
      %s507 = sphi 0, %s493
      %s513 = sphi 0, %s515
      %s516 = sphi 0, %s513
      %s517 = sphi 0, %s516
      %s533 = sphi 0, %s517
    $region4: #{protein_classifier_forward.5} parent=1 // loop_header_branch
      %34 = sbr.rel (%p32) target = $region8
    $region5: #{protein_classifier_forward.5} parent=1 // loop_body
      %s36 = ssub.s32 %s31, 1
      %s37 = ssub.s32 %s31, 2
      %s38 = sadd.s32 %s31, 1
      %s39 = ssub.s32 %s31, %s38
      %p40 = scmp.eq.s32.totalorder %s39, 0
      %s42 = sadd.s32 %s41, 1
      %s43 = scalar_select %p40, %s41, %s42
      %p46 = pneg %p40
      %p47 = scmp.eq.s32.totalorder %s31, 1
      %p48 = por %p46, %p47
      %p49 = scmp.ne.s32.totalorder %s41, %s44
      %p50 = scmp.eq.s32.totalorder %s31, 0
      %p51 = por %p49, %p50
      %p52 = scmp.ne.s32.totalorder %s41, %s44
      %p53 = scmp.eq.s32.totalorder %s36, 1
      %p54 = por %p52, %p53
      %p55 = scmp.ne.s32.totalorder %s44, %s45
      %p56 = scmp.eq.s32.totalorder %s36, 0
      %p57 = por %p55, %p56
      %p58 = scmp.ne.s32.totalorder %s44, %s45
      %p59 = scmp.eq.s32.totalorder %s37, 1
      %p60 = por %p58, %p59
      %p62 = scmp.ne.s32.totalorder %s45, %s61
      %p63 = scmp.eq.s32.totalorder %s37, 0
      %p64 = por %p62, %p63
      %s65 = ssub.s32 %s31, %s38
      %p66 = scmp.eq.s32.totalorder %s65, 0
      %s68 = sadd.s32 %s67, 1
      %s69 = scalar_select %p66, %s67, %s68
      %p72 = pneg %p66
      %p73 = scmp.eq.s32.totalorder %s31, 1
      %p74 = por %p72, %p73
      %p75 = scmp.ne.s32.totalorder %s67, %s70
      %p76 = scmp.eq.s32.totalorder %s31, 0
      %p77 = por %p75, %p76
      %p78 = scmp.ne.s32.totalorder %s67, %s70
      %p79 = scmp.eq.s32.totalorder %s36, 1
      %p80 = por %p78, %p79
      %p81 = scmp.ne.s32.totalorder %s70, %s71
      %p82 = scmp.eq.s32.totalorder %s36, 0
      %p83 = por %p81, %p82
      %p84 = scmp.ne.s32.totalorder %s70, %s71
      %p85 = scmp.eq.s32.totalorder %s37, 1
      %p86 = por %p84, %p85
      %p88 = scmp.ne.s32.totalorder %s71, %s87
      %p89 = scmp.eq.s32.totalorder %s37, 0
      %p90 = por %p88, %p89
      %s92 = sadd.s32 %s91, 1
      %p95 = scmp.eq.s32.totalorder %s31, 1
      %p96 = scmp.ne.s32.totalorder %s91, %s93
      %p97 = scmp.eq.s32.totalorder %s31, 0
      %p98 = por %p96, %p97
      %p99 = scmp.ne.s32.totalorder %s91, %s93
      %p100 = scmp.eq.s32.totalorder %s36, 1
      %p101 = por %p99, %p100
      %p102 = scmp.ne.s32.totalorder %s93, %s94
      %p103 = scmp.eq.s32.totalorder %s36, 0
      %p104 = por %p102, %p103
      %p105 = scmp.ne.s32.totalorder %s93, %s94
      %p106 = scmp.eq.s32.totalorder %s37, 1
      %p107 = por %p105, %p106
      %p109 = scmp.ne.s32.totalorder %s94, %s108
      %p110 = scmp.eq.s32.totalorder %s37, 0
      %p111 = por %p109, %p110
      %s113 = sadd.s32 %s112, 1
      %p116 = scmp.eq.s32.totalorder %s31, 1
      %p117 = scmp.ne.s32.totalorder %s112, %s114
      %p118 = scmp.eq.s32.totalorder %s31, 0
      %p119 = por %p117, %p118
      %p120 = scmp.ne.s32.totalorder %s112, %s114
      %p121 = scmp.eq.s32.totalorder %s36, 1
      %p122 = por %p120, %p121
      %p123 = scmp.ne.s32.totalorder %s114, %s115
      %p124 = scmp.eq.s32.totalorder %s36, 0
      %p125 = por %p123, %p124
      %p126 = scmp.ne.s32.totalorder %s114, %s115
      %p127 = scmp.eq.s32.totalorder %s37, 1
      %p128 = por %p126, %p127
      %p130 = scmp.ne.s32.totalorder %s115, %s129
      %p131 = scmp.eq.s32.totalorder %s37, 0
      %p132 = por %p130, %p131
      %s134 = sadd.s32 %s133, 1
      %p137 = scmp.eq.s32.totalorder %s31, 1
      %p138 = scmp.ne.s32.totalorder %s133, %s135
      %p139 = scmp.eq.s32.totalorder %s31, 0
      %p140 = por %p138, %p139
      %p141 = scmp.ne.s32.totalorder %s133, %s135
      %p142 = scmp.eq.s32.totalorder %s36, 1
      %p143 = por %p141, %p142
      %p144 = scmp.ne.s32.totalorder %s135, %s136
      %p145 = scmp.eq.s32.totalorder %s36, 0
      %p146 = por %p144, %p145
      %p147 = scmp.ne.s32.totalorder %s135, %s136
      %p148 = scmp.eq.s32.totalorder %s37, 1
      %p149 = por %p147, %p148
      %p151 = scmp.ne.s32.totalorder %s136, %s150
      %p152 = scmp.eq.s32.totalorder %s37, 0
      %p153 = por %p151, %p152
      %s155 = sadd.s32 %s154, 1
      %p158 = scmp.eq.s32.totalorder %s31, 1
      %p159 = scmp.ne.s32.totalorder %s154, %s156
      %p160 = scmp.eq.s32.totalorder %s31, 0
      %p161 = por %p159, %p160
      %p162 = scmp.ne.s32.totalorder %s154, %s156
      %p163 = scmp.eq.s32.totalorder %s36, 1
      %p164 = por %p162, %p163
      %p165 = scmp.ne.s32.totalorder %s156, %s157
      %p166 = scmp.eq.s32.totalorder %s36, 0
      %p167 = por %p165, %p166
      %p168 = scmp.ne.s32.totalorder %s156, %s157
      %p169 = scmp.eq.s32.totalorder %s37, 1
      %p170 = por %p168, %p169
      %p172 = scmp.ne.s32.totalorder %s157, %s171
      %p173 = scmp.eq.s32.totalorder %s37, 0
      %p174 = por %p172, %p173
      %s176 = sadd.s32 %s175, 1
      %p179 = scmp.eq.s32.totalorder %s31, 1
      %p180 = scmp.ne.s32.totalorder %s175, %s177
      %p181 = scmp.eq.s32.totalorder %s31, 0
      %p182 = por %p180, %p181
      %p183 = scmp.ne.s32.totalorder %s175, %s177
      %p184 = scmp.eq.s32.totalorder %s36, 1
      %p185 = por %p183, %p184
      %p186 = scmp.ne.s32.totalorder %s177, %s178
      %p187 = scmp.eq.s32.totalorder %s36, 0
      %p188 = por %p186, %p187
      %p189 = scmp.ne.s32.totalorder %s177, %s178
      %p190 = scmp.eq.s32.totalorder %s37, 1
      %p191 = por %p189, %p190
      %p193 = scmp.ne.s32.totalorder %s178, %s192
      %p194 = scmp.eq.s32.totalorder %s37, 0
      %p195 = por %p193, %p194
      %s197 = sadd.s32 %s196, 1
      %p200 = scmp.eq.s32.totalorder %s31, 1
      %p201 = scmp.ne.s32.totalorder %s196, %s198
      %p202 = scmp.eq.s32.totalorder %s31, 0
      %p203 = por %p201, %p202
      %p204 = scmp.ne.s32.totalorder %s196, %s198
      %p205 = scmp.eq.s32.totalorder %s36, 1
      %p206 = por %p204, %p205
      %p207 = scmp.ne.s32.totalorder %s198, %s199
      %p208 = scmp.eq.s32.totalorder %s36, 0
      %p209 = por %p207, %p208
      %p210 = scmp.ne.s32.totalorder %s198, %s199
      %p211 = scmp.eq.s32.totalorder %s37, 1
      %p212 = por %p210, %p211
      %p214 = scmp.ne.s32.totalorder %s199, %s213
      %p215 = scmp.eq.s32.totalorder %s37, 0
      %p216 = por %p214, %p215
      %s218 = sadd.s32 %s217, 1
      %p221 = scmp.eq.s32.totalorder %s31, 1
      %p222 = scmp.ne.s32.totalorder %s217, %s219
      %p223 = scmp.eq.s32.totalorder %s31, 0
      %p224 = por %p222, %p223
      %p225 = scmp.ne.s32.totalorder %s217, %s219
      %p226 = scmp.eq.s32.totalorder %s36, 1
      %p227 = por %p225, %p226
      %p228 = scmp.ne.s32.totalorder %s219, %s220
      %p229 = scmp.eq.s32.totalorder %s36, 0
      %p230 = por %p228, %p229
      %p231 = scmp.ne.s32.totalorder %s219, %s220
      %p232 = scmp.eq.s32.totalorder %s37, 1
      %p233 = por %p231, %p232
      %p235 = scmp.ne.s32.totalorder %s220, %s234
      %p236 = scmp.eq.s32.totalorder %s37, 0
      %p237 = por %p235, %p236
      %s239 = sadd.s32 %s238, 1
      %p242 = scmp.eq.s32.totalorder %s31, 1
      %p243 = scmp.ne.s32.totalorder %s238, %s240
      %p244 = scmp.eq.s32.totalorder %s31, 0
      %p245 = por %p243, %p244
      %p246 = scmp.ne.s32.totalorder %s238, %s240
      %p247 = scmp.eq.s32.totalorder %s36, 1
      %p248 = por %p246, %p247
      %p249 = scmp.ne.s32.totalorder %s240, %s241
      %p250 = scmp.eq.s32.totalorder %s36, 0
      %p251 = por %p249, %p250
      %p252 = scmp.ne.s32.totalorder %s240, %s241
      %p253 = scmp.eq.s32.totalorder %s37, 1
      %p254 = por %p252, %p253
      %p256 = scmp.ne.s32.totalorder %s241, %s255
      %p257 = scmp.eq.s32.totalorder %s37, 0
      %p258 = por %p256, %p257
      %s260 = sadd.s32 %s259, 1
      %p263 = scmp.eq.s32.totalorder %s31, 1
      %p264 = scmp.ne.s32.totalorder %s259, %s261
      %p265 = scmp.eq.s32.totalorder %s31, 0
      %p266 = por %p264, %p265
      %p267 = scmp.ne.s32.totalorder %s259, %s261
      %p268 = scmp.eq.s32.totalorder %s36, 1
      %p269 = por %p267, %p268
      %p270 = scmp.ne.s32.totalorder %s261, %s262
      %p271 = scmp.eq.s32.totalorder %s36, 0
      %p272 = por %p270, %p271
      %p273 = scmp.ne.s32.totalorder %s261, %s262
      %p274 = scmp.eq.s32.totalorder %s37, 1
      %p275 = por %p273, %p274
      %p277 = scmp.ne.s32.totalorder %s262, %s276
      %p278 = scmp.eq.s32.totalorder %s37, 0
      %p279 = por %p277, %p278
      %s281 = sadd.s32 %s280, 1
      %p284 = scmp.eq.s32.totalorder %s31, 1
      %p285 = scmp.ne.s32.totalorder %s280, %s282
      %p286 = scmp.eq.s32.totalorder %s31, 0
      %p287 = por %p285, %p286
      %p288 = scmp.ne.s32.totalorder %s280, %s282
      %p289 = scmp.eq.s32.totalorder %s36, 1
      %p290 = por %p288, %p289
      %p291 = scmp.ne.s32.totalorder %s282, %s283
      %p292 = scmp.eq.s32.totalorder %s36, 0
      %p293 = por %p291, %p292
      %p294 = scmp.ne.s32.totalorder %s282, %s283
      %p295 = scmp.eq.s32.totalorder %s37, 1
      %p296 = por %p294, %p295
      %p298 = scmp.ne.s32.totalorder %s283, %s297
      %p299 = scmp.eq.s32.totalorder %s37, 0
      %p300 = por %p298, %p299
      %s302 = sadd.s32 %s301, 1
      %p305 = scmp.eq.s32.totalorder %s31, 1
      %p306 = scmp.ne.s32.totalorder %s301, %s303
      %p307 = scmp.eq.s32.totalorder %s31, 0
      %p308 = por %p306, %p307
      %p309 = scmp.ne.s32.totalorder %s301, %s303
      %p310 = scmp.eq.s32.totalorder %s36, 1
      %p311 = por %p309, %p310
      %p312 = scmp.ne.s32.totalorder %s303, %s304
      %p313 = scmp.eq.s32.totalorder %s36, 0
      %p314 = por %p312, %p313
      %p315 = scmp.ne.s32.totalorder %s303, %s304
      %p316 = scmp.eq.s32.totalorder %s37, 1
      %p317 = por %p315, %p316
      %p319 = scmp.ne.s32.totalorder %s304, %s318
      %p320 = scmp.eq.s32.totalorder %s37, 0
      %p321 = por %p319, %p320
      %s323 = sadd.s32 %s322, 1
      %p326 = scmp.eq.s32.totalorder %s31, 1
      %p327 = scmp.ne.s32.totalorder %s322, %s324
      %p328 = scmp.eq.s32.totalorder %s31, 0
      %p329 = por %p327, %p328
      %p330 = scmp.ne.s32.totalorder %s322, %s324
      %p331 = scmp.eq.s32.totalorder %s36, 1
      %p332 = por %p330, %p331
      %p333 = scmp.ne.s32.totalorder %s324, %s325
      %p334 = scmp.eq.s32.totalorder %s36, 0
      %p335 = por %p333, %p334
      %p336 = scmp.ne.s32.totalorder %s324, %s325
      %p337 = scmp.eq.s32.totalorder %s37, 1
      %p338 = por %p336, %p337
      %p340 = scmp.ne.s32.totalorder %s325, %s339
      %p341 = scmp.eq.s32.totalorder %s37, 0
      %p342 = por %p340, %p341
      %s344 = sadd.s32 %s343, 1
      %p347 = scmp.eq.s32.totalorder %s31, 1
      %p348 = scmp.ne.s32.totalorder %s343, %s345
      %p349 = scmp.eq.s32.totalorder %s31, 0
      %p350 = por %p348, %p349
      %p351 = scmp.ne.s32.totalorder %s343, %s345
      %p352 = scmp.eq.s32.totalorder %s36, 1
      %p353 = por %p351, %p352
      %p354 = scmp.ne.s32.totalorder %s345, %s346
      %p355 = scmp.eq.s32.totalorder %s36, 0
      %p356 = por %p354, %p355
      %p357 = scmp.ne.s32.totalorder %s345, %s346
      %p358 = scmp.eq.s32.totalorder %s37, 1
      %p359 = por %p357, %p358
      %p361 = scmp.ne.s32.totalorder %s346, %s360
      %p362 = scmp.eq.s32.totalorder %s37, 0
      %p363 = por %p361, %p362
      %s365 = sadd.s32 %s364, 1
      %p368 = scmp.eq.s32.totalorder %s31, 1
      %p369 = scmp.ne.s32.totalorder %s364, %s366
      %p370 = scmp.eq.s32.totalorder %s31, 0
      %p371 = por %p369, %p370
      %p372 = scmp.ne.s32.totalorder %s364, %s366
      %p373 = scmp.eq.s32.totalorder %s36, 1
      %p374 = por %p372, %p373
      %p375 = scmp.ne.s32.totalorder %s366, %s367
      %p376 = scmp.eq.s32.totalorder %s36, 0
      %p377 = por %p375, %p376
      %p378 = scmp.ne.s32.totalorder %s366, %s367
      %p379 = scmp.eq.s32.totalorder %s37, 1
      %p380 = por %p378, %p379
      %p382 = scmp.ne.s32.totalorder %s367, %s381
      %p383 = scmp.eq.s32.totalorder %s37, 0
      %p384 = por %p382, %p383
      %s386 = sadd.s32 %s385, 1
      %p389 = scmp.eq.s32.totalorder %s31, 1
      %p390 = scmp.ne.s32.totalorder %s385, %s387
      %p391 = scmp.eq.s32.totalorder %s31, 0
      %p392 = por %p390, %p391
      %p393 = scmp.ne.s32.totalorder %s385, %s387
      %p394 = scmp.eq.s32.totalorder %s36, 1
      %p395 = por %p393, %p394
      %p396 = scmp.ne.s32.totalorder %s387, %s388
      %p397 = scmp.eq.s32.totalorder %s36, 0
      %p398 = por %p396, %p397
      %p399 = scmp.ne.s32.totalorder %s387, %s388
      %p400 = scmp.eq.s32.totalorder %s37, 1
      %p401 = por %p399, %p400
      %p403 = scmp.ne.s32.totalorder %s388, %s402
      %p404 = scmp.eq.s32.totalorder %s37, 0
      %p405 = por %p403, %p404
      %s407 = sadd.s32 %s406, 1
      %p410 = scmp.eq.s32.totalorder %s31, 1
      %p411 = scmp.ne.s32.totalorder %s406, %s408
      %p412 = scmp.eq.s32.totalorder %s31, 0
      %p413 = por %p411, %p412
      %p414 = scmp.ne.s32.totalorder %s406, %s408
      %p415 = scmp.eq.s32.totalorder %s36, 1
      %p416 = por %p414, %p415
      %p417 = scmp.ne.s32.totalorder %s408, %s409
      %p418 = scmp.eq.s32.totalorder %s36, 0
      %p419 = por %p417, %p418
      %p420 = scmp.ne.s32.totalorder %s408, %s409
      %p421 = scmp.eq.s32.totalorder %s37, 1
      %p422 = por %p420, %p421
      %p424 = scmp.ne.s32.totalorder %s409, %s423
      %p425 = scmp.eq.s32.totalorder %s37, 0
      %p426 = por %p424, %p425
      %s428 = sadd.s32 %s427, 1
      %p431 = scmp.eq.s32.totalorder %s31, 1
      %p432 = scmp.ne.s32.totalorder %s427, %s429
      %p433 = scmp.eq.s32.totalorder %s31, 0
      %p434 = por %p432, %p433
      %p435 = scmp.ne.s32.totalorder %s427, %s429
      %p436 = scmp.eq.s32.totalorder %s36, 1
      %p437 = por %p435, %p436
      %p438 = scmp.ne.s32.totalorder %s429, %s430
      %p439 = scmp.eq.s32.totalorder %s36, 0
      %p440 = por %p438, %p439
      %p441 = scmp.ne.s32.totalorder %s429, %s430
      %p442 = scmp.eq.s32.totalorder %s37, 1
      %p443 = por %p441, %p442
      %p445 = scmp.ne.s32.totalorder %s430, %s444
      %p446 = scmp.eq.s32.totalorder %s37, 0
      %p447 = por %p445, %p446
      %s449 = sadd.s32 %s448, 1
      %p452 = scmp.eq.s32.totalorder %s31, 1
      %p453 = scmp.ne.s32.totalorder %s448, %s450
      %p454 = scmp.eq.s32.totalorder %s31, 0
      %p455 = por %p453, %p454
      %p456 = scmp.ne.s32.totalorder %s448, %s450
      %p457 = scmp.eq.s32.totalorder %s36, 1
      %p458 = por %p456, %p457
      %p459 = scmp.ne.s32.totalorder %s450, %s451
      %p460 = scmp.eq.s32.totalorder %s36, 0
      %p461 = por %p459, %p460
      %p462 = scmp.ne.s32.totalorder %s450, %s451
      %p463 = scmp.eq.s32.totalorder %s37, 1
      %p464 = por %p462, %p463
      %p466 = scmp.ne.s32.totalorder %s451, %s465
      %p467 = scmp.eq.s32.totalorder %s37, 0
      %p468 = por %p466, %p467
      %s470 = sadd.s32 %s469, 1
      %p473 = scmp.eq.s32.totalorder %s31, 1
      %p474 = scmp.ne.s32.totalorder %s469, %s471
      %p475 = scmp.eq.s32.totalorder %s31, 0
      %p476 = por %p474, %p475
      %p477 = scmp.ne.s32.totalorder %s469, %s471
      %p478 = scmp.eq.s32.totalorder %s36, 1
      %p479 = por %p477, %p478
      %p480 = scmp.ne.s32.totalorder %s471, %s472
      %p481 = scmp.eq.s32.totalorder %s36, 0
      %p482 = por %p480, %p481
      %p483 = scmp.ne.s32.totalorder %s471, %s472
      %p484 = scmp.eq.s32.totalorder %s37, 1
      %p485 = por %p483, %p484
      %p487 = scmp.ne.s32.totalorder %s472, %s486
      %p488 = scmp.eq.s32.totalorder %s37, 0
      %p489 = por %p487, %p488
      %s491 = sadd.s32 %s490, 1
      %p494 = scmp.eq.s32.totalorder %s31, 1
      %p495 = scmp.ne.s32.totalorder %s490, %s492
      %p496 = scmp.eq.s32.totalorder %s31, 0
      %p497 = por %p495, %p496
      %p498 = scmp.ne.s32.totalorder %s490, %s492
      %p499 = scmp.eq.s32.totalorder %s36, 1
      %p500 = por %p498, %p499
      %p501 = scmp.ne.s32.totalorder %s492, %s493
      %p502 = scmp.eq.s32.totalorder %s36, 0
      %p503 = por %p501, %p502
      %p504 = scmp.ne.s32.totalorder %s492, %s493
      %p505 = scmp.eq.s32.totalorder %s37, 1
      %p506 = por %p504, %p505
      %p508 = scmp.ne.s32.totalorder %s493, %s507
      %p509 = scmp.eq.s32.totalorder %s37, 0
      %p510 = por %p508, %p509
      %s511 = ssub.s32 %s31, %s38
      %p512 = scmp.eq.s32.totalorder %s511, 0
      %s514 = sadd.s32 %s513, 1
      %s515 = scalar_select %p512, %s513, %s514
      %p518 = pneg %p512
      %p519 = scmp.eq.s32.totalorder %s31, 1
      %p520 = por %p518, %p519
      %p521 = scmp.ne.s32.totalorder %s513, %s516
      %p522 = scmp.eq.s32.totalorder %s31, 0
      %p523 = por %p521, %p522
      %p524 = scmp.ne.s32.totalorder %s513, %s516
      %p525 = scmp.eq.s32.totalorder %s36, 1
      %p526 = por %p524, %p525
      %p527 = scmp.ne.s32.totalorder %s516, %s517
      %p528 = scmp.eq.s32.totalorder %s36, 0
      %p529 = por %p527, %p528
      %p530 = scmp.ne.s32.totalorder %s516, %s517
      %p531 = scmp.eq.s32.totalorder %s37, 1
      %p532 = por %p530, %p531
      %p534 = scmp.ne.s32.totalorder %s517, %s533
      %p535 = scmp.eq.s32.totalorder %s37, 0
      %p536 = por %p534, %p535
      %p537 = scmp.le.s32.totalorder 1, %s31
      %p538 = scmp.lt.s32.totalorder %s31, 3
      %p539 = pnand %p537, %p538
      %p540 = pneg %p539
      // Predicated region
      $region9: #{protein_classifier_forward.5} parent=5 // pred_check
        _
      $region10: #{protein_classifier_forward.5} parent=5 // pred_check_branch
        %542 = sbr.rel (%p539) target = $region12
      $region11: #{protein_classifier_forward.5} parent=5 // pred_region
        %s543 = ssub.s32 %s31, 1
        // Predicated region
        $region13: #{protein_classifier_forward.5} parent=11 // pred_check
          %p544 = pneg %p104
        $region14: #{protein_classifier_forward.5} parent=11 // pred_check_branch
          %546 = sbr.rel (%p544) target = $region16
        $region15: #{protein_classifier_forward.5} parent=11 // pred_region
          _
        $region16: #{protein_classifier_forward.5} parent=11 // pred_fallthru
          _
        // Predicated region
        $region17: #{protein_classifier_forward.5} parent=11 // pred_check
          %p547 = pneg %p125
        $region18: #{protein_classifier_forward.5} parent=11 // pred_check_branch
          %549 = sbr.rel (%p547) target = $region20
        $region19: #{protein_classifier_forward.5} parent=11 // pred_region
          _
        $region20: #{protein_classifier_forward.5} parent=11 // pred_fallthru
          _
        // Predicated region
        $region21: #{protein_classifier_forward.5} parent=11 // pred_check
          %p550 = pneg %p146
        $region22: #{protein_classifier_forward.5} parent=11 // pred_check_branch
          %552 = sbr.rel (%p550) target = $region24
        $region23: #{protein_classifier_forward.5} parent=11 // pred_region
          _
        $region24: #{protein_classifier_forward.5} parent=11 // pred_fallthru
          _
        // Predicated region
        $region25: #{protein_classifier_forward.5} parent=11 // pred_check
          %p553 = pneg %p167
        $region26: #{protein_classifier_forward.5} parent=11 // pred_check_branch
          %555 = sbr.rel (%p553) target = $region28
        $region27: #{protein_classifier_forward.5} parent=11 // pred_region
          _
        $region28: #{protein_classifier_forward.5} parent=11 // pred_fallthru
          _
        // Predicated region
        $region29: #{protein_classifier_forward.5} parent=11 // pred_check
          %p556 = pneg %p188
        $region30: #{protein_classifier_forward.5} parent=11 // pred_check_branch
          %558 = sbr.rel (%p556) target = $region32
        $region31: #{protein_classifier_forward.5} parent=11 // pred_region
          _
        $region32: #{protein_classifier_forward.5} parent=11 // pred_fallthru
          _
        // Predicated region
        $region33: #{protein_classifier_forward.5} parent=11 // pred_check
          %p559 = pneg %p209
        $region34: #{protein_classifier_forward.5} parent=11 // pred_check_branch
          %561 = sbr.rel (%p559) target = $region36
        $region35: #{protein_classifier_forward.5} parent=11 // pred_region
          _
        $region36: #{protein_classifier_forward.5} parent=11 // pred_fallthru
          _
        // Predicated region
        $region37: #{protein_classifier_forward.5} parent=11 // pred_check
          %p562 = pneg %p230
        $region38: #{protein_classifier_forward.5} parent=11 // pred_check_branch
          %564 = sbr.rel (%p562) target = $region40
        $region39: #{protein_classifier_forward.5} parent=11 // pred_region
          _
        $region40: #{protein_classifier_forward.5} parent=11 // pred_fallthru
          _
        // Predicated region
        $region41: #{protein_classifier_forward.5} parent=11 // pred_check
          %p565 = pneg %p251
        $region42: #{protein_classifier_forward.5} parent=11 // pred_check_branch
          %567 = sbr.rel (%p565) target = $region44
        $region43: #{protein_classifier_forward.5} parent=11 // pred_region
          _
        $region44: #{protein_classifier_forward.5} parent=11 // pred_fallthru
          _
        // Predicated region
        $region45: #{protein_classifier_forward.5} parent=11 // pred_check
          %p568 = pneg %p272
        $region46: #{protein_classifier_forward.5} parent=11 // pred_check_branch
          %570 = sbr.rel (%p568) target = $region48
        $region47: #{protein_classifier_forward.5} parent=11 // pred_region
          _
        $region48: #{protein_classifier_forward.5} parent=11 // pred_fallthru
          _
        // Predicated region
        $region49: #{protein_classifier_forward.5} parent=11 // pred_check
          %p571 = pneg %p293
        $region50: #{protein_classifier_forward.5} parent=11 // pred_check_branch
          %573 = sbr.rel (%p571) target = $region52
        $region51: #{protein_classifier_forward.5} parent=11 // pred_region
          _
        $region52: #{protein_classifier_forward.5} parent=11 // pred_fallthru
          _
        // Predicated region
        $region53: #{protein_classifier_forward.5} parent=11 // pred_check
          %p574 = pneg %p314
        $region54: #{protein_classifier_forward.5} parent=11 // pred_check_branch
          %576 = sbr.rel (%p574) target = $region56
        $region55: #{protein_classifier_forward.5} parent=11 // pred_region
          _
        $region56: #{protein_classifier_forward.5} parent=11 // pred_fallthru
          _
        // Predicated region
        $region57: #{protein_classifier_forward.5} parent=11 // pred_check
          %p577 = pneg %p335
        $region58: #{protein_classifier_forward.5} parent=11 // pred_check_branch
          %579 = sbr.rel (%p577) target = $region60
        $region59: #{protein_classifier_forward.5} parent=11 // pred_region
          _
        $region60: #{protein_classifier_forward.5} parent=11 // pred_fallthru
          _
        // Predicated region
        $region61: #{protein_classifier_forward.5} parent=11 // pred_check
          %p580 = pneg %p356
        $region62: #{protein_classifier_forward.5} parent=11 // pred_check_branch
          %582 = sbr.rel (%p580) target = $region64
        $region63: #{protein_classifier_forward.5} parent=11 // pred_region
          _
        $region64: #{protein_classifier_forward.5} parent=11 // pred_fallthru
          _
        // Predicated region
        $region65: #{protein_classifier_forward.5} parent=11 // pred_check
          %p583 = pneg %p377
        $region66: #{protein_classifier_forward.5} parent=11 // pred_check_branch
          %585 = sbr.rel (%p583) target = $region68
        $region67: #{protein_classifier_forward.5} parent=11 // pred_region
          _
        $region68: #{protein_classifier_forward.5} parent=11 // pred_fallthru
          _
        // Predicated region
        $region69: #{protein_classifier_forward.5} parent=11 // pred_check
          %p586 = pneg %p398
        $region70: #{protein_classifier_forward.5} parent=11 // pred_check_branch
          %588 = sbr.rel (%p586) target = $region72
        $region71: #{protein_classifier_forward.5} parent=11 // pred_region
          _
        $region72: #{protein_classifier_forward.5} parent=11 // pred_fallthru
          _
        // Predicated region
        $region73: #{protein_classifier_forward.5} parent=11 // pred_check
          %p589 = pneg %p419
        $region74: #{protein_classifier_forward.5} parent=11 // pred_check_branch
          %591 = sbr.rel (%p589) target = $region76
        $region75: #{protein_classifier_forward.5} parent=11 // pred_region
          _
        $region76: #{protein_classifier_forward.5} parent=11 // pred_fallthru
          _
        // Predicated region
        $region77: #{protein_classifier_forward.5} parent=11 // pred_check
          %p592 = pneg %p440
        $region78: #{protein_classifier_forward.5} parent=11 // pred_check_branch
          %594 = sbr.rel (%p592) target = $region80
        $region79: #{protein_classifier_forward.5} parent=11 // pred_region
          _
        $region80: #{protein_classifier_forward.5} parent=11 // pred_fallthru
          _
        // Predicated region
        $region81: #{protein_classifier_forward.5} parent=11 // pred_check
          %p595 = pneg %p461
        $region82: #{protein_classifier_forward.5} parent=11 // pred_check_branch
          %597 = sbr.rel (%p595) target = $region84
        $region83: #{protein_classifier_forward.5} parent=11 // pred_region
          _
        $region84: #{protein_classifier_forward.5} parent=11 // pred_fallthru
          _
        // Predicated region
        $region85: #{protein_classifier_forward.5} parent=11 // pred_check
          %p598 = pneg %p482
        $region86: #{protein_classifier_forward.5} parent=11 // pred_check_branch
          %600 = sbr.rel (%p598) target = $region88
        $region87: #{protein_classifier_forward.5} parent=11 // pred_region
          _
        $region88: #{protein_classifier_forward.5} parent=11 // pred_fallthru
          _
        // Predicated region
        $region89: #{protein_classifier_forward.5} parent=11 // pred_check
          %p601 = pneg %p503
        $region90: #{protein_classifier_forward.5} parent=11 // pred_check_branch
          %603 = sbr.rel (%p601) target = $region92
        $region91: #{protein_classifier_forward.5} parent=11 // pred_region
          _
        $region92: #{protein_classifier_forward.5} parent=11 // pred_fallthru
          _
      $region12: #{protein_classifier_forward.5} parent=5 // pred_fallthru
        _
      %p604 = scmp.lt.s32.totalorder %s31, 2
      // Predicated region
      $region93: #{protein_classifier_forward.5} parent=5 // pred_check
        %p605 = pneg %p604
      $region94: #{protein_classifier_forward.5} parent=5 // pred_check_branch
        %607 = sbr.rel (%p605) target = $region96
      $region95: #{protein_classifier_forward.5} parent=5 // pred_region
        // Predicated region
        $region97: #{protein_classifier_forward.5} parent=95 // pred_check
          %p608 = pneg %p51
        $region98: #{protein_classifier_forward.5} parent=95 // pred_check_branch
          %610 = sbr.rel (%p608) target = $region100
        $region99: #{protein_classifier_forward.5} parent=95 // pred_region
          %p611 = scmp.lt.s32.totalorder %s31, 1
          %s612 = scalar_select %p611, %s31, 1
          %s613 = smul.addr %s612, 4
          %s614 = scalar_lea.vmem %s0, %s613
        $region100: #{protein_classifier_forward.5} parent=95 // pred_fallthru
          _
        // Predicated region
        $region101: #{protein_classifier_forward.5} parent=95 // pred_check
          %p615 = pneg %p77
        $region102: #{protein_classifier_forward.5} parent=95 // pred_check_branch
          %617 = sbr.rel (%p615) target = $region104
        $region103: #{protein_classifier_forward.5} parent=95 // pred_region
          %p618 = scmp.lt.s32.totalorder %s31, 1
          %s619 = scalar_select %p618, %s31, 1
          %s620 = scalar_lea.vmem %s1, %s619
        $region104: #{protein_classifier_forward.5} parent=95 // pred_fallthru
          _
      $region96: #{protein_classifier_forward.5} parent=5 // pred_fallthru
        _
      %p621 = scmp.le.s32.totalorder 1, %s31
      %p622 = scmp.lt.s32.totalorder %s31, 3
      %p623 = pnand %p621, %p622
      %p624 = pneg %p623
      // Predicated region
      $region105: #{protein_classifier_forward.5} parent=5 // pred_check
        _
      $region106: #{protein_classifier_forward.5} parent=5 // pred_check_branch
        %626 = sbr.rel (%p623) target = $region108
      $region107: #{protein_classifier_forward.5} parent=5 // pred_region
        %s627 = ssub.s32 %s31, 1
        %p628 = scmp.lt.s32.totalorder %s36, 1
        %s629 = scalar_select %p628, %s36, 1
        %s630 = smul.addr %s629, 4
        %s631 = scalar_lea.vmem %s0, %s630
        %p632 = pneg %p57
        %p633 = pneg %p54
        %p634 = scmp.lt.s32.totalorder %s36, 1
        %s635 = scalar_select %p634, %s36, 1
        %s636 = scalar_lea.vmem %s1, %s635
        %p637 = pneg %p83
        %p638 = pneg %p80
        %p639 = pneg %p104
        %p640 = pneg %p101
        %p641 = pneg %p125
        %p642 = pneg %p122
        %p643 = pneg %p146
        %p644 = pneg %p143
        %p645 = pneg %p167
        %p646 = pneg %p164
        %p647 = pneg %p188
        %p648 = pneg %p185
        %p649 = pneg %p209
        %p650 = pneg %p206
        %p651 = pneg %p230
        %p652 = pneg %p227
        %p653 = pneg %p251
        %p654 = pneg %p248
        %p655 = pneg %p272
        %p656 = pneg %p269
        %p657 = pneg %p293
        %p658 = pneg %p290
        %p659 = pneg %p314
        %p660 = pneg %p311
        %p661 = pneg %p335
        %p662 = pneg %p332
        %p663 = pneg %p356
        %p664 = pneg %p353
        %p665 = pneg %p377
        %p666 = pneg %p374
        %p667 = pneg %p398
        %p668 = pneg %p395
        %p669 = pneg %p419
        %p670 = pneg %p416
        %p671 = pneg %p440
        %p672 = pneg %p437
        %p673 = pneg %p461
        %p674 = pneg %p458
        %p675 = pneg %p482
        %p676 = pneg %p479
        %p677 = pneg %p503
        %p678 = pneg %p500
        %p679 = pneg %p529
        %p680 = pneg %p526
        %s681 = sand.u32 %s516, 1
        %s682 = scalar_lea.sflag [#allocation3], %s681
        %s683 = sand.u32 %s516, 1
        %s684 = scalar_lea.vmem [#allocation2], %s683
        %p685 = scmp.lt.s32.totalorder %s36, 1
        %s686 = scalar_select %p685, %s36, 1
        %s687 = smul.addr %s686, 4
        %s688 = scalar_lea.vmem %s0, %s687
        %p689 = scmp.lt.s32.totalorder %s36, 1
        %s690 = scalar_select %p689, %s36, 1
        %s691 = scalar_lea.vmem %s1, %s690
        %v693 = vld [vmem:[%s688] sm:$0xf]
        %v694 = vunpack.c.l.bf16 %v693
        %v695 = vld [vmem:[%s691] sm:$0x1]
        %v697 = vlaneseq
        %v698 = vshrl.u32 %v697, 7
        %v699 = vsub.s32 0, %v698
        %v700 = vrot.slane %v695, %v699
        loop: start=0, step=1, limit=2
        $region109: #{protein_classifier_forward.5} parent=107 // loop_pre_header
          _
        $region110: #{protein_classifier_forward.5} parent=107 // loop_header
          %s703 = sphi 0, %s707
          %p704 = scmp.ge.s32.totalorder %s703, 2
          %v708 = vphi 0.0, %v1135
        $region111: #{protein_classifier_forward.5} parent=107 // loop_header_branch
          %706 = sbr.rel (%p704) target = $region115
        $region112: #{protein_classifier_forward.5} parent=107 // loop_body
          %s709 = smul.u32 %s703, 8
          %s710 = smul.addr %s709, 4
          %s711 = scalar_lea.vmem %s2, %s710
          %v712 = vld [vmem:[%s711] sm:$0xf]
          %v713 = vld [vmem:[%s711 + $0x4] sm:$0xf]
          %v714 = vld [vmem:[%s711 + $0x8] sm:$0xf]
          %v715 = vld [vmem:[%s711 + $0xc] sm:$0xf]
          %v716 = vld [vmem:[%s711 + $0x10] sm:$0xf]
          %v717 = vld [vmem:[%s711 + $0x14] sm:$0xf]
          %v718 = vld [vmem:[%s711 + $0x18] sm:$0xf]
          %v719 = vld [vmem:[%s711 + $0x1c] sm:$0xf]
          %s720 = scalar_lea.vmem %s3, %s703
          %v721 = vld [vmem:[%s720] sm:$0x1]
          %v723 = vlaneseq
          %v724 = vshrl.u32 %v723, 7
          %v725 = vsub.s32 0, %v724
          %v726 = vrot.slane %v721, %v725
          %v736 = vunpack.c.l.b16 %v712
          %v737 = vunpack.c.l.b16 %v713
          %v738 = vunpack.c.l.b16 %v714
          %v739 = vunpack.c.l.b16 %v715
          %v740 = vunpack.c.l.b16 %v716
          %v741 = vunpack.c.l.b16 %v717
          %v742 = vunpack.c.l.b16 %v718
          %v743 = vunpack.c.l.b16 %v719
          %v744 = vpack.c.b16 %v737, %v736
          %v745 = vpack.c.b16 %v739, %v738
          %v746 = vpack.c.b16 %v741, %v740
          %v747 = vpack.c.b16 %v743, %v742
          %vm752 = vcmask 523264
          %v754 = vsel %vm752, %v693, 0
          %756 = vmatprep.subr.bf16.mxu0 0
          %757 = vmatpush1.bf16.msra.mxu0 %v744
          %758 = vmatprep.subr.bf16.mxu0 0
          %759 = vmatpush1.bf16.msra.mxu0 %v745
          %760 = vmatprep.subr.bf16.mxu0 0
          %761 = vmatpush1.bf16.msra.mxu0 %v746
          %762 = vmatprep.subr.bf16.mxu0 0
          %763 = vmatpush1.bf16.msra.mxu0 %v747
          %764 = vmatprep.subr.bf16.mxu0 0
          %765 = vmatpush1.bf16.msra.mxu0 0
          %766 = vmatprep.subr.bf16.mxu0 0
          %767 = vmatpush1.bf16.msra.mxu0 0
          %768 = vmatprep.subr.bf16.mxu0 0
          %769 = vmatpush1.bf16.msra.mxu0 0
          %770 = vmatprep.subr.bf16.mxu0 0
          %771 = vmatpush1.bf16.msra.mxu0 0
          %772 = vmatprep.subr.bf16.mxu0 0
          %773 = vmatpush1.bf16.msra.mxu0 0
          %774 = vmatprep.subr.bf16.mxu0 0
          %775 = vmatpush1.bf16.msra.mxu0 0
          %776 = vmatprep.subr.bf16.mxu0 0
          %777 = vmatpush1.bf16.msra.mxu0 0
          %778 = vmatprep.subr.bf16.mxu0 0
          %779 = vmatpush1.bf16.msra.mxu0 0
          %780 = vmatprep.subr.bf16.mxu0 0
          %781 = vmatpush1.bf16.msra.mxu0 0
          %782 = vmatprep.subr.bf16.mxu0 0
          %783 = vmatpush1.bf16.msra.mxu0 0
          %784 = vmatprep.subr.bf16.mxu0 0
          %785 = vmatpush1.bf16.msra.mxu0 0
          %786 = vmatprep.subr.bf16.mxu0 0
          %787 = vmatpush1.bf16.msra.mxu0 0
          %788 = vmatprep.mubr.bf16.mxu0 0
          %789 = vmatmul.mubr.bf16.gmra.mrb[0].mxu0 %v754
          %v790 = vpop.f32.mrb[0].mxu0
          %v791 = vadd.f32 %v726, %v790
          %v792 = vpop.f32.mrb[0].mxu0
          %v793 = vpop.f32.mrb[0].mxu0
          %v794 = vpop.f32.mrb[0].mxu0
          %795 = vdwg.mxu0
          %s796 = smul.addr %s709, 4
          %s797 = scalar_lea.vmem %s4, %s796
          %v798 = vld [vmem:[%s797] sm:$0xf]
          %v799 = vld [vmem:[%s797 + $0x4] sm:$0xf]
          %v800 = vld [vmem:[%s797 + $0x8] sm:$0xf]
          %v801 = vld [vmem:[%s797 + $0xc] sm:$0xf]
          %v802 = vld [vmem:[%s797 + $0x10] sm:$0xf]
          %v803 = vld [vmem:[%s797 + $0x14] sm:$0xf]
          %v804 = vld [vmem:[%s797 + $0x18] sm:$0xf]
          %v805 = vld [vmem:[%s797 + $0x1c] sm:$0xf]
          %s806 = scalar_lea.vmem %s5, %s703
          %v807 = vld [vmem:[%s806] sm:$0x1]
          %v809 = vlaneseq
          %v810 = vshrl.u32 %v809, 7
          %v811 = vsub.s32 0, %v810
          %v812 = vrot.slane %v807, %v811
          %v822 = vunpack.c.l.b16 %v798
          %v823 = vunpack.c.l.b16 %v799
          %v824 = vunpack.c.l.b16 %v800
          %v825 = vunpack.c.l.b16 %v801
          %v826 = vunpack.c.l.b16 %v802
          %v827 = vunpack.c.l.b16 %v803
          %v828 = vunpack.c.l.b16 %v804
          %v829 = vunpack.c.l.b16 %v805
          %v830 = vpack.c.b16 %v823, %v822
          %v831 = vpack.c.b16 %v825, %v824
          %v832 = vpack.c.b16 %v827, %v826
          %v833 = vpack.c.b16 %v829, %v828
          %838 = vmatprep.subr.bf16.mxu0 0
          %839 = vmatpush1.bf16.msra.mxu0 %v830
          %840 = vmatprep.subr.bf16.mxu0 0
          %841 = vmatpush1.bf16.msra.mxu0 %v831
          %842 = vmatprep.subr.bf16.mxu0 0
          %843 = vmatpush1.bf16.msra.mxu0 %v832
          %844 = vmatprep.subr.bf16.mxu0 0
          %845 = vmatpush1.bf16.msra.mxu0 %v833
          %846 = vmatprep.subr.bf16.mxu0 0
          %847 = vmatpush1.bf16.msra.mxu0 0
          %848 = vmatprep.subr.bf16.mxu0 0
          %849 = vmatpush1.bf16.msra.mxu0 0
          %850 = vmatprep.subr.bf16.mxu0 0
          %851 = vmatpush1.bf16.msra.mxu0 0
          %852 = vmatprep.subr.bf16.mxu0 0
          %853 = vmatpush1.bf16.msra.mxu0 0
          %854 = vmatprep.subr.bf16.mxu0 0
          %855 = vmatpush1.bf16.msra.mxu0 0
          %856 = vmatprep.subr.bf16.mxu0 0
          %857 = vmatpush1.bf16.msra.mxu0 0
          %858 = vmatprep.subr.bf16.mxu0 0
          %859 = vmatpush1.bf16.msra.mxu0 0
          %860 = vmatprep.subr.bf16.mxu0 0
          %861 = vmatpush1.bf16.msra.mxu0 0
          %862 = vmatprep.subr.bf16.mxu0 0
          %863 = vmatpush1.bf16.msra.mxu0 0
          %864 = vmatprep.subr.bf16.mxu0 0
          %865 = vmatpush1.bf16.msra.mxu0 0
          %866 = vmatprep.subr.bf16.mxu0 0
          %867 = vmatpush1.bf16.msra.mxu0 0
          %868 = vmatprep.subr.bf16.mxu0 0
          %869 = vmatpush1.bf16.msra.mxu0 0
          %870 = vmatprep.mubr.bf16.mxu0 0
          %871 = vmatmul.mubr.bf16.gmra.mrb[0].mxu0 %v754
          %v872 = vpop.f32.mrb[0].mxu0
          %v873 = vadd.f32 %v812, %v872
          %v874 = vpop.f32.mrb[0].mxu0
          %v875 = vpop.f32.mrb[0].mxu0
          %v876 = vpop.f32.mrb[0].mxu0
          %877 = vdwg.mxu0
          %s878 = smul.addr %s709, 4
          %s879 = scalar_lea.vmem %s6, %s878
          %v880 = vld [vmem:[%s879] sm:$0xf]
          %v881 = vld [vmem:[%s879 + $0x4] sm:$0xf]
          %v882 = vld [vmem:[%s879 + $0x8] sm:$0xf]
          %v883 = vld [vmem:[%s879 + $0xc] sm:$0xf]
          %v884 = vld [vmem:[%s879 + $0x10] sm:$0xf]
          %v885 = vld [vmem:[%s879 + $0x14] sm:$0xf]
          %v886 = vld [vmem:[%s879 + $0x18] sm:$0xf]
          %v887 = vld [vmem:[%s879 + $0x1c] sm:$0xf]
          %s888 = scalar_lea.vmem %s7, %s703
          %v889 = vld [vmem:[%s888] sm:$0x1]
          %v891 = vlaneseq
          %v892 = vshrl.u32 %v891, 7
          %v893 = vsub.s32 0, %v892
          %v894 = vrot.slane %v889, %v893
          %v904 = vunpack.c.l.b16 %v880
          %v905 = vunpack.c.l.b16 %v881
          %v906 = vunpack.c.l.b16 %v882
          %v907 = vunpack.c.l.b16 %v883
          %v908 = vunpack.c.l.b16 %v884
          %v909 = vunpack.c.l.b16 %v885
          %v910 = vunpack.c.l.b16 %v886
          %v911 = vunpack.c.l.b16 %v887
          %v912 = vpack.c.b16 %v905, %v904
          %v913 = vpack.c.b16 %v907, %v906
          %v914 = vpack.c.b16 %v909, %v908
          %v915 = vpack.c.b16 %v911, %v910
          %920 = vmatprep.subr.bf16.mxu0 0
          %921 = vmatpush1.bf16.msra.mxu0 %v912
          %922 = vmatprep.subr.bf16.mxu0 0
          %923 = vmatpush1.bf16.msra.mxu0 %v913
          %924 = vmatprep.subr.bf16.mxu0 0
          %925 = vmatpush1.bf16.msra.mxu0 %v914
          %926 = vmatprep.subr.bf16.mxu0 0
          %927 = vmatpush1.bf16.msra.mxu0 %v915
          %928 = vmatprep.subr.bf16.mxu0 0
          %929 = vmatpush1.bf16.msra.mxu0 0
          %930 = vmatprep.subr.bf16.mxu0 0
          %931 = vmatpush1.bf16.msra.mxu0 0
          %932 = vmatprep.subr.bf16.mxu0 0
          %933 = vmatpush1.bf16.msra.mxu0 0
          %934 = vmatprep.subr.bf16.mxu0 0
          %935 = vmatpush1.bf16.msra.mxu0 0
          %936 = vmatprep.subr.bf16.mxu0 0
          %937 = vmatpush1.bf16.msra.mxu0 0
          %938 = vmatprep.subr.bf16.mxu0 0
          %939 = vmatpush1.bf16.msra.mxu0 0
          %940 = vmatprep.subr.bf16.mxu0 0
          %941 = vmatpush1.bf16.msra.mxu0 0
          %942 = vmatprep.subr.bf16.mxu0 0
          %943 = vmatpush1.bf16.msra.mxu0 0
          %944 = vmatprep.subr.bf16.mxu0 0
          %945 = vmatpush1.bf16.msra.mxu0 0
          %946 = vmatprep.subr.bf16.mxu0 0
          %947 = vmatpush1.bf16.msra.mxu0 0
          %948 = vmatprep.subr.bf16.mxu0 0
          %949 = vmatpush1.bf16.msra.mxu0 0
          %950 = vmatprep.subr.bf16.mxu0 0
          %951 = vmatpush1.bf16.msra.mxu0 0
          %952 = vmatprep.mubr.bf16.mxu0 0
          %953 = vmatmul.mubr.bf16.gmra.mrb[0].mxu0 %v754
          %v954 = vpop.f32.mrb[0].mxu0
          %v955 = vadd.f32 %v894, %v954
          %v956 = vpop.f32.mrb[0].mxu0
          %v957 = vpop.f32.mrb[0].mxu0
          %v958 = vpop.f32.mrb[0].mxu0
          %959 = vdwg.mxu0
          %v960 = vpack.c.bf16 %v791, %v791
          %v961 = vpack.c.bf16 %v873, %v873
          %vm962 = vcmask 261120
          %v964 = vsel %vm962, %v960, 0
          %v967 = vsel %vm962, %v961, 0
          %969 = vmatprep.subr.bf16.mxu0 0
          %970 = vmatpush1.bf16.xpose.msra.mxu0 %v967
          %971 = vmatprep.subr.bf16.mxu0 0
          %972 = vmatpush1.bf16.xpose.msra.mxu0 0
          %973 = vmatprep.subr.bf16.mxu0 0
          %974 = vmatpush1.bf16.xpose.msra.mxu0 0
          %975 = vmatprep.subr.bf16.mxu0 0
          %976 = vmatpush1.bf16.xpose.msra.mxu0 0
          %977 = vmatprep.subr.bf16.mxu0 0
          %978 = vmatpush1.bf16.xpose.msra.mxu0 0
          %979 = vmatprep.subr.bf16.mxu0 0
          %980 = vmatpush1.bf16.xpose.msra.mxu0 0
          %981 = vmatprep.subr.bf16.mxu0 0
          %982 = vmatpush1.bf16.xpose.msra.mxu0 0
          %983 = vmatprep.subr.bf16.mxu0 0
          %984 = vmatpush1.bf16.xpose.msra.mxu0 0
          %985 = vmatprep.subr.bf16.mxu0 0
          %986 = vmatpush1.bf16.xpose.msra.mxu0 0
          %987 = vmatprep.subr.bf16.mxu0 0
          %988 = vmatpush1.bf16.xpose.msra.mxu0 0
          %989 = vmatprep.subr.bf16.mxu0 0
          %990 = vmatpush1.bf16.xpose.msra.mxu0 0
          %991 = vmatprep.subr.bf16.mxu0 0
          %992 = vmatpush1.bf16.xpose.msra.mxu0 0
          %993 = vmatprep.subr.bf16.mxu0 0
          %994 = vmatpush1.bf16.xpose.msra.mxu0 0
          %995 = vmatprep.subr.bf16.mxu0 0
          %996 = vmatpush1.bf16.xpose.msra.mxu0 0
          %997 = vmatprep.subr.bf16.mxu0 0
          %998 = vmatpush1.bf16.xpose.msra.mxu0 0
          %999 = vmatprep.subr.bf16.mxu0 0
          %1000 = vmatpush1.bf16.xpose.msra.mxu0 0
          %1001 = vmatprep.mubr.bf16.mxu0 0
          %1002 = vmatmul.mubr.bf16.gmra.mrb[0].mxu0 %v964
          %v1003 = vpop.f32.mrb[0].mxu0
          %v1004 = vadd.f32 0.0, %v1003
          %v1005 = vpop.f32.mrb[0].mxu0
          %v1006 = vpop.f32.mrb[0].mxu0
          %v1007 = vpop.f32.mrb[0].mxu0
          %1008 = vdwg.mxu0
          %v1009 = vmul.f32 %v1004, 0.17677669
          %v1010 = vadd.f32 %v1009, %v700
          %vm1011 = vcmask 64512
          %v1012 = vsel %vm1011, %v1010, -inf
          %1013 = vmax.xlane.f32.xlu0 %v1012
          %v1014 = vpop.xlane.xlu0 %1013
          %v1015 = vsub.f32 %v1010, %v1014
          %v1016 = vmul.f32 %v1015, 1.442695
          %v1017 = vpow.pop %v1016
          %v1018 = vsel %vm1011, %v1017, 0.0
          %1019 = vadd.xlane.f32.xlu0 %v1018
          %v1020 = vpop.xlane.xlu0 %1019
          %v1021 = vrcp.pop %v1020
          %v1022 = vmul.f32 %v1017, %v1021
          %v1023 = vpack.c.bf16 %v1022, %v1022
          %v1024 = vpack.c.bf16 %v955, %v955
          %v1026 = vsel %vm1011, %v1023, 0
          %vm1028 = vcmask 1043456
          %v1030 = vsel %vm1028, %v1024, 0
          %1032 = vmatprep.subr.bf16.mxu0 0
          %1033 = vmatpush1.bf16.msra.mxu0 %v1030
          %1034 = vmatprep.subr.bf16.mxu0 0
          %1035 = vmatpush1.bf16.msra.mxu0 0
          %1036 = vmatprep.subr.bf16.mxu0 0
          %1037 = vmatpush1.bf16.msra.mxu0 0
          %1038 = vmatprep.subr.bf16.mxu0 0
          %1039 = vmatpush1.bf16.msra.mxu0 0
          %1040 = vmatprep.subr.bf16.mxu0 0
          %1041 = vmatpush1.bf16.msra.mxu0 0
          %1042 = vmatprep.subr.bf16.mxu0 0
          %1043 = vmatpush1.bf16.msra.mxu0 0
          %1044 = vmatprep.subr.bf16.mxu0 0
          %1045 = vmatpush1.bf16.msra.mxu0 0
          %1046 = vmatprep.subr.bf16.mxu0 0
          %1047 = vmatpush1.bf16.msra.mxu0 0
          %1048 = vmatprep.subr.bf16.mxu0 0
          %1049 = vmatpush1.bf16.msra.mxu0 0
          %1050 = vmatprep.subr.bf16.mxu0 0
          %1051 = vmatpush1.bf16.msra.mxu0 0
          %1052 = vmatprep.subr.bf16.mxu0 0
          %1053 = vmatpush1.bf16.msra.mxu0 0
          %1054 = vmatprep.subr.bf16.mxu0 0
          %1055 = vmatpush1.bf16.msra.mxu0 0
          %1056 = vmatprep.subr.bf16.mxu0 0
          %1057 = vmatpush1.bf16.msra.mxu0 0
          %1058 = vmatprep.subr.bf16.mxu0 0
          %1059 = vmatpush1.bf16.msra.mxu0 0
          %1060 = vmatprep.subr.bf16.mxu0 0
          %1061 = vmatpush1.bf16.msra.mxu0 0
          %1062 = vmatprep.subr.bf16.mxu0 0
          %1063 = vmatpush1.bf16.msra.mxu0 0
          %1064 = vmatprep.mubr.bf16.mxu0 0
          %1065 = vmatmul.mubr.bf16.gmra.mrb[0].mxu0 %v1026
          %v1066 = vpop.f32.mrb[0].mxu0
          %v1067 = vadd.f32 0.0, %v1066
          %v1068 = vpop.f32.mrb[0].mxu0
          %v1069 = vpop.f32.mrb[0].mxu0
          %v1070 = vpop.f32.mrb[0].mxu0
          %1071 = vdwg.mxu0
          %v1072 = vpack.c.bf16 %v1067, %v1067
          %s1073 = smul.u32 %s703, 4
          %s1074 = smul.addr %s1073, 4
          %s1075 = scalar_lea.vmem %s8, %s1074
          %v1076 = vld [vmem:[%s1075] sm:$0xf]
          %v1077 = vld [vmem:[%s1075 + $0x4] sm:$0xf]
          %v1078 = vld [vmem:[%s1075 + $0x8] sm:$0xf]
          %v1079 = vld [vmem:[%s1075 + $0xc] sm:$0xf]
          %v1084 = vunpack.c.l.b16 %v1076
          %v1085 = vunpack.c.l.b16 %v1077
          %v1086 = vunpack.c.l.b16 %v1078
          %v1087 = vunpack.c.l.b16 %v1079
          %v1088 = vpack.c.b16 %v1085, %v1084
          %v1089 = vpack.c.b16 %v1087, %v1086
          %v1093 = vsel %vm962, %v1072, 0
          %1095 = vmatprep.subr.bf16.mxu0 0
          %1096 = vmatpush1.bf16.msra.mxu0 %v1088
          %1097 = vmatprep.subr.bf16.mxu0 0
          %1098 = vmatpush1.bf16.msra.mxu0 %v1089
          %1099 = vmatprep.subr.bf16.mxu0 0
          %1100 = vmatpush1.bf16.msra.mxu0 0
          %1101 = vmatprep.subr.bf16.mxu0 0
          %1102 = vmatpush1.bf16.msra.mxu0 0
          %1103 = vmatprep.subr.bf16.mxu0 0
          %1104 = vmatpush1.bf16.msra.mxu0 0
          %1105 = vmatprep.subr.bf16.mxu0 0
          %1106 = vmatpush1.bf16.msra.mxu0 0
          %1107 = vmatprep.subr.bf16.mxu0 0
          %1108 = vmatpush1.bf16.msra.mxu0 0
          %1109 = vmatprep.subr.bf16.mxu0 0
          %1110 = vmatpush1.bf16.msra.mxu0 0
          %1111 = vmatprep.subr.bf16.mxu0 0
          %1112 = vmatpush1.bf16.msra.mxu0 0
          %1113 = vmatprep.subr.bf16.mxu0 0
          %1114 = vmatpush1.bf16.msra.mxu0 0
          %1115 = vmatprep.subr.bf16.mxu0 0
          %1116 = vmatpush1.bf16.msra.mxu0 0
          %1117 = vmatprep.subr.bf16.mxu0 0
          %1118 = vmatpush1.bf16.msra.mxu0 0
          %1119 = vmatprep.subr.bf16.mxu0 0
          %1120 = vmatpush1.bf16.msra.mxu0 0
          %1121 = vmatprep.subr.bf16.mxu0 0
          %1122 = vmatpush1.bf16.msra.mxu0 0
          %1123 = vmatprep.subr.bf16.mxu0 0
          %1124 = vmatpush1.bf16.msra.mxu0 0
          %1125 = vmatprep.subr.bf16.mxu0 0
          %1126 = vmatpush1.bf16.msra.mxu0 0
          %1127 = vmatprep.mubr.bf16.mxu0 0
          %1128 = vmatmul.mubr.bf16.gmra.mrb[0].mxu0 %v1093
          %v1129 = vpop.f32.mrb[0].mxu0
          %v1130 = vadd.f32 0.0, %v1129
          %v1131 = vpop.f32.mrb[0].mxu0
          %v1132 = vpop.f32.mrb[0].mxu0
          %v1133 = vpop.f32.mrb[0].mxu0
          %1134 = vdwg.mxu0
          %v1135 = vadd.f32 %v708, %v1130
        $region113: #{protein_classifier_forward.5} parent=107 // loop_footer
          %s707 = sadd.s32 1, %s703
        $region114: #{protein_classifier_forward.5} parent=107 // loop_footer_branch
          %702 = sbr.rel target = $region110
        $region115: #{protein_classifier_forward.5} parent=107 // loop_exit
          _
        %v1136 = vld [vmem:[%s9] sm:$0x1]
        %v1138 = vlaneseq
        %v1139 = vshrl.u32 %v1138, 7
        %v1140 = vsub.s32 0, %v1139
        %v1141 = vrot.slane %v1136, %v1140
        %v1143 = vadd.f32 %v708, %v1141
        %v1144 = vadd.f32 %v1143, %v694
        %v1145 = vld [vmem:[%s10] sm:$0x1]
        %v1146 = vld [vmem:[%s11] sm:$0x1]
        %vm1147 = vcmask 523264
        %v1148 = vsel %vm1147, %v1144, 0.0
        %1149 = vadd.xlane.f32.xlu0 %v1148
        %v1150 = vpop.xlane.xlu0 %1149
        %v1151 = vrcp.pop 64.0
        %v1152 = vmul.f32 %v1150, %v1151
        %v1153 = vsub.f32 %v1144, %v1152
        %v1154 = vmul.f32 %v1153, %v1153
        %v1155 = vsel %vm1147, %v1154, 0.0
        %1156 = vadd.xlane.f32.xlu0 %v1155
        %v1157 = vpop.xlane.xlu0 %1156
        %v1158 = vmul.f32 %v1157, %v1151
        %v1159 = vadd.f32 %v1158, 1e-12
        %v1160 = vrsqrt.pop %v1159
        %v1161 = vmul.f32 %v1153, %v1160
        %v1163 = vlaneseq
        %v1164 = vshrl.u32 %v1163, 7
        %v1165 = vsub.s32 0, %v1164
        %v1166 = vrot.slane %v1145, %v1165
        %v1168 = vmul.f32 %v1161, %v1166
        %v1170 = vlaneseq
        %v1171 = vshrl.u32 %v1170, 7
        %v1172 = vsub.s32 0, %v1171
        %v1173 = vrot.slane %v1146, %v1172
        %v1175 = vadd.f32 %v1168, %v1173
        %v1176 = vpack.c.bf16 %v1175, %v1175
        loop: start=0, step=1, limit=2
        $region116: #{protein_classifier_forward.5} parent=107 // loop_pre_header
          _
        $region117: #{protein_classifier_forward.5} parent=107 // loop_header
          %s1178 = sphi 0, %s1182
          %p1179 = scmp.ge.s32.totalorder %s1178, 2
          %v1183 = vphi 0.0, %v1390
        $region118: #{protein_classifier_forward.5} parent=107 // loop_header_branch
          %1181 = sbr.rel (%p1179) target = $region122
        $region119: #{protein_classifier_forward.5} parent=107 // loop_body
          %s1184 = smul.u32 %s1178, 128
          %s1185 = sshra.s32 %s1184, 7
          %s1186 = sand.u32 %s1184, 127
          %s1187 = smul.addr %s1185, 4
          %s1188 = scalar_lea.vmem %s12, %s1187
          %v1189 = vld [vmem:[%s1188] sm:$0xf]
          %v1190 = vld [vmem:[%s1188 + $0x8] sm:$0xf]
          %v1191 = vld [vmem:[%s1188 + $0x10] sm:$0xf]
          %v1192 = vld [vmem:[%s1188 + $0x18] sm:$0xf]
          %v1193 = vld [vmem:[%s1188 + $0x20] sm:$0xf]
          %v1194 = vld [vmem:[%s1188 + $0x28] sm:$0xf]
          %v1195 = vld [vmem:[%s1188 + $0x30] sm:$0xf]
          %v1196 = vld [vmem:[%s1188 + $0x38] sm:$0xf]
          %s1197 = scalar_lea.vmem %s13, %s1185
          %v1198 = vld [vmem:[%s1197] sm:$0x1]
          %v1200 = vlaneseq
          %v1201 = vshrl.u32 %v1200, 7
          %v1202 = vsub.s32 0, %v1201
          %v1203 = vrot.slane %v1198, %v1202
          %v1213 = vunpack.c.l.b16 %v1189
          %v1214 = vunpack.c.l.b16 %v1190
          %v1215 = vunpack.c.l.b16 %v1191
          %v1216 = vunpack.c.l.b16 %v1192
          %v1217 = vunpack.c.l.b16 %v1193
          %v1218 = vunpack.c.l.b16 %v1194
          %v1219 = vunpack.c.l.b16 %v1195
          %v1220 = vunpack.c.l.b16 %v1196
          %v1221 = vpack.c.b16 %v1214, %v1213
          %v1222 = vpack.c.b16 %v1216, %v1215
          %v1223 = vpack.c.b16 %v1218, %v1217
          %v1224 = vpack.c.b16 %v1220, %v1219
          %v1230 = vsel %vm1147, %v1176, 0
          %1232 = vmatprep.subr.bf16.mxu0 0
          %1233 = vmatpush1.bf16.msra.mxu0 %v1221
          %1234 = vmatprep.subr.bf16.mxu0 0
          %1235 = vmatpush1.bf16.msra.mxu0 %v1222
          %1236 = vmatprep.subr.bf16.mxu0 0
          %1237 = vmatpush1.bf16.msra.mxu0 %v1223
          %1238 = vmatprep.subr.bf16.mxu0 0
          %1239 = vmatpush1.bf16.msra.mxu0 %v1224
          %1240 = vmatprep.subr.bf16.mxu0 0
          %1241 = vmatpush1.bf16.msra.mxu0 0
          %1242 = vmatprep.subr.bf16.mxu0 0
          %1243 = vmatpush1.bf16.msra.mxu0 0
          %1244 = vmatprep.subr.bf16.mxu0 0
          %1245 = vmatpush1.bf16.msra.mxu0 0
          %1246 = vmatprep.subr.bf16.mxu0 0
          %1247 = vmatpush1.bf16.msra.mxu0 0
          %1248 = vmatprep.subr.bf16.mxu0 0
          %1249 = vmatpush1.bf16.msra.mxu0 0
          %1250 = vmatprep.subr.bf16.mxu0 0
          %1251 = vmatpush1.bf16.msra.mxu0 0
          %1252 = vmatprep.subr.bf16.mxu0 0
          %1253 = vmatpush1.bf16.msra.mxu0 0
          %1254 = vmatprep.subr.bf16.mxu0 0
          %1255 = vmatpush1.bf16.msra.mxu0 0
          %1256 = vmatprep.subr.bf16.mxu0 0
          %1257 = vmatpush1.bf16.msra.mxu0 0
          %1258 = vmatprep.subr.bf16.mxu0 0
          %1259 = vmatpush1.bf16.msra.mxu0 0
          %1260 = vmatprep.subr.bf16.mxu0 0
          %1261 = vmatpush1.bf16.msra.mxu0 0
          %1262 = vmatprep.subr.bf16.mxu0 0
          %1263 = vmatpush1.bf16.msra.mxu0 0
          %1264 = vmatprep.mubr.bf16.mxu0 0
          %1265 = vmatmul.mubr.bf16.gmra.mrb[0].mxu0 %v1230
          %v1266 = vpop.f32.mrb[0].mxu0
          %v1267 = vadd.f32 %v1203, %v1266
          %v1268 = vpop.f32.mrb[0].mxu0
          %v1269 = vpop.f32.mrb[0].mxu0
          %v1270 = vpop.f32.mrb[0].mxu0
          %1271 = vdwg.mxu0
          %v1272 = vmul.f32 %v1267, 0.5
          %v1273 = vmul.f32 %v1267, 0.044715
          %v1274 = vmul.f32 %v1273, %v1267
          %v1275 = vmul.f32 %v1274, %v1267
          %v1276 = vadd.f32 %v1267, %v1275
          %v1277 = vmul.f32 %v1276, 0.7978846
          %v1278 = vtanh.pop %v1277
          %v1279 = vadd.f32 %v1278, 1.0
          %v1280 = vmul.f32 %v1272, %v1279
          %v1281 = vpack.c.bf16 %v1280, %v1280
          %s1282 = sshra.s32 %s1184, 3
          %s1283 = sand.u32 %s1184, 7
          %s1284 = smul.addr %s1282, 4
          %s1285 = scalar_lea.vmem %s14, %s1284
          %v1286 = vld [vmem:[%s1285] sm:$0xf]
          %v1287 = vld [vmem:[%s1285 + $0x4] sm:$0xf]
          %v1288 = vld [vmem:[%s1285 + $0x8] sm:$0xf]
          %v1289 = vld [vmem:[%s1285 + $0xc] sm:$0xf]
          %v1290 = vld [vmem:[%s1285 + $0x10] sm:$0xf]
          %v1291 = vld [vmem:[%s1285 + $0x14] sm:$0xf]
          %v1292 = vld [vmem:[%s1285 + $0x18] sm:$0xf]
          %v1293 = vld [vmem:[%s1285 + $0x1c] sm:$0xf]
          %v1294 = vld [vmem:[%s1285 + $0x20] sm:$0xf]
          %v1295 = vld [vmem:[%s1285 + $0x24] sm:$0xf]
          %v1296 = vld [vmem:[%s1285 + $0x28] sm:$0xf]
          %v1297 = vld [vmem:[%s1285 + $0x2c] sm:$0xf]
          %v1298 = vld [vmem:[%s1285 + $0x30] sm:$0xf]
          %v1299 = vld [vmem:[%s1285 + $0x34] sm:$0xf]
          %v1300 = vld [vmem:[%s1285 + $0x38] sm:$0xf]
          %v1301 = vld [vmem:[%s1285 + $0x3c] sm:$0xf]
          %v1318 = vunpack.c.l.b16 %v1286
          %v1319 = vunpack.c.l.b16 %v1287
          %v1320 = vunpack.c.l.b16 %v1288
          %v1321 = vunpack.c.l.b16 %v1289
          %v1322 = vunpack.c.l.b16 %v1290
          %v1323 = vunpack.c.l.b16 %v1291
          %v1324 = vunpack.c.l.b16 %v1292
          %v1325 = vunpack.c.l.b16 %v1293
          %v1326 = vunpack.c.l.b16 %v1294
          %v1327 = vunpack.c.l.b16 %v1295
          %v1328 = vunpack.c.l.b16 %v1296
          %v1329 = vunpack.c.l.b16 %v1297
          %v1330 = vunpack.c.l.b16 %v1298
          %v1331 = vunpack.c.l.b16 %v1299
          %v1332 = vunpack.c.l.b16 %v1300
          %v1333 = vunpack.c.l.b16 %v1301
          %v1334 = vpack.c.b16 %v1319, %v1318
          %v1335 = vpack.c.b16 %v1321, %v1320
          %v1336 = vpack.c.b16 %v1323, %v1322
          %v1337 = vpack.c.b16 %v1325, %v1324
          %v1338 = vpack.c.b16 %v1327, %v1326
          %v1339 = vpack.c.b16 %v1329, %v1328
          %v1340 = vpack.c.b16 %v1331, %v1330
          %v1341 = vpack.c.b16 %v1333, %v1332
          %1350 = vmatprep.subr.bf16.mxu0 0
          %1351 = vmatpush1.bf16.msra.mxu0 %v1334
          %1352 = vmatprep.subr.bf16.mxu0 0
          %1353 = vmatpush1.bf16.msra.mxu0 %v1335
          %1354 = vmatprep.subr.bf16.mxu0 0
          %1355 = vmatpush1.bf16.msra.mxu0 %v1336
          %1356 = vmatprep.subr.bf16.mxu0 0
          %1357 = vmatpush1.bf16.msra.mxu0 %v1337
          %1358 = vmatprep.subr.bf16.mxu0 0
          %1359 = vmatpush1.bf16.msra.mxu0 %v1338
          %1360 = vmatprep.subr.bf16.mxu0 0
          %1361 = vmatpush1.bf16.msra.mxu0 %v1339
          %1362 = vmatprep.subr.bf16.mxu0 0
          %1363 = vmatpush1.bf16.msra.mxu0 %v1340
          %1364 = vmatprep.subr.bf16.mxu0 0
          %1365 = vmatpush1.bf16.msra.mxu0 %v1341
          %1366 = vmatprep.subr.bf16.mxu0 0
          %1367 = vmatpush1.bf16.msra.mxu0 0
          %1368 = vmatprep.subr.bf16.mxu0 0
          %1369 = vmatpush1.bf16.msra.mxu0 0
          %1370 = vmatprep.subr.bf16.mxu0 0
          %1371 = vmatpush1.bf16.msra.mxu0 0
          %1372 = vmatprep.subr.bf16.mxu0 0
          %1373 = vmatpush1.bf16.msra.mxu0 0
          %1374 = vmatprep.subr.bf16.mxu0 0
          %1375 = vmatpush1.bf16.msra.mxu0 0
          %1376 = vmatprep.subr.bf16.mxu0 0
          %1377 = vmatpush1.bf16.msra.mxu0 0
          %1378 = vmatprep.subr.bf16.mxu0 0
          %1379 = vmatpush1.bf16.msra.mxu0 0
          %1380 = vmatprep.subr.bf16.mxu0 0
          %1381 = vmatpush1.bf16.msra.mxu0 0
          %1382 = vmatprep.mubr.bf16.mxu0 0
          %1383 = vmatmul.mubr.bf16.gmra.mrb[0].mxu0 %v1281
          %v1384 = vpop.f32.mrb[0].mxu0
          %v1385 = vadd.f32 0.0, %v1384
          %v1386 = vpop.f32.mrb[0].mxu0
          %v1387 = vpop.f32.mrb[0].mxu0
          %v1388 = vpop.f32.mrb[0].mxu0
          %1389 = vdwg.mxu0
          %v1390 = vadd.f32 %v1183, %v1385
        $region120: #{protein_classifier_forward.5} parent=107 // loop_footer
          %s1182 = sadd.s32 1, %s1178
        $region121: #{protein_classifier_forward.5} parent=107 // loop_footer_branch
          %1177 = sbr.rel target = $region117
        $region122: #{protein_classifier_forward.5} parent=107 // loop_exit
          _
        %v1391 = vld [vmem:[%s15] sm:$0x1]
        %v1393 = vlaneseq
        %v1394 = vshrl.u32 %v1393, 7
        %v1395 = vsub.s32 0, %v1394
        %v1396 = vrot.slane %v1391, %v1395
        %v1398 = vadd.f32 %v1183, %v1396
        %v1399 = vadd.f32 %v1398, %v1175
        %v1400 = vld [vmem:[%s16] sm:$0x1]
        %v1401 = vld [vmem:[%s17] sm:$0x1]
        %v1402 = vsel %vm1147, %v1399, 0.0
        %1403 = vadd.xlane.f32.xlu0 %v1402
        %v1404 = vpop.xlane.xlu0 %1403
        %v1405 = vmul.f32 %v1404, %v1151
        %v1406 = vsub.f32 %v1399, %v1405
        %v1407 = vmul.f32 %v1406, %v1406
        %v1408 = vsel %vm1147, %v1407, 0.0
        %1409 = vadd.xlane.f32.xlu0 %v1408
        %v1410 = vpop.xlane.xlu0 %1409
        %v1411 = vmul.f32 %v1410, %v1151
        %v1412 = vadd.f32 %v1411, 1e-12
        %v1413 = vrsqrt.pop %v1412
        %v1414 = vmul.f32 %v1406, %v1413
        %v1416 = vlaneseq
        %v1417 = vshrl.u32 %v1416, 7
        %v1418 = vsub.s32 0, %v1417
        %v1419 = vrot.slane %v1400, %v1418
        %v1421 = vmul.f32 %v1414, %v1419
        %v1423 = vlaneseq
        %v1424 = vshrl.u32 %v1423, 7
        %v1425 = vsub.s32 0, %v1424
        %v1426 = vrot.slane %v1401, %v1425
        %v1428 = vadd.f32 %v1421, %v1426
        %v1429 = vpack.c.bf16 %v1428, %v1428
        %v1430 = vld [vmem:[%s18] sm:$0xf]
        %v1431 = vld [vmem:[%s18 + $0x4] sm:$0xf]
        %v1432 = vld [vmem:[%s18 + $0x8] sm:$0xf]
        %v1433 = vld [vmem:[%s18 + $0xc] sm:$0xf]
        %v1434 = vld [vmem:[%s18 + $0x10] sm:$0xf]
        %v1435 = vld [vmem:[%s18 + $0x14] sm:$0xf]
        %v1436 = vld [vmem:[%s18 + $0x18] sm:$0xf]
        %v1437 = vld [vmem:[%s18 + $0x1c] sm:$0xf]
        %v1438 = vld [vmem:[%s19] sm:$0x1]
        %v1447 = vunpack.c.l.b16 %v1430
        %v1448 = vunpack.c.l.b16 %v1431
        %v1449 = vunpack.c.l.b16 %v1432
        %v1450 = vunpack.c.l.b16 %v1433
        %v1451 = vunpack.c.l.b16 %v1434
        %v1452 = vunpack.c.l.b16 %v1435
        %v1453 = vunpack.c.l.b16 %v1436
        %v1454 = vunpack.c.l.b16 %v1437
        %v1455 = vpack.c.b16 %v1448, %v1447
        %v1456 = vpack.c.b16 %v1450, %v1449
        %v1457 = vpack.c.b16 %v1452, %v1451
        %v1458 = vpack.c.b16 %v1454, %v1453
        %v1464 = vsel %vm1147, %v1429, 0
        %1466 = vmatprep.subr.bf16.mxu0 0
        %1467 = vmatpush1.bf16.msra.mxu0 %v1455
        %1468 = vmatprep.subr.bf16.mxu0 0
        %1469 = vmatpush1.bf16.msra.mxu0 %v1456
        %1470 = vmatprep.subr.bf16.mxu0 0
        %1471 = vmatpush1.bf16.msra.mxu0 %v1457
        %1472 = vmatprep.subr.bf16.mxu0 0
        %1473 = vmatpush1.bf16.msra.mxu0 %v1458
        %1474 = vmatprep.subr.bf16.mxu0 0
        %1475 = vmatpush1.bf16.msra.mxu0 0
        %1476 = vmatprep.subr.bf16.mxu0 0
        %1477 = vmatpush1.bf16.msra.mxu0 0
        %1478 = vmatprep.subr.bf16.mxu0 0
        %1479 = vmatpush1.bf16.msra.mxu0 0
        %1480 = vmatprep.subr.bf16.mxu0 0
        %1481 = vmatpush1.bf16.msra.mxu0 0
        %1482 = vmatprep.subr.bf16.mxu0 0
        %1483 = vmatpush1.bf16.msra.mxu0 0
        %1484 = vmatprep.subr.bf16.mxu0 0
        %1485 = vmatpush1.bf16.msra.mxu0 0
        %1486 = vmatprep.subr.bf16.mxu0 0
        %1487 = vmatpush1.bf16.msra.mxu0 0
        %1488 = vmatprep.subr.bf16.mxu0 0
        %1489 = vmatpush1.bf16.msra.mxu0 0
        %1490 = vmatprep.subr.bf16.mxu0 0
        %1491 = vmatpush1.bf16.msra.mxu0 0
        %1492 = vmatprep.subr.bf16.mxu0 0
        %1493 = vmatpush1.bf16.msra.mxu0 0
        %1494 = vmatprep.subr.bf16.mxu0 0
        %1495 = vmatpush1.bf16.msra.mxu0 0
        %1496 = vmatprep.subr.bf16.mxu0 0
        %1497 = vmatpush1.bf16.msra.mxu0 0
        %1498 = vmatprep.mubr.bf16.mxu0 0
        %1499 = vmatmul.mubr.bf16.gmra.mrb[0].mxu0 %v1464
        %v1500 = vpop.f32.mrb[0].mxu0
        %v1501 = vadd.f32 %v1438, %v1500
        %v1502 = vpop.f32.mrb[0].mxu0
        %v1503 = vpop.f32.mrb[0].mxu0
        %v1504 = vpop.f32.mrb[0].mxu0
        %1505 = vdwg.mxu0
        %v1506 = vtanh.pop %v1501
        %v1507 = vpack.c.bf16 %v1506, %v1506
        %v1508 = vld [vmem:[%s20] sm:$0xf]
        %v1509 = vld [vmem:[%s20 + $0x4] sm:$0xf]
        %v1510 = vld [vmem:[%s20 + $0x8] sm:$0xf]
        %v1511 = vld [vmem:[%s20 + $0xc] sm:$0xf]
        %v1512 = vld [vmem:[%s20 + $0x10] sm:$0xf]
        %v1513 = vld [vmem:[%s20 + $0x14] sm:$0xf]
        %v1514 = vld [vmem:[%s20 + $0x18] sm:$0xf]
        %v1515 = vld [vmem:[%s20 + $0x1c] sm:$0xf]
        %v1516 = vld [vmem:[%s21] sm:$0x1]
        %v1525 = vunpack.c.l.b16 %v1508
        %v1526 = vunpack.c.l.b16 %v1509
        %v1527 = vunpack.c.l.b16 %v1510
        %v1528 = vunpack.c.l.b16 %v1511
        %v1529 = vunpack.c.l.b16 %v1512
        %v1530 = vunpack.c.l.b16 %v1513
        %v1531 = vunpack.c.l.b16 %v1514
        %v1532 = vunpack.c.l.b16 %v1515
        %v1533 = vpack.c.b16 %v1526, %v1525
        %v1534 = vpack.c.b16 %v1528, %v1527
        %v1535 = vpack.c.b16 %v1530, %v1529
        %v1536 = vpack.c.b16 %v1532, %v1531
        %v1542 = vsel %vm1147, %v1507, 0
        %1544 = vmatprep.subr.bf16.mxu0 0
        %1545 = vmatpush1.bf16.msra.mxu0 %v1533
        %1546 = vmatprep.subr.bf16.mxu0 0
        %1547 = vmatpush1.bf16.msra.mxu0 %v1534
        %1548 = vmatprep.subr.bf16.mxu0 0
        %1549 = vmatpush1.bf16.msra.mxu0 %v1535
        %1550 = vmatprep.subr.bf16.mxu0 0
        %1551 = vmatpush1.bf16.msra.mxu0 %v1536
        %1552 = vmatprep.subr.bf16.mxu0 0
        %1553 = vmatpush1.bf16.msra.mxu0 0
        %1554 = vmatprep.subr.bf16.mxu0 0
        %1555 = vmatpush1.bf16.msra.mxu0 0
        %1556 = vmatprep.subr.bf16.mxu0 0
        %1557 = vmatpush1.bf16.msra.mxu0 0
        %1558 = vmatprep.subr.bf16.mxu0 0
        %1559 = vmatpush1.bf16.msra.mxu0 0
        %1560 = vmatprep.subr.bf16.mxu0 0
        %1561 = vmatpush1.bf16.msra.mxu0 0
        %1562 = vmatprep.subr.bf16.mxu0 0
        %1563 = vmatpush1.bf16.msra.mxu0 0
        %1564 = vmatprep.subr.bf16.mxu0 0
        %1565 = vmatpush1.bf16.msra.mxu0 0
        %1566 = vmatprep.subr.bf16.mxu0 0
        %1567 = vmatpush1.bf16.msra.mxu0 0
        %1568 = vmatprep.subr.bf16.mxu0 0
        %1569 = vmatpush1.bf16.msra.mxu0 0
        %1570 = vmatprep.subr.bf16.mxu0 0
        %1571 = vmatpush1.bf16.msra.mxu0 0
        %1572 = vmatprep.subr.bf16.mxu0 0
        %1573 = vmatpush1.bf16.msra.mxu0 0
        %1574 = vmatprep.subr.bf16.mxu0 0
        %1575 = vmatpush1.bf16.msra.mxu0 0
        %1576 = vmatprep.mubr.bf16.mxu0 0
        %1577 = vmatmul.mubr.bf16.gmra.mrb[0].mxu0 %v1542
        %v1578 = vpop.f32.mrb[0].mxu0
        %v1579 = vadd.f32 %v1516, %v1578
        %v1580 = vpop.f32.mrb[0].mxu0
        %v1581 = vpop.f32.mrb[0].mxu0
        %v1582 = vpop.f32.mrb[0].mxu0
        %1583 = vdwg.mxu0
        %v1584 = vtanh.pop %v1579
        %vm1585 = vcmask 24576
        %1586 = vst.msk [vmem:[%s684] sm:$0x1] %vm1585, %v1584
        %s1587 = sand.u32 %s516, 1
        %s1588 = scalar_lea.sflag [#allocation3], %s1587
        %s1589 = sand.u32 %s516, 1
        %s1590 = scalar_lea.vmem [#allocation2], %s1589
        // Predicated region
        $region123: #{protein_classifier_forward.5} parent=107 // pred_check
          %p1591 = pneg %p526
        $region124: #{protein_classifier_forward.5} parent=107 // pred_check_branch
          %1593 = sbr.rel (%p1591) target = $region126
        $region125: #{protein_classifier_forward.5} parent=107 // pred_region
          %s1595 = ssub.s32 16, 16
          %1596 = vsyncadd %s1588, %s1595
          %s1597 = smul.addr %s36, 16
          %s1598 = scalar_lea.hbm %s22, %s1597
          %s1600 = sshll.u32 %s1590, 4
          %s1601 = int_to_ptr.vmem [resolvable:$true] %s1600
          %1603 = dma.vmem_to_hbm [thread:$0]  %s1601, 16, %s1598, %s1588
        $region126: #{protein_classifier_forward.5} parent=107 // pred_fallthru
          _
      $region108: #{protein_classifier_forward.5} parent=5 // pred_fallthru
        _
      %p1604 = scmp.le.s32.totalorder 2, %s31
      // Predicated region
      $region127: #{protein_classifier_forward.5} parent=5 // pred_check
        %p1605 = pneg %p1604
      $region128: #{protein_classifier_forward.5} parent=5 // pred_check_branch
        %1607 = sbr.rel (%p1605) target = $region130
      $region129: #{protein_classifier_forward.5} parent=5 // pred_region
        %s1608 = ssub.s32 %s31, 2
        // Predicated region
        $region131: #{protein_classifier_forward.5} parent=129 // pred_check
          %p1609 = pneg %p532
        $region132: #{protein_classifier_forward.5} parent=129 // pred_check_branch
          %1611 = sbr.rel (%p1609) target = $region134
        $region133: #{protein_classifier_forward.5} parent=129 // pred_region
          %s1612 = sand.u32 %s517, 1
          %s1613 = scalar_lea.sflag [#allocation3], %s1612
          %s1614 = sand.u32 %s517, 1
          %s1615 = scalar_lea.vmem [#allocation2], %s1614
          %1616 = dma.done %s1613, 16
        $region134: #{protein_classifier_forward.5} parent=129 // pred_fallthru
          _
      $region130: #{protein_classifier_forward.5} parent=5 // pred_fallthru
        _
    $region6: #{protein_classifier_forward.5} parent=1 // loop_footer
      %s35 = sadd.s32 1, %s31
    $region7: #{protein_classifier_forward.5} parent=1 // loop_footer_branch
      %30 = sbr.rel target = $region3
    $region8: #{protein_classifier_forward.5} parent=1 // loop_exit
      _
    %1617 = vsyncpa [#allocation3], 1
    %s1618 = scalar_lea.sflag [#allocation3], 1
    %1619 = vsyncpa %s1618, 1

</llo_original>
